<compile_context>
chip_gen: v6e
topology: v6e:2x2x1
jax: 0.10.0
libtpu: 0.0.40
codegen_flags: <defaults>
</compile_context>

<pallas_src>
import functools

import jax
import jax.numpy as jnp
from jax import lax
from jax.experimental import pallas as pl
from jax.experimental.pallas import tpu as pltpu


_VMEM_LIMIT = 48 << 20  # below v7x's 64 MiB physical VMEM per TensorCore


def _cdiv(a, b):
    return -(-a // b)


def _round_up(x, m):
    return _cdiv(x, m) * m


def _pick_tile_m(M, target, align=16):
    """M-tile choice: ~`target` rows (amortize per-step overhead / fill the HBM
    pipe), 16-row aligned (bf16 sublane packing), and >=2 grid steps whenever M
    allows so the 'parallel' axis can shard across both v7x TensorCores."""
    if M <= 2 * align:
        return M
    n_steps = max(2, _cdiv(M, target))
    return min(_round_up(_cdiv(M, n_steps), align), M)


# ----------------------------------------------------------------------------
# Kernel 1: tiled matmul + bias (+ optional ReLU).  bf16 operands, f32 accum.
# Used for both convolutions (expressed as im2col matmuls).
# ----------------------------------------------------------------------------
def _matmul_bias_kernel(a_ref, w_ref, b_ref, o_ref, *, relu):
    acc = jnp.dot(a_ref[...], w_ref[...], preferred_element_type=jnp.float32)
    acc = acc + b_ref[...]                      # (tm, N) + (1, N), f32 epilogue
    if relu:
        acc = jnp.maximum(acc, 0.0)
    o_ref[...] = acc.astype(o_ref.dtype)


def matmul_bias(a, w, b2, *, relu=False, out_dtype=jnp.float32, tile_m=2048):
    """a: (M, K) x w: (K, N) + b2: (1, N) f32 -> (M, N) out_dtype."""
    M, K = a.shape
    K2, N = w.shape
    assert K == K2 and b2.shape == (1, N)
    tm = _pick_tile_m(M, tile_m)
    grid = (_cdiv(M, tm),)
    cost = pl.CostEstimate(
        flops=2 * M * K * N,
        transcendentals=0,
        bytes_accessed=(M * K * 2 + K * N * 2 + N * 4
                        + M * N * jnp.dtype(out_dtype).itemsize),
    )
    return pl.pallas_call(
        functools.partial(_matmul_bias_kernel, relu=relu),
        out_shape=jax.ShapeDtypeStruct((M, N), out_dtype),
        grid=grid,
        in_specs=[
            pl.BlockSpec((tm, K), lambda i: (i, 0)),
            pl.BlockSpec((K, N), lambda i: (0, 0)),
            pl.BlockSpec((1, N), lambda i: (0, 0)),
        ],
        out_specs=pl.BlockSpec((tm, N), lambda i: (i, 0)),
        compiler_params=pltpu.CompilerParams(
            dimension_semantics=("parallel",),
            vmem_limit_bytes=_VMEM_LIMIT,
        ),
        cost_estimate=cost,
    )(a.astype(jnp.bfloat16), w.astype(jnp.bfloat16), b2.astype(jnp.float32))


# ----------------------------------------------------------------------------
# Kernel 2: fused fc1 + fc2 (the (tm, 256) hidden never leaves VMEM/registers).
# Reference forward has NO activation between fc1 and fc2.  fc2 is f32 and its
# output columns are zero-padded to 128 lanes (lane-dense store).
# ----------------------------------------------------------------------------
def _fc_fused_kernel(x_ref, w1_ref, b1_ref, w2_ref, b2_ref, o_ref):
    h = jnp.dot(x_ref[...], w1_ref[...], preferred_element_type=jnp.float32)
    h = h + b1_ref[...]
    out = jnp.dot(h, w2_ref[...], preferred_element_type=jnp.float32)
    o_ref[...] = (out + b2_ref[...]).astype(o_ref.dtype)


def fc1_fc2_fused(x, w1, b1, w2, b2, *, tile_m=512):
    M, K = x.shape
    K1, H = w1.shape
    H2, N = w2.shape
    assert K == K1 and H == H2
    tm = _pick_tile_m(M, tile_m)
    grid = (_cdiv(M, tm),)
    cost = pl.CostEstimate(
        flops=2 * M * K * H + 2 * M * H * N,
        transcendentals=0,
        bytes_accessed=M * K * 2 + K * H * 2 + H * 4 + H * N * 4 + N * 4 + M * N * 4,
    )
    return pl.pallas_call(
        _fc_fused_kernel,
        out_shape=jax.ShapeDtypeStruct((M, N), jnp.float32),
        grid=grid,
        in_specs=[
            pl.BlockSpec((tm, K), lambda i: (i, 0)),
            pl.BlockSpec((K, H), lambda i: (0, 0)),
            pl.BlockSpec((1, H), lambda i: (0, 0)),
            pl.BlockSpec((H, N), lambda i: (0, 0)),
            pl.BlockSpec((1, N), lambda i: (0, 0)),
        ],
        out_specs=pl.BlockSpec((tm, N), lambda i: (i, 0)),
        compiler_params=pltpu.CompilerParams(
            dimension_semantics=("parallel",),
            vmem_limit_bytes=_VMEM_LIMIT,
        ),
        cost_estimate=cost,
    )(x.astype(jnp.bfloat16), w1.astype(jnp.bfloat16), b1.astype(jnp.float32),
      w2.astype(jnp.float32), b2.astype(jnp.float32))


# ----------------------------------------------------------------------------
# Glue: space-to-depth im2col.  kernel == 2*stride, so each conv is a 2x2
# stride-1 conv over a space-to-depth input; the patch matrix is only a 4-way
# concat of lane-dense 64-wide chunks.  All XLA glue stays tiny & lane-dense.
# ----------------------------------------------------------------------------
def _space_to_depth_nchw(x, s):
    """NCHW -> space-to-depth NHWC, channel order (ph, pw, c). One transpose."""
    B, C, H, W = x.shape
    assert H % s == 0 and W % s == 0
    x = x.reshape(B, C, H // s, s, W // s, s)          # (b, c, bh, ph, bw, pw)
    x = jnp.transpose(x, (0, 2, 4, 3, 5, 1))           # (b, bh, bw, ph, pw, c)
    return x.reshape(B, H // s, W // s, s * s * C)


def _space_to_depth_nhwc(x, s):
    """NHWC -> space-to-depth NHWC, channel order (ph, pw, c)."""
    B, H, W, C = x.shape
    assert H % s == 0 and W % s == 0
    x = x.reshape(B, H // s, s, W // s, s, C)          # (b, bh, ph, bw, pw, c)
    x = jnp.transpose(x, (0, 1, 3, 2, 4, 5))           # (b, bh, bw, ph, pw, c)
    return x.reshape(B, H // s, W // s, s * s * C)


def _two_by_two_cols(x_s2d):
    """2x2 stride-1 im2col of a space-to-depth tensor.

    Returns a (B*OH*OW, 4*Cs) matrix whose column order is (dh, dw, ph, pw, c);
    the conv weights are pre-permuted to the same order in prepare_params().
    """
    B, Hs, Ws, Cs = x_s2d.shape
    oh, ow = Hs - 1, Ws - 1
    taps = [x_s2d[:, dh:dh + oh, dw:dw + ow, :]
            for dh in (0, 1) for dw in (0, 1)]          # 4 x (B, oh, ow, Cs)
    cols = jnp.concatenate(taps, axis=-1)               # (B, oh, ow, 4*Cs)
    return cols.reshape(B * oh * ow, 4 * Cs), oh, ow


# ----------------------------------------------------------------------------
# Parameters (PyTorch layouts) + one-time re-layout for the kernels
# ----------------------------------------------------------------------------
def init_params(key, n_actions):
    ks = jax.random.split(key, 8)
    s = 0.05
    return {
        "conv1_w": s * jax.random.normal(ks[0], (16, 4, 8, 8), jnp.float32),
        "conv1_b": s * jax.random.normal(ks[1], (16,), jnp.float32),
        "conv2_w": s * jax.random.normal(ks[2], (32, 16, 4, 4), jnp.float32),
        "conv2_b": s * jax.random.normal(ks[3], (32,), jnp.float32),
        "fc1_w":   s * jax.random.normal(ks[4], (256, 32 * 9 * 8), jnp.float32),
        "fc1_b":   s * jax.random.normal(ks[5], (256,), jnp.float32),
        "fc2_w":   s * jax.random.normal(ks[6], (n_actions, 256), jnp.float32),
        "fc2_b":   s * jax.random.normal(ks[7], (n_actions,), jnp.float32),
    }


def _conv_weight_to_s2d_matrix(w, s):
    """(OC, C, 2s, 2s) torch conv weight -> (4*s*s*C, OC) matmul weight whose
    row order (dh, dw, ph, pw, c) matches _two_by_two_cols of a space-to-depth
    input (kh = dh*s + ph, kw = dw*s + pw)."""
    oc, c, kh, kw = w.shape
    assert kh == 2 * s and kw == 2 * s
    w = w.reshape(oc, c, 2, s, 2, s)                    # (oc, c, dh, ph, dw, pw)
    w = jnp.transpose(w, (2, 4, 3, 5, 1, 0))            # (dh, dw, ph, pw, c, oc)
    return w.reshape(4 * s * s * c, oc)


def prepare_params(p):
    """One-time weight re-layout so the forward has no per-call transposes.

    * conv weights -> (K, OC) matmul matrices in space-to-depth tap order.
    * fc1 columns permuted from torch's (C, H, W) flatten order to (H, W, C)
      (the channel-last conv2 output order), then transposed to (K, N).
    * fc2 transposed to (K, N) and zero-padded to 128 output lanes (f32);
      biases stored as (1, N) f32 rows.
    """
    n_actions = p["fc2_w"].shape[0]
    n_pad = _round_up(max(n_actions, 1), 128)
    c1w = _conv_weight_to_s2d_matrix(p["conv1_w"], 4)   # (256, 16)
    c2w = _conv_weight_to_s2d_matrix(p["conv2_w"], 2)   # (256, 32)
    f1 = p["fc1_w"].reshape(-1, 32, 9, 8)               # (256, c, h, w)
    f1 = jnp.transpose(f1, (0, 2, 3, 1)).reshape(p["fc1_w"].shape[0], -1)
    f2 = jnp.zeros((256, n_pad), jnp.float32).at[:, :n_actions].set(p["fc2_w"].T)
    f2b = jnp.zeros((1, n_pad), jnp.float32).at[:, :n_actions].set(p["fc2_b"])
    return {
        "conv1_w": c1w.astype(jnp.bfloat16),
        "conv1_b": p["conv1_b"].reshape(1, -1).astype(jnp.float32),
        "conv2_w": c2w.astype(jnp.bfloat16),
        "conv2_b": p["conv2_b"].reshape(1, -1).astype(jnp.float32),
        "fc1_w":   f1.T.astype(jnp.bfloat16),
        "fc1_b":   p["fc1_b"].reshape(1, -1).astype(jnp.float32),
        "fc2_w":   f2,                                  # f32, padded columns
        "fc2_b":   f2b,
    }


# ----------------------------------------------------------------------------
# DQN forward
# ----------------------------------------------------------------------------
@functools.partial(jax.jit, static_argnames=("n_actions",))
def dqn_forward(prepped, x, *, n_actions):
    """x: (B, 4, H, W) NCHW (PyTorch convention) -> (B, n_actions) f32.

    NOTE: matmuls use bf16 operands with f32 accumulation; expect ~1e-2
    relative deviation vs an f32 reference (tolerance-tested in __main__).
    """
    B = x.shape[0]
    # conv1 (k=8, s=4) + ReLU:  NCHW -> space-to-depth NHWC is ONE transpose.
    xs = _space_to_depth_nchw(x.astype(jnp.bfloat16), 4)      # (B, 21, 19, 64)
    cols1, oh1, ow1 = _two_by_two_cols(xs)                     # (B*360, 256)
    y = matmul_bias(cols1, prepped["conv1_w"], prepped["conv1_b"],
                    relu=True, out_dtype=jnp.bfloat16)         # (B*360, 16)
    y = y.reshape(B, oh1, ow1, -1)                             # (B,20,18,16) NHWC
    # conv2 (k=4, s=2) + ReLU
    ys = _space_to_depth_nhwc(y, 2)                            # (B, 10, 9, 64)
    cols2, oh2, ow2 = _two_by_two_cols(ys)                     # (B*72, 256)
    z = matmul_bias(cols2, prepped["conv2_w"], prepped["conv2_b"],
                    relu=True, out_dtype=jnp.bfloat16)         # (B*72, 32)
    z = z.reshape(B, -1)                                       # (B, 2304), free reshape, HWC order
    # fc1 + fc2 fused (fc1_w columns pre-permuted for the HWC flatten order)
    q = fc1_fc2_fused(z, prepped["fc1_w"], prepped["fc1_b"],
                      prepped["fc2_w"], prepped["fc2_b"])      # (B, 128)
    return q[:, :n_actions]


# ----------------------------------------------------------------------------
# Pure-JAX reference of the PyTorch module (independent implementation)
# ----------------------------------------------------------------------------
def dqn_reference(params, x):
    dn = ("NCHW", "OIHW", "NCHW")
    y = lax.conv_general_dilated(x, params["conv1_w"], (4, 4), "VALID",
                                 dimension_numbers=dn)
    y = jax.nn.relu(y + params["conv1_b"][None, :, None, None])
    y = lax.conv_general_dilated(y, params["conv2_w"], (2, 2), "VALID",
                                 dimension_numbers=dn)
    y = jax.nn.relu(y + params["conv2_b"][None, :, None, None])
    y = y.reshape(y.shape[0], -1)                              # (C, H, W) order
    y = y @ params["fc1_w"].T + params["fc1_b"]
    return y @ params["fc2_w"].T + params["fc2_b"]


if __name__ == "__main__":
    n_actions = 6
    key = jax.random.PRNGKey(0)
    k_param, k_x = jax.random.split(key)
    params = init_params(k_param, n_actions)
    prepped = prepare_params(params)

    # Smallest input consistent with fc1 = Linear(32*9*8, 256): (B, 4, 84, 76)
    x = jax.random.normal(k_x, (2, 4, 84, 76), jnp.float32)

    out = dqn_forward(prepped, x, n_actions=n_actions)
    out = jax.block_until_ready(out)

    assert out.shape == (2, n_actions), out.shape
    assert bool(jnp.all(jnp.isfinite(out)))

    # Tolerance check vs f32-ish reference (bf16 MXU operands => ~1e-2 rel).
    ref = dqn_reference(params, x)
    assert bool(jnp.allclose(out, ref, rtol=5e-2, atol=5e-2)), (
        "max abs err = %f" % float(jnp.max(jnp.abs(out - ref))))

    print("KERNEL_OK")
</pallas_src>

<mosaic_0001>
module attributes {stable_mosaic.version = 11 : i64} {
  func.func @_matmul_bias_kernel(%arg0: i32, %arg1: memref<368x256xbf16, #tpu.memory_space<vmem>>, %arg2: memref<256x16xbf16, #tpu.memory_space<vmem>>, %arg3: memref<1x16xf32, #tpu.memory_space<vmem>>, %arg4: memref<368x16xbf16, #tpu.memory_space<vmem>>) attributes {dimension_semantics = [#tpu.dimension_semantics<parallel>], iteration_bounds = array<i64: 2>, scalar_prefetch = 0 : i64, scratch_operands = 0 : i64, tpu.core_type = #tpu.core_type<tc>, window_params = [{transform_indices = @transform_0, window_bounds = array<i64: 368, 256>}, {pipeline_mode = #tpu.pipeline_mode<synchronous>, transform_indices = @transform_1, window_bounds = array<i64: 256, 16>}, {pipeline_mode = #tpu.pipeline_mode<synchronous>, transform_indices = @transform_2, window_bounds = array<i64: 1, 16>}, {transform_indices = @transform_3, window_bounds = array<i64: 368, 16>}]} {
    %c0 = arith.constant 0 : index
    %c0_0 = arith.constant 0 : index
    %0 = vector.load %arg1[%c0, %c0_0] : memref<368x256xbf16, #tpu.memory_space<vmem>>, vector<368x256xbf16>
    %c0_1 = arith.constant 0 : index
    %c0_2 = arith.constant 0 : index
    %1 = vector.load %arg2[%c0_1, %c0_2] : memref<256x16xbf16, #tpu.memory_space<vmem>>, vector<256x16xbf16>
    %cst = arith.constant dense<0.000000e+00> : vector<368x16xf32>
    %2 = tpu.matmul %0, %1, %cst {dimension_numbers = #tpu.dot_dimension_numbers<[1], [0], [0], [1], [0, 0, 1, 1], [], []>} : vector<368x256xbf16>, vector<256x16xbf16>, vector<368x16xf32> -> vector<368x16xf32>
    %c0_3 = arith.constant 0 : index
    %c0_4 = arith.constant 0 : index
    %3 = vector.load %arg3[%c0_3, %c0_4] : memref<1x16xf32, #tpu.memory_space<vmem>>, vector<1x16xf32>
    %4 = vector.broadcast %3 : vector<1x16xf32> to vector<368x16xf32>
    %5 = arith.addf %2, %4 : vector<368x16xf32>
    %cst_5 = arith.constant 0.000000e+00 : f32
    %6 = vector.broadcast %cst_5 : f32 to vector<368x16xf32>
    %7 = arith.maximumf %5, %6 : vector<368x16xf32>
    %8 = arith.truncf %7 : vector<368x16xf32> to vector<368x16xbf16>
    %c0_6 = arith.constant 0 : index
    %c0_7 = arith.constant 0 : index
    %9 = vector.load %arg4[%c0_6, %c0_7] : memref<368x16xbf16, #tpu.memory_space<vmem>>, vector<368x16xbf16>
    tpu.vector_store %arg4[%c0_6, %c0_7], %8 {strides = array<i32>} : memref<368x16xbf16, #tpu.memory_space<vmem>>, vector<368x16xbf16>,
    return
  }
  func.func @transform_0(%arg0: i32) -> (i32, i32) {
    %c0_i32 = arith.constant 0 : i32
    %c0_i32_0 = arith.constant 0 : i32
    return %arg0, %c0_i32 : i32, i32
  }
  func.func @transform_1(%arg0: i32) -> (i32, i32) {
    %c0_i32 = arith.constant 0 : i32
    %c0_i32_0 = arith.constant 0 : i32
    %c0_i32_1 = arith.constant 0 : i32
    return %c0_i32, %c0_i32_0 : i32, i32
  }
  func.func @transform_2(%arg0: i32) -> (i32, i32) {
    %c0_i32 = arith.constant 0 : i32
    %c0_i32_0 = arith.constant 0 : i32
    %c0_i32_1 = arith.constant 0 : i32
    return %c0_i32, %c0_i32_0 : i32, i32
  }
  func.func @transform_3(%arg0: i32) -> (i32, i32) {
    %c0_i32 = arith.constant 0 : i32
    %c0_i32_0 = arith.constant 0 : i32
    return %arg0, %c0_i32 : i32, i32
  }
}

module attributes {stable_mosaic.version = 11 : i64} {
  func.func @_matmul_bias_kernel(%arg0: i32, %arg1: memref<80x256xbf16, #tpu.memory_space<vmem>>, %arg2: memref<256x32xbf16, #tpu.memory_space<vmem>>, %arg3: memref<1x32xf32, #tpu.memory_space<vmem>>, %arg4: memref<80x32xbf16, #tpu.memory_space<vmem>>) attributes {dimension_semantics = [#tpu.dimension_semantics<parallel>], iteration_bounds = array<i64: 2>, scalar_prefetch = 0 : i64, scratch_operands = 0 : i64, tpu.core_type = #tpu.core_type<tc>, window_params = [{transform_indices = @transform_0, window_bounds = array<i64: 80, 256>}, {pipeline_mode = #tpu.pipeline_mode<synchronous>, transform_indices = @transform_1, window_bounds = array<i64: 256, 32>}, {pipeline_mode = #tpu.pipeline_mode<synchronous>, transform_indices = @transform_2, window_bounds = array<i64: 1, 32>}, {transform_indices = @transform_3, window_bounds = array<i64: 80, 32>}]} {
    %c0 = arith.constant 0 : index
    %c0_0 = arith.constant 0 : index
    %0 = vector.load %arg1[%c0, %c0_0] : memref<80x256xbf16, #tpu.memory_space<vmem>>, vector<80x256xbf16>
    %c0_1 = arith.constant 0 : index
    %c0_2 = arith.constant 0 : index
    %1 = vector.load %arg2[%c0_1, %c0_2] : memref<256x32xbf16, #tpu.memory_space<vmem>>, vector<256x32xbf16>
    %cst = arith.constant dense<0.000000e+00> : vector<80x32xf32>
    %2 = tpu.matmul %0, %1, %cst {dimension_numbers = #tpu.dot_dimension_numbers<[1], [0], [0], [1], [0, 0, 1, 1], [], []>} : vector<80x256xbf16>, vector<256x32xbf16>, vector<80x32xf32> -> vector<80x32xf32>
    %c0_3 = arith.constant 0 : index
    %c0_4 = arith.constant 0 : index
    %3 = vector.load %arg3[%c0_3, %c0_4] : memref<1x32xf32, #tpu.memory_space<vmem>>, vector<1x32xf32>
    %4 = vector.broadcast %3 : vector<1x32xf32> to vector<80x32xf32>
    %5 = arith.addf %2, %4 : vector<80x32xf32>
    %cst_5 = arith.constant 0.000000e+00 : f32
    %6 = vector.broadcast %cst_5 : f32 to vector<80x32xf32>
    %7 = arith.maximumf %5, %6 : vector<80x32xf32>
    %8 = arith.truncf %7 : vector<80x32xf32> to vector<80x32xbf16>
    %c0_6 = arith.constant 0 : index
    %c0_7 = arith.constant 0 : index
    %9 = vector.load %arg4[%c0_6, %c0_7] : memref<80x32xbf16, #tpu.memory_space<vmem>>, vector<80x32xbf16>
    tpu.vector_store %arg4[%c0_6, %c0_7], %8 {strides = array<i32>} : memref<80x32xbf16, #tpu.memory_space<vmem>>, vector<80x32xbf16>,
    return
  }
  func.func @transform_0(%arg0: i32) -> (i32, i32) {
    %c0_i32 = arith.constant 0 : i32
    %c0_i32_0 = arith.constant 0 : i32
    return %arg0, %c0_i32 : i32, i32
  }
  func.func @transform_1(%arg0: i32) -> (i32, i32) {
    %c0_i32 = arith.constant 0 : i32
    %c0_i32_0 = arith.constant 0 : i32
    %c0_i32_1 = arith.constant 0 : i32
    return %c0_i32, %c0_i32_0 : i32, i32
  }
  func.func @transform_2(%arg0: i32) -> (i32, i32) {
    %c0_i32 = arith.constant 0 : i32
    %c0_i32_0 = arith.constant 0 : i32
    %c0_i32_1 = arith.constant 0 : i32
    return %c0_i32, %c0_i32_0 : i32, i32
  }
  func.func @transform_3(%arg0: i32) -> (i32, i32) {
    %c0_i32 = arith.constant 0 : i32
    %c0_i32_0 = arith.constant 0 : i32
    return %arg0, %c0_i32 : i32, i32
  }
}

module attributes {stable_mosaic.version = 11 : i64} {
  func.func @_fc_fused_kernel(%arg0: i32, %arg1: memref<2x2304xbf16, #tpu.memory_space<vmem>>, %arg2: memref<2304x256xbf16, #tpu.memory_space<vmem>>, %arg3: memref<1x256xf32, #tpu.memory_space<vmem>>, %arg4: memref<256x128xf32, #tpu.memory_space<vmem>>, %arg5: memref<1x128xf32, #tpu.memory_space<vmem>>, %arg6: memref<2x128xf32, #tpu.memory_space<vmem>>) attributes {dimension_semantics = [#tpu.dimension_semantics<parallel>], iteration_bounds = array<i64: 1>, scalar_prefetch = 0 : i64, scratch_operands = 0 : i64, tpu.core_type = #tpu.core_type<tc>, window_params = [{transform_indices = @transform_0, window_bounds = array<i64: 2, 2304>}, {pipeline_mode = #tpu.pipeline_mode<synchronous>, transform_indices = @transform_1, window_bounds = array<i64: 2304, 256>}, {pipeline_mode = #tpu.pipeline_mode<synchronous>, transform_indices = @transform_2, window_bounds = array<i64: 1, 256>}, {pipeline_mode = #tpu.pipeline_mode<synchronous>, transform_indices = @transform_3, window_bounds = array<i64: 256, 128>}, {pipeline_mode = #tpu.pipeline_mode<synchronous>, transform_indices = @transform_4, window_bounds = array<i64: 1, 128>}, {transform_indices = @transform_5, window_bounds = array<i64: 2, 128>}]} {
    %c0 = arith.constant 0 : index
    %c0_0 = arith.constant 0 : index
    %0 = vector.load %arg1[%c0, %c0_0] : memref<2x2304xbf16, #tpu.memory_space<vmem>>, vector<2x2304xbf16>
    %c0_1 = arith.constant 0 : index
    %c0_2 = arith.constant 0 : index
    %1 = vector.load %arg2[%c0_1, %c0_2] : memref<2304x256xbf16, #tpu.memory_space<vmem>>, vector<2304x256xbf16>
    %cst = arith.constant dense<0.000000e+00> : vector<2x256xf32>
    %2 = tpu.matmul %0, %1, %cst {dimension_numbers = #tpu.dot_dimension_numbers<[1], [0], [0], [1], [0, 0, 1, 1], [], []>} : vector<2x2304xbf16>, vector<2304x256xbf16>, vector<2x256xf32> -> vector<2x256xf32>
    %c0_3 = arith.constant 0 : index
    %c0_4 = arith.constant 0 : index
    %3 = vector.load %arg3[%c0_3, %c0_4] : memref<1x256xf32, #tpu.memory_space<vmem>>, vector<1x256xf32>
    %4 = vector.broadcast %3 : vector<1x256xf32> to vector<2x256xf32>
    %5 = arith.addf %2, %4 : vector<2x256xf32>
    %c0_5 = arith.constant 0 : index
    %c0_6 = arith.constant 0 : index
    %6 = vector.load %arg4[%c0_5, %c0_6] : memref<256x128xf32, #tpu.memory_space<vmem>>, vector<256x128xf32>
    %cst_7 = arith.constant dense<0.000000e+00> : vector<2x128xf32>
    %7 = tpu.matmul %5, %6, %cst_7 {dimension_numbers = #tpu.dot_dimension_numbers<[1], [0], [0], [1], [0, 0, 1, 1], [], []>} : vector<2x256xf32>, vector<256x128xf32>, vector<2x128xf32> -> vector<2x128xf32>
    %c0_8 = arith.constant 0 : index
    %c0_9 = arith.constant 0 : index
    %8 = vector.load %arg5[%c0_8, %c0_9] : memref<1x128xf32, #tpu.memory_space<vmem>>, vector<1x128xf32>
    %9 = vector.broadcast %8 : vector<1x128xf32> to vector<2x128xf32>
    %10 = arith.addf %7, %9 : vector<2x128xf32>
    %c0_10 = arith.constant 0 : index
    %c0_11 = arith.constant 0 : index
    %11 = vector.load %arg6[%c0_10, %c0_11] : memref<2x128xf32, #tpu.memory_space<vmem>>, vector<2x128xf32>
    tpu.vector_store %arg6[%c0_10, %c0_11], %10 {strides = array<i32>} : memref<2x128xf32, #tpu.memory_space<vmem>>, vector<2x128xf32>,
    return
  }
  func.func @transform_0(%arg0: i32) -> (i32, i32) {
    %c0_i32 = arith.constant 0 : i32
    %c0_i32_0 = arith.constant 0 : i32
    return %arg0, %c0_i32 : i32, i32
  }
  func.func @transform_1(%arg0: i32) -> (i32, i32) {
    %c0_i32 = arith.constant 0 : i32
    %c0_i32_0 = arith.constant 0 : i32
    %c0_i32_1 = arith.constant 0 : i32
    return %c0_i32, %c0_i32_0 : i32, i32
  }
  func.func @transform_2(%arg0: i32) -> (i32, i32) {
    %c0_i32 = arith.constant 0 : i32
    %c0_i32_0 = arith.constant 0 : i32
    %c0_i32_1 = arith.constant 0 : i32
    return %c0_i32, %c0_i32_0 : i32, i32
  }
  func.func @transform_3(%arg0: i32) -> (i32, i32) {
    %c0_i32 = arith.constant 0 : i32
    %c0_i32_0 = arith.constant 0 : i32
    %c0_i32_1 = arith.constant 0 : i32
    return %c0_i32, %c0_i32_0 : i32, i32
  }
  func.func @transform_4(%arg0: i32) -> (i32, i32) {
    %c0_i32 = arith.constant 0 : i32
    %c0_i32_0 = arith.constant 0 : i32
    %c0_i32_1 = arith.constant 0 : i32
    return %c0_i32, %c0_i32_0 : i32, i32
  }
  func.func @transform_5(%arg0: i32) -> (i32, i32) {
    %c0_i32 = arith.constant 0 : i32
    %c0_i32_0 = arith.constant 0 : i32
    return %arg0, %c0_i32 : i32, i32
  }
}

</mosaic_0001>

<llo_original>
// kernel: dqn_forward.3
$region0: #{dqn_forward.3}
  #allocation0 [shape = 'u32[]', space=smem, size = 0x4, offset = 0x4, fixed_abs, tag = 'smem constant byte address 0x4 - core index']
  #allocation1 [shape = 'u32[144,128]{1,0:T(1,128)}', space=vmem, size = 0x12000, scoped, tag = 'internal scratch']
  %s0 = inlined_call_operand.vmem [shape: bf16[720,256], index: 0, kind: input, shape index: {}]
  %s1 = inlined_call_operand.vmem [shape: bf16[256,16], index: 1, kind: input, shape index: {}]
  %s2 = inlined_call_operand.vmem [shape: f32[1,16], index: 2, kind: input, shape index: {}]
  %s3 = inlined_call_operand.vmem [shape: bf16[720,16], index: 3, kind: output, shape index: {}]
  %s4 = sld [smem:[#allocation0]]
  $region89: #{dqn_forward.3} parent=0
    _
  %s6 = ssub.s32 1, %s4
  %s7 = scalar_select 0, %s6, %s4
  $region1: #{dqn_forward.3} parent=0
    #allocation2 [shape = 'u8[188416]{0}', space=vmem, size = 0x2e000, scoped, tag = 'output window, operand 0']
    loop: start=0, step=1, limit=4
    $region2: #{dqn_forward.3} parent=1 // loop_pre_header
      _
    $region3: #{dqn_forward.3} parent=1 // loop_header
      %s9 = sphi 0, %s13
      %p10 = scmp.ge.s32.totalorder %s9, 4
      %s19 = sphi 0, %s21
      %s22 = sphi 0, %s19
      %s23 = sphi 0, %s22
      %s39 = sphi 0, %s23
      %s43 = sphi 0, %s43
      %s45 = sphi 0, %s43
      %s46 = sphi 0, %s45
      %s60 = sphi 0, %s46
      %s64 = sphi 0, %s64
      %s66 = sphi 0, %s64
      %s67 = sphi 0, %s66
      %s81 = sphi 0, %s67
      %s87 = sphi 0, %s89
      %s90 = sphi 0, %s87
      %s91 = sphi 0, %s90
      %s107 = sphi 0, %s91
    $region4: #{dqn_forward.3} parent=1 // loop_header_branch
      %12 = sbr.rel (%p10) target = $region8
    $region5: #{dqn_forward.3} parent=1 // loop_body
      %s14 = ssub.s32 %s9, 1
      %s15 = ssub.s32 %s9, 2
      %s16 = sadd.s32 %s9, 1
      %s17 = ssub.s32 %s9, %s16
      %p18 = scmp.eq.s32.totalorder %s17, 0
      %s20 = sadd.s32 %s19, 1
      %s21 = scalar_select %p18, %s19, %s20
      %p24 = pneg %p18
      %p25 = scmp.eq.s32.totalorder %s9, 1
      %p26 = por %p24, %p25
      %p27 = scmp.ne.s32.totalorder %s19, %s22
      %p28 = scmp.eq.s32.totalorder %s9, 0
      %p29 = por %p27, %p28
      %p30 = scmp.ne.s32.totalorder %s19, %s22
      %p31 = scmp.eq.s32.totalorder %s14, 1
      %p32 = por %p30, %p31
      %p33 = scmp.ne.s32.totalorder %s22, %s23
      %p34 = scmp.eq.s32.totalorder %s14, 0
      %p35 = por %p33, %p34
      %p36 = scmp.ne.s32.totalorder %s22, %s23
      %p37 = scmp.eq.s32.totalorder %s15, 1
      %p38 = por %p36, %p37
      %p40 = scmp.ne.s32.totalorder %s23, %s39
      %p41 = scmp.eq.s32.totalorder %s15, 0
      %p42 = por %p40, %p41
      %s44 = sadd.s32 %s43, 1
      %p47 = scmp.eq.s32.totalorder %s9, 1
      %p48 = scmp.ne.s32.totalorder %s43, %s45
      %p49 = scmp.eq.s32.totalorder %s9, 0
      %p50 = por %p48, %p49
      %p51 = scmp.ne.s32.totalorder %s43, %s45
      %p52 = scmp.eq.s32.totalorder %s14, 1
      %p53 = por %p51, %p52
      %p54 = scmp.ne.s32.totalorder %s45, %s46
      %p55 = scmp.eq.s32.totalorder %s14, 0
      %p56 = por %p54, %p55
      %p57 = scmp.ne.s32.totalorder %s45, %s46
      %p58 = scmp.eq.s32.totalorder %s15, 1
      %p59 = por %p57, %p58
      %p61 = scmp.ne.s32.totalorder %s46, %s60
      %p62 = scmp.eq.s32.totalorder %s15, 0
      %p63 = por %p61, %p62
      %s65 = sadd.s32 %s64, 1
      %p68 = scmp.eq.s32.totalorder %s9, 1
      %p69 = scmp.ne.s32.totalorder %s64, %s66
      %p70 = scmp.eq.s32.totalorder %s9, 0
      %p71 = por %p69, %p70
      %p72 = scmp.ne.s32.totalorder %s64, %s66
      %p73 = scmp.eq.s32.totalorder %s14, 1
      %p74 = por %p72, %p73
      %p75 = scmp.ne.s32.totalorder %s66, %s67
      %p76 = scmp.eq.s32.totalorder %s14, 0
      %p77 = por %p75, %p76
      %p78 = scmp.ne.s32.totalorder %s66, %s67
      %p79 = scmp.eq.s32.totalorder %s15, 1
      %p80 = por %p78, %p79
      %p82 = scmp.ne.s32.totalorder %s67, %s81
      %p83 = scmp.eq.s32.totalorder %s15, 0
      %p84 = por %p82, %p83
      %s85 = ssub.s32 %s9, %s16
      %p86 = scmp.eq.s32.totalorder %s85, 0
      %s88 = sadd.s32 %s87, 1
      %s89 = scalar_select %p86, %s87, %s88
      %p92 = pneg %p86
      %p93 = scmp.eq.s32.totalorder %s9, 1
      %p94 = por %p92, %p93
      %p95 = scmp.ne.s32.totalorder %s87, %s90
      %p96 = scmp.eq.s32.totalorder %s9, 0
      %p97 = por %p95, %p96
      %p98 = scmp.ne.s32.totalorder %s87, %s90
      %p99 = scmp.eq.s32.totalorder %s14, 1
      %p100 = por %p98, %p99
      %p101 = scmp.ne.s32.totalorder %s90, %s91
      %p102 = scmp.eq.s32.totalorder %s14, 0
      %p103 = por %p101, %p102
      %p104 = scmp.ne.s32.totalorder %s90, %s91
      %p105 = scmp.eq.s32.totalorder %s15, 1
      %p106 = por %p104, %p105
      %p108 = scmp.ne.s32.totalorder %s91, %s107
      %p109 = scmp.eq.s32.totalorder %s15, 0
      %p110 = por %p108, %p109
      %p111 = scmp.le.s32.totalorder 1, %s9
      %p112 = scmp.lt.s32.totalorder %s9, 3
      %p113 = pnand %p111, %p112
      %p114 = pneg %p113
      // Predicated region
      $region9: #{dqn_forward.3} parent=5 // pred_check
        _
      $region10: #{dqn_forward.3} parent=5 // pred_check_branch
        %116 = sbr.rel (%p113) target = $region12
      $region11: #{dqn_forward.3} parent=5 // pred_region
        %s117 = ssub.s32 %s9, 1
        // Predicated region
        $region13: #{dqn_forward.3} parent=11 // pred_check
          %p118 = pneg %p56
        $region14: #{dqn_forward.3} parent=11 // pred_check_branch
          %120 = sbr.rel (%p118) target = $region16
        $region15: #{dqn_forward.3} parent=11 // pred_region
          _
        $region16: #{dqn_forward.3} parent=11 // pred_fallthru
          _
        // Predicated region
        $region17: #{dqn_forward.3} parent=11 // pred_check
          %p121 = pneg %p77
        $region18: #{dqn_forward.3} parent=11 // pred_check_branch
          %123 = sbr.rel (%p121) target = $region20
        $region19: #{dqn_forward.3} parent=11 // pred_region
          _
        $region20: #{dqn_forward.3} parent=11 // pred_fallthru
          _
      $region12: #{dqn_forward.3} parent=5 // pred_fallthru
        _
      %p124 = scmp.lt.s32.totalorder %s9, 2
      // Predicated region
      $region21: #{dqn_forward.3} parent=5 // pred_check
        %p125 = pneg %p124
      $region22: #{dqn_forward.3} parent=5 // pred_check_branch
        %127 = sbr.rel (%p125) target = $region24
      $region23: #{dqn_forward.3} parent=5 // pred_region
        // Predicated region
        $region25: #{dqn_forward.3} parent=23 // pred_check
          %p128 = pneg %p29
        $region26: #{dqn_forward.3} parent=23 // pred_check_branch
          %130 = sbr.rel (%p128) target = $region28
        $region27: #{dqn_forward.3} parent=23 // pred_region
          %s131 = smul.u32 46, %s9
          %s132 = ssub.s32 90, %s131
          %p133 = scmp.lt.s32.totalorder %s132, 46
          %s134 = scalar_select %p133, %s132, 46
          %s135 = smul.u32 64, %s134
          %s136 = smul.u32 %s135, 2
          %p137 = scmp.lt.s32.totalorder %s131, 89
          %s138 = scalar_select %p137, %s131, 89
          %s139 = smul.addr %s138, 2
          %s140 = smul.addr %s139, 4
          %s141 = scalar_lea.vmem %s0, %s140
          %s142 = smul.u32 46, %s9
          %s143 = ssub.s32 90, %s142
          %p144 = scmp.lt.s32.totalorder %s143, 46
          %s145 = scalar_select %p144, %s143, 46
          %s146 = smul.u32 64, %s145
          %s147 = smul.u32 %s146, 2
        $region28: #{dqn_forward.3} parent=23 // pred_fallthru
          _
      $region24: #{dqn_forward.3} parent=5 // pred_fallthru
        _
      %p148 = scmp.le.s32.totalorder 1, %s9
      %p149 = scmp.lt.s32.totalorder %s9, 3
      %p150 = pnand %p148, %p149
      %p151 = pneg %p150
      // Predicated region
      $region29: #{dqn_forward.3} parent=5 // pred_check
        _
      $region30: #{dqn_forward.3} parent=5 // pred_check_branch
        %153 = sbr.rel (%p150) target = $region32
      $region31: #{dqn_forward.3} parent=5 // pred_region
        %s154 = ssub.s32 %s9, 1
        %s155 = smul.u32 46, %s14
        %s156 = ssub.s32 90, %s155
        %p157 = scmp.lt.s32.totalorder %s156, 46
        %s158 = scalar_select %p157, %s156, 46
        %s159 = smul.u32 64, %s158
        %s160 = smul.u32 %s159, 2
        %p161 = scmp.lt.s32.totalorder %s155, 89
        %s162 = scalar_select %p161, %s155, 89
        %s163 = smul.addr %s162, 2
        %s164 = smul.addr %s163, 4
        %s165 = scalar_lea.vmem %s0, %s164
        %p166 = pneg %p35
        %p167 = pneg %p32
        %p168 = pneg %p56
        %p169 = pneg %p53
        %p170 = pneg %p77
        %p171 = pneg %p74
        %p172 = pneg %p103
        %p173 = pneg %p100
        %s174 = sand.u32 %s90, 1
        %s175 = sand.u32 %s90, 1
        %s176 = smul.addr %s175, 184
        %s177 = scalar_lea.vmem [#allocation2], %s176
        %s178 = smul.u32 46, %s14
        %s179 = ssub.s32 90, %s178
        %p180 = scmp.lt.s32.totalorder %s179, 46
        %s181 = scalar_select %p180, %s179, 46
        %s182 = smul.u32 64, %s181
        %s183 = smul.u32 %s182, 2
        %p184 = scmp.lt.s32.totalorder %s178, 89
        %s185 = scalar_select %p184, %s178, 89
        %s186 = smul.addr %s185, 2
        %s187 = smul.addr %s186, 4
        %s188 = scalar_lea.vmem %s0, %s187
        %s189 = smul.u32 46, %s14
        %s190 = ssub.s32 90, %s189
        %p191 = scmp.lt.s32.totalorder %s190, 46
        %s192 = scalar_select %p191, %s190, 46
        %s193 = smul.u32 64, %s192
        %s194 = smul.u32 %s193, 2
        %s195 = smul.u32 46, %s14
        %s196 = ssub.s32 90, %s195
        %p197 = scmp.lt.s32.totalorder %s196, 46
        %s198 = scalar_select %p197, %s196, 46
        %s199 = smul.u32 64, %s198
        %v201 = vld [vmem:[%s188] sm:$0xff]
        %v202 = vld [vmem:[%s188 + $0x8] sm:$0xff]
        %v203 = vld [vmem:[%s188 + $0x10] sm:$0xff]
        %v204 = vld [vmem:[%s188 + $0x18] sm:$0xff]
        %v205 = vld [vmem:[%s188 + $0x20] sm:$0xff]
        %v206 = vld [vmem:[%s188 + $0x28] sm:$0xff]
        %v207 = vld [vmem:[%s188 + $0x30] sm:$0xff]
        %v208 = vld [vmem:[%s188 + $0x38] sm:$0xff]
        %v209 = vld [vmem:[%s188 + $0x40] sm:$0xff]
        %v210 = vld [vmem:[%s188 + $0x48] sm:$0xff]
        %v211 = vld [vmem:[%s188 + $0x50] sm:$0xff]
        %v212 = vld [vmem:[%s188 + $0x58] sm:$0xff]
        %v213 = vld [vmem:[%s188 + $0x60] sm:$0xff]
        %v214 = vld [vmem:[%s188 + $0x68] sm:$0xff]
        %v215 = vld [vmem:[%s188 + $0x70] sm:$0xff]
        %v216 = vld [vmem:[%s188 + $0x78] sm:$0xff]
        %v217 = vld [vmem:[%s188 + $0x80] sm:$0xff]
        %v218 = vld [vmem:[%s188 + $0x88] sm:$0xff]
        %v219 = vld [vmem:[%s188 + $0x90] sm:$0xff]
        %v220 = vld [vmem:[%s188 + $0x98] sm:$0xff]
        %v221 = vld [vmem:[%s188 + $0xa0] sm:$0xff]
        %v222 = vld [vmem:[%s188 + $0xa8] sm:$0xff]
        %v223 = vld [vmem:[%s188 + $0xb0] sm:$0xff]
        %v224 = vld [vmem:[%s188 + $0xb8] sm:$0xff]
        %v225 = vld [vmem:[%s188 + $0xc0] sm:$0xff]
        %v226 = vld [vmem:[%s188 + $0xc8] sm:$0xff]
        %v227 = vld [vmem:[%s188 + $0xd0] sm:$0xff]
        %v228 = vld [vmem:[%s188 + $0xd8] sm:$0xff]
        %v229 = vld [vmem:[%s188 + $0xe0] sm:$0xff]
        %v230 = vld [vmem:[%s188 + $0xe8] sm:$0xff]
        %v231 = vld [vmem:[%s188 + $0xf0] sm:$0xff]
        %v232 = vld [vmem:[%s188 + $0xf8] sm:$0xff]
        %v233 = vld [vmem:[%s188 + $0x100] sm:$0xff]
        %v234 = vld [vmem:[%s188 + $0x108] sm:$0xff]
        %v235 = vld [vmem:[%s188 + $0x110] sm:$0xff]
        %v236 = vld [vmem:[%s188 + $0x118] sm:$0xff]
        %v237 = vld [vmem:[%s188 + $0x120] sm:$0xff]
        %v238 = vld [vmem:[%s188 + $0x128] sm:$0xff]
        %v239 = vld [vmem:[%s188 + $0x130] sm:$0xff]
        %v240 = vld [vmem:[%s188 + $0x138] sm:$0xff]
        %v241 = vld [vmem:[%s188 + $0x140] sm:$0xff]
        %v242 = vld [vmem:[%s188 + $0x148] sm:$0xff]
        %v243 = vld [vmem:[%s188 + $0x150] sm:$0xff]
        %v244 = vld [vmem:[%s188 + $0x158] sm:$0xff]
        %v245 = vld [vmem:[%s188 + $0x160] sm:$0xff]
        %v246 = vld [vmem:[%s188 + $0x168] sm:$0xff]
        %v247 = vld [vmem:[%s1] sm:$0xf]
        %v248 = vld [vmem:[%s1 + $0x4] sm:$0xf]
        %v249 = vld [vmem:[%s1 + $0x8] sm:$0xf]
        %v250 = vld [vmem:[%s1 + $0xc] sm:$0xf]
        %v251 = vld [vmem:[%s1 + $0x10] sm:$0xf]
        %v252 = vld [vmem:[%s1 + $0x14] sm:$0xf]
        %v253 = vld [vmem:[%s1 + $0x18] sm:$0xf]
        %v254 = vld [vmem:[%s1 + $0x1c] sm:$0xf]
        %v255 = vld [vmem:[%s1 + $0x20] sm:$0xf]
        %v256 = vld [vmem:[%s1 + $0x24] sm:$0xf]
        %v257 = vld [vmem:[%s1 + $0x28] sm:$0xf]
        %v258 = vld [vmem:[%s1 + $0x2c] sm:$0xf]
        %v259 = vld [vmem:[%s1 + $0x30] sm:$0xf]
        %v260 = vld [vmem:[%s1 + $0x34] sm:$0xf]
        %v261 = vld [vmem:[%s1 + $0x38] sm:$0xf]
        %v262 = vld [vmem:[%s1 + $0x3c] sm:$0xf]
        %v263 = vld [vmem:[%s1 + $0x40] sm:$0xf]
        %v264 = vld [vmem:[%s1 + $0x44] sm:$0xf]
        %v265 = vld [vmem:[%s1 + $0x48] sm:$0xf]
        %v266 = vld [vmem:[%s1 + $0x4c] sm:$0xf]
        %v267 = vld [vmem:[%s1 + $0x50] sm:$0xf]
        %v268 = vld [vmem:[%s1 + $0x54] sm:$0xf]
        %v269 = vld [vmem:[%s1 + $0x58] sm:$0xf]
        %v270 = vld [vmem:[%s1 + $0x5c] sm:$0xf]
        %v271 = vld [vmem:[%s1 + $0x60] sm:$0xf]
        %v272 = vld [vmem:[%s1 + $0x64] sm:$0xf]
        %v273 = vld [vmem:[%s1 + $0x68] sm:$0xf]
        %v274 = vld [vmem:[%s1 + $0x6c] sm:$0xf]
        %v275 = vld [vmem:[%s1 + $0x70] sm:$0xf]
        %v276 = vld [vmem:[%s1 + $0x74] sm:$0xf]
        %v277 = vld [vmem:[%s1 + $0x78] sm:$0xf]
        %v278 = vld [vmem:[%s1 + $0x7c] sm:$0xf]
        %v279 = vld [vmem:[%s2] sm:$0x1]
        %v281 = vlaneseq
        %v282 = vshrl.u32 %v281, 7
        %v283 = vsub.s32 0, %v282
        %v284 = vrot.slane %v279, %v283
        %v332 = vunpack.c.l.b16 %v201
        %v333 = vunpack.c.h.b16 %v201
        %v334 = vunpack.c.l.b16 %v202
        %v335 = vunpack.c.h.b16 %v202
        %v336 = vunpack.c.l.b16 %v203
        %v337 = vunpack.c.h.b16 %v203
        %v338 = vunpack.c.l.b16 %v204
        %v339 = vunpack.c.h.b16 %v204
        %v340 = vunpack.c.l.b16 %v205
        %v341 = vunpack.c.h.b16 %v205
        %v342 = vunpack.c.l.b16 %v206
        %v343 = vunpack.c.h.b16 %v206
        %v344 = vunpack.c.l.b16 %v207
        %v345 = vunpack.c.h.b16 %v207
        %v346 = vunpack.c.l.b16 %v208
        %v347 = vunpack.c.h.b16 %v208
        %v348 = vunpack.c.l.b16 %v209
        %v349 = vunpack.c.h.b16 %v209
        %v350 = vunpack.c.l.b16 %v210
        %v351 = vunpack.c.h.b16 %v210
        %v352 = vunpack.c.l.b16 %v211
        %v353 = vunpack.c.h.b16 %v211
        %v354 = vunpack.c.l.b16 %v212
        %v355 = vunpack.c.h.b16 %v212
        %v356 = vunpack.c.l.b16 %v213
        %v357 = vunpack.c.h.b16 %v213
        %v358 = vunpack.c.l.b16 %v214
        %v359 = vunpack.c.h.b16 %v214
        %v360 = vunpack.c.l.b16 %v215
        %v361 = vunpack.c.h.b16 %v215
        %v362 = vunpack.c.l.b16 %v216
        %v363 = vunpack.c.h.b16 %v216
        %v364 = vunpack.c.l.b16 %v217
        %v365 = vunpack.c.h.b16 %v217
        %v366 = vunpack.c.l.b16 %v218
        %v367 = vunpack.c.h.b16 %v218
        %v368 = vunpack.c.l.b16 %v219
        %v369 = vunpack.c.h.b16 %v219
        %v370 = vunpack.c.l.b16 %v220
        %v371 = vunpack.c.h.b16 %v220
        %v372 = vunpack.c.l.b16 %v221
        %v373 = vunpack.c.h.b16 %v221
        %v374 = vunpack.c.l.b16 %v222
        %v375 = vunpack.c.h.b16 %v222
        %v376 = vunpack.c.l.b16 %v223
        %v377 = vunpack.c.h.b16 %v223
        %v378 = vunpack.c.l.b16 %v224
        %v379 = vunpack.c.h.b16 %v224
        %v380 = vunpack.c.l.b16 %v225
        %v381 = vunpack.c.h.b16 %v225
        %v382 = vunpack.c.l.b16 %v226
        %v383 = vunpack.c.h.b16 %v226
        %v384 = vunpack.c.l.b16 %v227
        %v385 = vunpack.c.h.b16 %v227
        %v386 = vunpack.c.l.b16 %v228
        %v387 = vunpack.c.h.b16 %v228
        %v388 = vunpack.c.l.b16 %v229
        %v389 = vunpack.c.h.b16 %v229
        %v390 = vunpack.c.l.b16 %v230
        %v391 = vunpack.c.h.b16 %v230
        %v392 = vunpack.c.l.b16 %v231
        %v393 = vunpack.c.h.b16 %v231
        %v394 = vunpack.c.l.b16 %v232
        %v395 = vunpack.c.h.b16 %v232
        %v396 = vunpack.c.l.b16 %v233
        %v397 = vunpack.c.h.b16 %v233
        %v398 = vunpack.c.l.b16 %v234
        %v399 = vunpack.c.h.b16 %v234
        %v400 = vunpack.c.l.b16 %v235
        %v401 = vunpack.c.h.b16 %v235
        %v402 = vunpack.c.l.b16 %v236
        %v403 = vunpack.c.h.b16 %v236
        %v404 = vunpack.c.l.b16 %v237
        %v405 = vunpack.c.h.b16 %v237
        %v406 = vunpack.c.l.b16 %v238
        %v407 = vunpack.c.h.b16 %v238
        %v408 = vunpack.c.l.b16 %v239
        %v409 = vunpack.c.h.b16 %v239
        %v410 = vunpack.c.l.b16 %v240
        %v411 = vunpack.c.h.b16 %v240
        %v412 = vunpack.c.l.b16 %v241
        %v413 = vunpack.c.h.b16 %v241
        %v414 = vunpack.c.l.b16 %v242
        %v415 = vunpack.c.h.b16 %v242
        %v416 = vunpack.c.l.b16 %v243
        %v417 = vunpack.c.h.b16 %v243
        %v418 = vunpack.c.l.b16 %v244
        %v419 = vunpack.c.h.b16 %v244
        %v420 = vunpack.c.l.b16 %v245
        %v421 = vunpack.c.h.b16 %v245
        %v422 = vunpack.c.l.b16 %v246
        %v423 = vunpack.c.h.b16 %v246
        %v424 = vpack.c.b16 %v334, %v332
        %v425 = vpack.c.b16 %v335, %v333
        %v426 = vpack.c.b16 %v338, %v336
        %v427 = vpack.c.b16 %v339, %v337
        %v428 = vpack.c.b16 %v342, %v340
        %v429 = vpack.c.b16 %v343, %v341
        %v430 = vpack.c.b16 %v346, %v344
        %v431 = vpack.c.b16 %v347, %v345
        %v432 = vpack.c.b16 %v350, %v348
        %v433 = vpack.c.b16 %v351, %v349
        %v434 = vpack.c.b16 %v354, %v352
        %v435 = vpack.c.b16 %v355, %v353
        %v436 = vpack.c.b16 %v358, %v356
        %v437 = vpack.c.b16 %v359, %v357
        %v438 = vpack.c.b16 %v362, %v360
        %v439 = vpack.c.b16 %v363, %v361
        %v440 = vpack.c.b16 %v366, %v364
        %v441 = vpack.c.b16 %v367, %v365
        %v442 = vpack.c.b16 %v370, %v368
        %v443 = vpack.c.b16 %v371, %v369
        %v444 = vpack.c.b16 %v374, %v372
        %v445 = vpack.c.b16 %v375, %v373
        %v446 = vpack.c.b16 %v378, %v376
        %v447 = vpack.c.b16 %v379, %v377
        %v448 = vpack.c.b16 %v382, %v380
        %v449 = vpack.c.b16 %v383, %v381
        %v450 = vpack.c.b16 %v386, %v384
        %v451 = vpack.c.b16 %v387, %v385
        %v452 = vpack.c.b16 %v390, %v388
        %v453 = vpack.c.b16 %v391, %v389
        %v454 = vpack.c.b16 %v394, %v392
        %v455 = vpack.c.b16 %v395, %v393
        %v456 = vpack.c.b16 %v398, %v396
        %v457 = vpack.c.b16 %v399, %v397
        %v458 = vpack.c.b16 %v402, %v400
        %v459 = vpack.c.b16 %v403, %v401
        %v460 = vpack.c.b16 %v406, %v404
        %v461 = vpack.c.b16 %v407, %v405
        %v462 = vpack.c.b16 %v410, %v408
        %v463 = vpack.c.b16 %v411, %v409
        %v464 = vpack.c.b16 %v414, %v412
        %v465 = vpack.c.b16 %v415, %v413
        %v466 = vpack.c.b16 %v418, %v416
        %v467 = vpack.c.b16 %v419, %v417
        %v468 = vpack.c.b16 %v422, %v420
        %v469 = vpack.c.b16 %v423, %v421
        %v548 = vunpack.c.l.b16 %v247
        %v549 = vunpack.c.l.b16 %v248
        %v550 = vunpack.c.l.b16 %v249
        %v551 = vunpack.c.l.b16 %v250
        %v552 = vunpack.c.l.b16 %v251
        %v553 = vunpack.c.l.b16 %v252
        %v554 = vunpack.c.l.b16 %v253
        %v555 = vunpack.c.l.b16 %v254
        %v556 = vunpack.c.l.b16 %v255
        %v557 = vunpack.c.l.b16 %v256
        %v558 = vunpack.c.l.b16 %v257
        %v559 = vunpack.c.l.b16 %v258
        %v560 = vunpack.c.l.b16 %v259
        %v561 = vunpack.c.l.b16 %v260
        %v562 = vunpack.c.l.b16 %v261
        %v563 = vunpack.c.l.b16 %v262
        %v564 = vunpack.c.l.b16 %v263
        %v565 = vunpack.c.l.b16 %v264
        %v566 = vunpack.c.l.b16 %v265
        %v567 = vunpack.c.l.b16 %v266
        %v568 = vunpack.c.l.b16 %v267
        %v569 = vunpack.c.l.b16 %v268
        %v570 = vunpack.c.l.b16 %v269
        %v571 = vunpack.c.l.b16 %v270
        %v572 = vunpack.c.l.b16 %v271
        %v573 = vunpack.c.l.b16 %v272
        %v574 = vunpack.c.l.b16 %v273
        %v575 = vunpack.c.l.b16 %v274
        %v576 = vunpack.c.l.b16 %v275
        %v577 = vunpack.c.l.b16 %v276
        %v578 = vunpack.c.l.b16 %v277
        %v579 = vunpack.c.l.b16 %v278
        %v580 = vpack.c.b16 %v549, %v548
        %v581 = vpack.c.b16 %v551, %v550
        %v582 = vpack.c.b16 %v553, %v552
        %v583 = vpack.c.b16 %v555, %v554
        %v584 = vpack.c.b16 %v557, %v556
        %v585 = vpack.c.b16 %v559, %v558
        %v586 = vpack.c.b16 %v561, %v560
        %v587 = vpack.c.b16 %v563, %v562
        %v588 = vpack.c.b16 %v565, %v564
        %v589 = vpack.c.b16 %v567, %v566
        %v590 = vpack.c.b16 %v569, %v568
        %v591 = vpack.c.b16 %v571, %v570
        %v592 = vpack.c.b16 %v573, %v572
        %v593 = vpack.c.b16 %v575, %v574
        %v594 = vpack.c.b16 %v577, %v576
        %v595 = vpack.c.b16 %v579, %v578
        %612 = vmatprep.subr.bf16.mxu0 0
        %613 = vmatpush1.bf16.msra.mxu0 %v587
        %614 = vmatprep.subr.bf16.mxu0 0
        %615 = vmatpush1.bf16.msra.mxu0 %v586
        %616 = vmatprep.subr.bf16.mxu0 0
        %617 = vmatpush1.bf16.msra.mxu0 %v585
        %618 = vmatprep.subr.bf16.mxu0 0
        %619 = vmatpush1.bf16.msra.mxu0 %v584
        %620 = vmatprep.subr.bf16.mxu0 0
        %621 = vmatpush1.bf16.msra.mxu0 %v583
        %622 = vmatprep.subr.bf16.mxu0 0
        %623 = vmatpush1.bf16.msra.mxu0 %v582
        %624 = vmatprep.subr.bf16.mxu0 0
        %625 = vmatpush1.bf16.msra.mxu0 %v581
        %626 = vmatprep.subr.bf16.mxu0 0
        %627 = vmatpush1.bf16.msra.mxu0 %v580
        %628 = vmatprep.subr.bf16.mxu0 0
        %629 = vmatpush2.bf16.msra.mxu0 %v595
        %630 = vmatprep.subr.bf16.mxu0 0
        %631 = vmatpush2.bf16.msra.mxu0 %v594
        %632 = vmatprep.subr.bf16.mxu0 0
        %633 = vmatpush2.bf16.msra.mxu0 %v593
        %634 = vmatprep.subr.bf16.mxu0 0
        %635 = vmatpush2.bf16.msra.mxu0 %v592
        %636 = vmatprep.subr.bf16.mxu0 0
        %637 = vmatpush2.bf16.msra.mxu0 %v591
        %638 = vmatprep.subr.bf16.mxu0 0
        %639 = vmatpush2.bf16.msra.mxu0 %v590
        %640 = vmatprep.subr.bf16.mxu0 0
        %641 = vmatpush2.bf16.msra.mxu0 %v589
        %642 = vmatprep.subr.bf16.mxu0 0
        %643 = vmatpush2.bf16.msra.mxu0 %v588
        %644 = vmatprep.mubr.bf16.mxu0 %v425
        %645 = vmatmul.mubr.bf16.gmra.mxu0 %v424
        %v646 = vpop.f32.mrf.mxu0
        %v647 = vadd.f32 %v284, %v646
        %v648 = vpop.f32.mrf.mxu0
        %v649 = vpop.f32.mrf.mxu0
        %v650 = vadd.f32 %v284, %v649
        %v651 = vpop.f32.mrf.mxu0
        %652 = vmatprep.mubr.bf16.mxu0 %v427
        %653 = vmatmul.mubr.bf16.gmra.mxu0 %v426
        %v654 = vpop.f32.mrf.mxu0
        %v655 = vadd.f32 %v284, %v654
        %v656 = vpop.f32.mrf.mxu0
        %v657 = vpop.f32.mrf.mxu0
        %v658 = vadd.f32 %v284, %v657
        %v659 = vpop.f32.mrf.mxu0
        %660 = vmatprep.mubr.bf16.mxu0 %v429
        %661 = vmatmul.mubr.bf16.gmra.mxu0 %v428
        %v662 = vpop.f32.mrf.mxu0
        %v663 = vadd.f32 %v284, %v662
        %v664 = vpop.f32.mrf.mxu0
        %v665 = vpop.f32.mrf.mxu0
        %v666 = vadd.f32 %v284, %v665
        %v667 = vpop.f32.mrf.mxu0
        %668 = vmatprep.mubr.bf16.mxu0 %v431
        %669 = vmatmul.mubr.bf16.gmra.mxu0 %v430
        %v670 = vpop.f32.mrf.mxu0
        %v671 = vadd.f32 %v284, %v670
        %v672 = vpop.f32.mrf.mxu0
        %v673 = vpop.f32.mrf.mxu0
        %v674 = vadd.f32 %v284, %v673
        %v675 = vpop.f32.mrf.mxu0
        %676 = vmatprep.mubr.bf16.mxu0 %v433
        %677 = vmatmul.mubr.bf16.gmra.mxu0 %v432
        %v678 = vpop.f32.mrf.mxu0
        %v679 = vadd.f32 %v284, %v678
        %v680 = vpop.f32.mrf.mxu0
        %v681 = vpop.f32.mrf.mxu0
        %v682 = vadd.f32 %v284, %v681
        %v683 = vpop.f32.mrf.mxu0
        %684 = vmatprep.mubr.bf16.mxu0 %v435
        %685 = vmatmul.mubr.bf16.gmra.mxu0 %v434
        %v686 = vpop.f32.mrf.mxu0
        %v687 = vadd.f32 %v284, %v686
        %v688 = vpop.f32.mrf.mxu0
        %v689 = vpop.f32.mrf.mxu0
        %v690 = vadd.f32 %v284, %v689
        %v691 = vpop.f32.mrf.mxu0
        %692 = vmatprep.mubr.bf16.mxu0 %v437
        %693 = vmatmul.mubr.bf16.gmra.mxu0 %v436
        %v694 = vpop.f32.mrf.mxu0
        %v695 = vadd.f32 %v284, %v694
        %v696 = vpop.f32.mrf.mxu0
        %v697 = vpop.f32.mrf.mxu0
        %v698 = vadd.f32 %v284, %v697
        %v699 = vpop.f32.mrf.mxu0
        %700 = vmatprep.mubr.bf16.mxu0 %v439
        %701 = vmatmul.mubr.bf16.gmra.mxu0 %v438
        %v702 = vpop.f32.mrf.mxu0
        %v703 = vadd.f32 %v284, %v702
        %v704 = vpop.f32.mrf.mxu0
        %v705 = vpop.f32.mrf.mxu0
        %v706 = vadd.f32 %v284, %v705
        %v707 = vpop.f32.mrf.mxu0
        %708 = vmatprep.mubr.bf16.mxu0 %v441
        %709 = vmatmul.mubr.bf16.gmra.mxu0 %v440
        %v710 = vpop.f32.mrf.mxu0
        %v711 = vadd.f32 %v284, %v710
        %v712 = vpop.f32.mrf.mxu0
        %v713 = vpop.f32.mrf.mxu0
        %v714 = vadd.f32 %v284, %v713
        %v715 = vpop.f32.mrf.mxu0
        %716 = vmatprep.mubr.bf16.mxu0 %v443
        %717 = vmatmul.mubr.bf16.gmra.mxu0 %v442
        %v718 = vpop.f32.mrf.mxu0
        %v719 = vadd.f32 %v284, %v718
        %v720 = vpop.f32.mrf.mxu0
        %v721 = vpop.f32.mrf.mxu0
        %v722 = vadd.f32 %v284, %v721
        %v723 = vpop.f32.mrf.mxu0
        %724 = vmatprep.mubr.bf16.mxu0 %v445
        %725 = vmatmul.mubr.bf16.gmra.mxu0 %v444
        %v726 = vpop.f32.mrf.mxu0
        %v727 = vadd.f32 %v284, %v726
        %v728 = vpop.f32.mrf.mxu0
        %v729 = vpop.f32.mrf.mxu0
        %v730 = vadd.f32 %v284, %v729
        %v731 = vpop.f32.mrf.mxu0
        %732 = vmatprep.mubr.bf16.mxu0 %v447
        %733 = vmatmul.mubr.bf16.gmra.mxu0 %v446
        %v734 = vpop.f32.mrf.mxu0
        %v735 = vadd.f32 %v284, %v734
        %v736 = vpop.f32.mrf.mxu0
        %v737 = vpop.f32.mrf.mxu0
        %v738 = vadd.f32 %v284, %v737
        %v739 = vpop.f32.mrf.mxu0
        %740 = vmatprep.mubr.bf16.mxu0 %v449
        %741 = vmatmul.mubr.bf16.gmra.mxu0 %v448
        %v742 = vpop.f32.mrf.mxu0
        %v743 = vadd.f32 %v284, %v742
        %v744 = vpop.f32.mrf.mxu0
        %v745 = vpop.f32.mrf.mxu0
        %v746 = vadd.f32 %v284, %v745
        %v747 = vpop.f32.mrf.mxu0
        %748 = vmatprep.mubr.bf16.mxu0 %v451
        %749 = vmatmul.mubr.bf16.gmra.mxu0 %v450
        %v750 = vpop.f32.mrf.mxu0
        %v751 = vadd.f32 %v284, %v750
        %v752 = vpop.f32.mrf.mxu0
        %v753 = vpop.f32.mrf.mxu0
        %v754 = vadd.f32 %v284, %v753
        %v755 = vpop.f32.mrf.mxu0
        %756 = vmatprep.mubr.bf16.mxu0 %v453
        %757 = vmatmul.mubr.bf16.gmra.mxu0 %v452
        %v758 = vpop.f32.mrf.mxu0
        %v759 = vadd.f32 %v284, %v758
        %v760 = vpop.f32.mrf.mxu0
        %v761 = vpop.f32.mrf.mxu0
        %v762 = vadd.f32 %v284, %v761
        %v763 = vpop.f32.mrf.mxu0
        %764 = vmatprep.mubr.bf16.mxu0 %v455
        %765 = vmatmul.mubr.bf16.gmra.mxu0 %v454
        %v766 = vpop.f32.mrf.mxu0
        %v767 = vadd.f32 %v284, %v766
        %v768 = vpop.f32.mrf.mxu0
        %v769 = vpop.f32.mrf.mxu0
        %v770 = vadd.f32 %v284, %v769
        %v771 = vpop.f32.mrf.mxu0
        %772 = vmatprep.mubr.bf16.mxu0 %v457
        %773 = vmatmul.mubr.bf16.gmra.mxu0 %v456
        %v774 = vpop.f32.mrf.mxu0
        %v775 = vadd.f32 %v284, %v774
        %v776 = vpop.f32.mrf.mxu0
        %v777 = vpop.f32.mrf.mxu0
        %v778 = vadd.f32 %v284, %v777
        %v779 = vpop.f32.mrf.mxu0
        %780 = vmatprep.mubr.bf16.mxu0 %v459
        %781 = vmatmul.mubr.bf16.gmra.mxu0 %v458
        %v782 = vpop.f32.mrf.mxu0
        %v783 = vadd.f32 %v284, %v782
        %v784 = vpop.f32.mrf.mxu0
        %v785 = vpop.f32.mrf.mxu0
        %v786 = vadd.f32 %v284, %v785
        %v787 = vpop.f32.mrf.mxu0
        %788 = vmatprep.mubr.bf16.mxu0 %v461
        %789 = vmatmul.mubr.bf16.gmra.mxu0 %v460
        %v790 = vpop.f32.mrf.mxu0
        %v791 = vadd.f32 %v284, %v790
        %v792 = vpop.f32.mrf.mxu0
        %v793 = vpop.f32.mrf.mxu0
        %v794 = vadd.f32 %v284, %v793
        %v795 = vpop.f32.mrf.mxu0
        %796 = vmatprep.mubr.bf16.mxu0 %v463
        %797 = vmatmul.mubr.bf16.gmra.mxu0 %v462
        %v798 = vpop.f32.mrf.mxu0
        %v799 = vadd.f32 %v284, %v798
        %v800 = vpop.f32.mrf.mxu0
        %v801 = vpop.f32.mrf.mxu0
        %v802 = vadd.f32 %v284, %v801
        %v803 = vpop.f32.mrf.mxu0
        %804 = vmatprep.mubr.bf16.mxu0 %v465
        %805 = vmatmul.mubr.bf16.gmra.mxu0 %v464
        %v806 = vpop.f32.mrf.mxu0
        %v807 = vadd.f32 %v284, %v806
        %v808 = vpop.f32.mrf.mxu0
        %v809 = vpop.f32.mrf.mxu0
        %v810 = vadd.f32 %v284, %v809
        %v811 = vpop.f32.mrf.mxu0
        %812 = vmatprep.mubr.bf16.mxu0 %v467
        %813 = vmatmul.mubr.bf16.gmra.mxu0 %v466
        %v814 = vpop.f32.mrf.mxu0
        %v815 = vadd.f32 %v284, %v814
        %v816 = vpop.f32.mrf.mxu0
        %v817 = vpop.f32.mrf.mxu0
        %v818 = vadd.f32 %v284, %v817
        %v819 = vpop.f32.mrf.mxu0
        %820 = vmatprep.mubr.bf16.mxu0 %v469
        %821 = vmatmul.mubr.bf16.gmra.mxu0 %v468
        %v822 = vpop.f32.mrf.mxu0
        %v823 = vadd.f32 %v284, %v822
        %v824 = vpop.f32.mrf.mxu0
        %v825 = vpop.f32.mrf.mxu0
        %v826 = vadd.f32 %v284, %v825
        %v827 = vpop.f32.mrf.mxu0
        %828 = vdwg.mxu0
        %v829 = vmax.f32 %v647, 0.0
        %v830 = vmax.f32 %v650, 0.0
        %v831 = vmax.f32 %v655, 0.0
        %v832 = vmax.f32 %v658, 0.0
        %v833 = vmax.f32 %v663, 0.0
        %v834 = vmax.f32 %v666, 0.0
        %v835 = vmax.f32 %v671, 0.0
        %v836 = vmax.f32 %v674, 0.0
        %v837 = vmax.f32 %v679, 0.0
        %v838 = vmax.f32 %v682, 0.0
        %v839 = vmax.f32 %v687, 0.0
        %v840 = vmax.f32 %v690, 0.0
        %v841 = vmax.f32 %v695, 0.0
        %v842 = vmax.f32 %v698, 0.0
        %v843 = vmax.f32 %v703, 0.0
        %v844 = vmax.f32 %v706, 0.0
        %v845 = vmax.f32 %v711, 0.0
        %v846 = vmax.f32 %v714, 0.0
        %v847 = vmax.f32 %v719, 0.0
        %v848 = vmax.f32 %v722, 0.0
        %v849 = vmax.f32 %v727, 0.0
        %v850 = vmax.f32 %v730, 0.0
        %v851 = vmax.f32 %v735, 0.0
        %v852 = vmax.f32 %v738, 0.0
        %v853 = vmax.f32 %v743, 0.0
        %v854 = vmax.f32 %v746, 0.0
        %v855 = vmax.f32 %v751, 0.0
        %v856 = vmax.f32 %v754, 0.0
        %v857 = vmax.f32 %v759, 0.0
        %v858 = vmax.f32 %v762, 0.0
        %v859 = vmax.f32 %v767, 0.0
        %v860 = vmax.f32 %v770, 0.0
        %v861 = vmax.f32 %v775, 0.0
        %v862 = vmax.f32 %v778, 0.0
        %v863 = vmax.f32 %v783, 0.0
        %v864 = vmax.f32 %v786, 0.0
        %v865 = vmax.f32 %v791, 0.0
        %v866 = vmax.f32 %v794, 0.0
        %v867 = vmax.f32 %v799, 0.0
        %v868 = vmax.f32 %v802, 0.0
        %v869 = vmax.f32 %v807, 0.0
        %v870 = vmax.f32 %v810, 0.0
        %v871 = vmax.f32 %v815, 0.0
        %v872 = vmax.f32 %v818, 0.0
        %v873 = vmax.f32 %v823, 0.0
        %v874 = vmax.f32 %v826, 0.0
        %v875 = vpack.c.bf16 %v830, %v829
        %v876 = vpack.c.bf16 %v832, %v831
        %v877 = vpack.c.bf16 %v834, %v833
        %v878 = vpack.c.bf16 %v836, %v835
        %v879 = vpack.c.bf16 %v838, %v837
        %v880 = vpack.c.bf16 %v840, %v839
        %v881 = vpack.c.bf16 %v842, %v841
        %v882 = vpack.c.bf16 %v844, %v843
        %v883 = vpack.c.bf16 %v846, %v845
        %v884 = vpack.c.bf16 %v848, %v847
        %v885 = vpack.c.bf16 %v850, %v849
        %v886 = vpack.c.bf16 %v852, %v851
        %v887 = vpack.c.bf16 %v854, %v853
        %v888 = vpack.c.bf16 %v856, %v855
        %v889 = vpack.c.bf16 %v858, %v857
        %v890 = vpack.c.bf16 %v860, %v859
        %v891 = vpack.c.bf16 %v862, %v861
        %v892 = vpack.c.bf16 %v864, %v863
        %v893 = vpack.c.bf16 %v866, %v865
        %v894 = vpack.c.bf16 %v868, %v867
        %v895 = vpack.c.bf16 %v870, %v869
        %v896 = vpack.c.bf16 %v872, %v871
        %v897 = vpack.c.bf16 %v874, %v873
        %v921 = vunpack.c.l.b16 %v875
        %v922 = vunpack.c.h.b16 %v875
        %v923 = vunpack.c.l.b16 %v876
        %v924 = vunpack.c.h.b16 %v876
        %v925 = vunpack.c.l.b16 %v877
        %v926 = vunpack.c.h.b16 %v877
        %v927 = vunpack.c.l.b16 %v878
        %v928 = vunpack.c.h.b16 %v878
        %v929 = vunpack.c.l.b16 %v879
        %v930 = vunpack.c.h.b16 %v879
        %v931 = vunpack.c.l.b16 %v880
        %v932 = vunpack.c.h.b16 %v880
        %v933 = vunpack.c.l.b16 %v881
        %v934 = vunpack.c.h.b16 %v881
        %v935 = vunpack.c.l.b16 %v882
        %v936 = vunpack.c.h.b16 %v882
        %v937 = vunpack.c.l.b16 %v883
        %v938 = vunpack.c.h.b16 %v883
        %v939 = vunpack.c.l.b16 %v884
        %v940 = vunpack.c.h.b16 %v884
        %v941 = vunpack.c.l.b16 %v885
        %v942 = vunpack.c.h.b16 %v885
        %v943 = vunpack.c.l.b16 %v886
        %v944 = vunpack.c.h.b16 %v886
        %v945 = vunpack.c.l.b16 %v887
        %v946 = vunpack.c.h.b16 %v887
        %v947 = vunpack.c.l.b16 %v888
        %v948 = vunpack.c.h.b16 %v888
        %v949 = vunpack.c.l.b16 %v889
        %v950 = vunpack.c.h.b16 %v889
        %v951 = vunpack.c.l.b16 %v890
        %v952 = vunpack.c.h.b16 %v890
        %v953 = vunpack.c.l.b16 %v891
        %v954 = vunpack.c.h.b16 %v891
        %v955 = vunpack.c.l.b16 %v892
        %v956 = vunpack.c.h.b16 %v892
        %v957 = vunpack.c.l.b16 %v893
        %v958 = vunpack.c.h.b16 %v893
        %v959 = vunpack.c.l.b16 %v894
        %v960 = vunpack.c.h.b16 %v894
        %v961 = vunpack.c.l.b16 %v895
        %v962 = vunpack.c.h.b16 %v895
        %v963 = vunpack.c.l.b16 %v896
        %v964 = vunpack.c.h.b16 %v896
        %v965 = vunpack.c.l.b16 %v897
        %v966 = vunpack.c.h.b16 %v897
        %v967 = vpack.c.b16 %v921, %v921
        %v968 = vpack.c.b16 %v922, %v922
        %v969 = vpack.c.b16 %v923, %v923
        %v970 = vpack.c.b16 %v924, %v924
        %v971 = vpack.c.b16 %v925, %v925
        %v972 = vpack.c.b16 %v926, %v926
        %v973 = vpack.c.b16 %v927, %v927
        %v974 = vpack.c.b16 %v928, %v928
        %v975 = vpack.c.b16 %v929, %v929
        %v976 = vpack.c.b16 %v930, %v930
        %v977 = vpack.c.b16 %v931, %v931
        %v978 = vpack.c.b16 %v932, %v932
        %v979 = vpack.c.b16 %v933, %v933
        %v980 = vpack.c.b16 %v934, %v934
        %v981 = vpack.c.b16 %v935, %v935
        %v982 = vpack.c.b16 %v936, %v936
        %v983 = vpack.c.b16 %v937, %v937
        %v984 = vpack.c.b16 %v938, %v938
        %v985 = vpack.c.b16 %v939, %v939
        %v986 = vpack.c.b16 %v940, %v940
        %v987 = vpack.c.b16 %v941, %v941
        %v988 = vpack.c.b16 %v942, %v942
        %v989 = vpack.c.b16 %v943, %v943
        %v990 = vpack.c.b16 %v944, %v944
        %v991 = vpack.c.b16 %v945, %v945
        %v992 = vpack.c.b16 %v946, %v946
        %v993 = vpack.c.b16 %v947, %v947
        %v994 = vpack.c.b16 %v948, %v948
        %v995 = vpack.c.b16 %v949, %v949
        %v996 = vpack.c.b16 %v950, %v950
        %v997 = vpack.c.b16 %v951, %v951
        %v998 = vpack.c.b16 %v952, %v952
        %v999 = vpack.c.b16 %v953, %v953
        %v1000 = vpack.c.b16 %v954, %v954
        %v1001 = vpack.c.b16 %v955, %v955
        %v1002 = vpack.c.b16 %v956, %v956
        %v1003 = vpack.c.b16 %v957, %v957
        %v1004 = vpack.c.b16 %v958, %v958
        %v1005 = vpack.c.b16 %v959, %v959
        %v1006 = vpack.c.b16 %v960, %v960
        %v1007 = vpack.c.b16 %v961, %v961
        %v1008 = vpack.c.b16 %v962, %v962
        %v1009 = vpack.c.b16 %v963, %v963
        %v1010 = vpack.c.b16 %v964, %v964
        %v1011 = vpack.c.b16 %v965, %v965
        %v1012 = vpack.c.b16 %v966, %v966
        %vm1059 = vcmask 125952
        %1060 = vst.msk [vmem:[%s177] sm:$0xf] %vm1059, %v967
        %1061 = vst.msk [vmem:[%s177 + $0x4] sm:$0xf] %vm1059, %v968
        %1062 = vst.msk [vmem:[%s177 + $0x8] sm:$0xf] %vm1059, %v969
        %1063 = vst.msk [vmem:[%s177 + $0xc] sm:$0xf] %vm1059, %v970
        %1064 = vst.msk [vmem:[%s177 + $0x10] sm:$0xf] %vm1059, %v971
        %1065 = vst.msk [vmem:[%s177 + $0x14] sm:$0xf] %vm1059, %v972
        %1066 = vst.msk [vmem:[%s177 + $0x18] sm:$0xf] %vm1059, %v973
        %1067 = vst.msk [vmem:[%s177 + $0x1c] sm:$0xf] %vm1059, %v974
        %1068 = vst.msk [vmem:[%s177 + $0x20] sm:$0xf] %vm1059, %v975
        %1069 = vst.msk [vmem:[%s177 + $0x24] sm:$0xf] %vm1059, %v976
        %1070 = vst.msk [vmem:[%s177 + $0x28] sm:$0xf] %vm1059, %v977
        %1071 = vst.msk [vmem:[%s177 + $0x2c] sm:$0xf] %vm1059, %v978
        %1072 = vst.msk [vmem:[%s177 + $0x30] sm:$0xf] %vm1059, %v979
        %1073 = vst.msk [vmem:[%s177 + $0x34] sm:$0xf] %vm1059, %v980
        %1074 = vst.msk [vmem:[%s177 + $0x38] sm:$0xf] %vm1059, %v981
        %1075 = vst.msk [vmem:[%s177 + $0x3c] sm:$0xf] %vm1059, %v982
        %1076 = vst.msk [vmem:[%s177 + $0x40] sm:$0xf] %vm1059, %v983
        %1077 = vst.msk [vmem:[%s177 + $0x44] sm:$0xf] %vm1059, %v984
        %1078 = vst.msk [vmem:[%s177 + $0x48] sm:$0xf] %vm1059, %v985
        %1079 = vst.msk [vmem:[%s177 + $0x4c] sm:$0xf] %vm1059, %v986
        %1080 = vst.msk [vmem:[%s177 + $0x50] sm:$0xf] %vm1059, %v987
        %1081 = vst.msk [vmem:[%s177 + $0x54] sm:$0xf] %vm1059, %v988
        %1082 = vst.msk [vmem:[%s177 + $0x58] sm:$0xf] %vm1059, %v989
        %1083 = vst.msk [vmem:[%s177 + $0x5c] sm:$0xf] %vm1059, %v990
        %1084 = vst.msk [vmem:[%s177 + $0x60] sm:$0xf] %vm1059, %v991
        %1085 = vst.msk [vmem:[%s177 + $0x64] sm:$0xf] %vm1059, %v992
        %1086 = vst.msk [vmem:[%s177 + $0x68] sm:$0xf] %vm1059, %v993
        %1087 = vst.msk [vmem:[%s177 + $0x6c] sm:$0xf] %vm1059, %v994
        %1088 = vst.msk [vmem:[%s177 + $0x70] sm:$0xf] %vm1059, %v995
        %1089 = vst.msk [vmem:[%s177 + $0x74] sm:$0xf] %vm1059, %v996
        %1090 = vst.msk [vmem:[%s177 + $0x78] sm:$0xf] %vm1059, %v997
        %1091 = vst.msk [vmem:[%s177 + $0x7c] sm:$0xf] %vm1059, %v998
        %1092 = vst.msk [vmem:[%s177 + $0x80] sm:$0xf] %vm1059, %v999
        %1093 = vst.msk [vmem:[%s177 + $0x84] sm:$0xf] %vm1059, %v1000
        %1094 = vst.msk [vmem:[%s177 + $0x88] sm:$0xf] %vm1059, %v1001
        %1095 = vst.msk [vmem:[%s177 + $0x8c] sm:$0xf] %vm1059, %v1002
        %1096 = vst.msk [vmem:[%s177 + $0x90] sm:$0xf] %vm1059, %v1003
        %1097 = vst.msk [vmem:[%s177 + $0x94] sm:$0xf] %vm1059, %v1004
        %1098 = vst.msk [vmem:[%s177 + $0x98] sm:$0xf] %vm1059, %v1005
        %1099 = vst.msk [vmem:[%s177 + $0x9c] sm:$0xf] %vm1059, %v1006
        %1100 = vst.msk [vmem:[%s177 + $0xa0] sm:$0xf] %vm1059, %v1007
        %1101 = vst.msk [vmem:[%s177 + $0xa4] sm:$0xf] %vm1059, %v1008
        %1102 = vst.msk [vmem:[%s177 + $0xa8] sm:$0xf] %vm1059, %v1009
        %1103 = vst.msk [vmem:[%s177 + $0xac] sm:$0xf] %vm1059, %v1010
        %1104 = vst.msk [vmem:[%s177 + $0xb0] sm:$0xf] %vm1059, %v1011
        %1105 = vst.msk [vmem:[%s177 + $0xb4] sm:$0xf] %vm1059, %v1012
        %s1106 = sand.u32 %s90, 1
        %s1107 = sand.u32 %s90, 1
        %s1108 = smul.addr %s1107, 184
        %s1109 = scalar_lea.vmem [#allocation2], %s1108
        // Predicated region
        $region33: #{dqn_forward.3} parent=31 // pred_check
          %p1110 = pneg %p100
        $region34: #{dqn_forward.3} parent=31 // pred_check_branch
          %1112 = sbr.rel (%p1110) target = $region36
        $region35: #{dqn_forward.3} parent=31 // pred_region
          %s1113 = smul.u32 46, %s14
          %s1114 = ssub.s32 90, %s1113
          %p1115 = scmp.lt.s32.totalorder %s1114, 46
          %s1116 = scalar_select %p1115, %s1114, 46
          %s1117 = smul.u32 64, %s1116
          %p1118 = scmp.ne.s32.totalorder 0, %s1117
          %s1119 = smul.addr %s1113, 4
          %s1120 = scalar_lea.vmem %s3, %s1119
          // Predicated region
          $region37: #{dqn_forward.3} parent=35 // pred_check
            %p1121 = pneg %p1118
          $region38: #{dqn_forward.3} parent=35 // pred_check_branch
            %1123 = sbr.rel (%p1121) target = $region40
          $region39: #{dqn_forward.3} parent=35 // pred_region
            // Predicated region
            $region41: #{dqn_forward.3} parent=39 // pred_check
              _
            $region42: #{dqn_forward.3} parent=39 // pred_check_branch
              %1125 = sbr.rel target = $region44
            $region43: #{dqn_forward.3} parent=39 // pred_region
              // Predicated region
              $region63: #{dqn_forward.3} parent=43 // pred_check
                _
              $region64: #{dqn_forward.3} parent=43 // pred_check_branch
                %1266 = sbr.rel (0) target = $region66
              $region65: #{dqn_forward.3} parent=43 // pred_region
                %s1268 = ssub.s32 16, 1
                %s1269 = sdiv.u32.pop %s1116, 46
                %s1270 = srem.u32.pop %s1116, 46
                // While loop
                $region67: #{dqn_forward.3} parent=65 // loop_pre_header
                  _
                $region68: #{dqn_forward.3} parent=65 // loop_header
                  %s1272 = sphi 0, %s1274
                  %p1273 = scmp.ge.s32.totalorder %s1272, %s1269
                  %s1277 = sphi 0, %s1374
                  %s1278 = sphi %s1109, %s1377
                  %s1279 = sphi %s1120, %s1378
                $region69: #{dqn_forward.3} parent=65 // loop_header_branch
                  %1276 = sbr.rel (%p1273) target = $region73
                $region70: #{dqn_forward.3} parent=65 // loop_body
                  %v1280 = vld [vmem:[%s1278] sm:%s1268]
                  %1281 = vst [vmem:[%s1279] sm:%s1268] %v1280
                  %v1282 = vld [vmem:[%s1278 + $0x4] sm:%s1268]
                  %1283 = vst [vmem:[%s1279 + $0x4] sm:%s1268] %v1282
                  %v1284 = vld [vmem:[%s1278 + $0x8] sm:%s1268]
                  %1285 = vst [vmem:[%s1279 + $0x8] sm:%s1268] %v1284
                  %v1286 = vld [vmem:[%s1278 + $0xc] sm:%s1268]
                  %1287 = vst [vmem:[%s1279 + $0xc] sm:%s1268] %v1286
                  %v1288 = vld [vmem:[%s1278 + $0x10] sm:%s1268]
                  %1289 = vst [vmem:[%s1279 + $0x10] sm:%s1268] %v1288
                  %v1290 = vld [vmem:[%s1278 + $0x14] sm:%s1268]
                  %1291 = vst [vmem:[%s1279 + $0x14] sm:%s1268] %v1290
                  %v1292 = vld [vmem:[%s1278 + $0x18] sm:%s1268]
                  %1293 = vst [vmem:[%s1279 + $0x18] sm:%s1268] %v1292
                  %v1294 = vld [vmem:[%s1278 + $0x1c] sm:%s1268]
                  %1295 = vst [vmem:[%s1279 + $0x1c] sm:%s1268] %v1294
                  %v1296 = vld [vmem:[%s1278 + $0x20] sm:%s1268]
                  %1297 = vst [vmem:[%s1279 + $0x20] sm:%s1268] %v1296
                  %v1298 = vld [vmem:[%s1278 + $0x24] sm:%s1268]
                  %1299 = vst [vmem:[%s1279 + $0x24] sm:%s1268] %v1298
                  %v1300 = vld [vmem:[%s1278 + $0x28] sm:%s1268]
                  %1301 = vst [vmem:[%s1279 + $0x28] sm:%s1268] %v1300
                  %v1302 = vld [vmem:[%s1278 + $0x2c] sm:%s1268]
                  %1303 = vst [vmem:[%s1279 + $0x2c] sm:%s1268] %v1302
                  %v1304 = vld [vmem:[%s1278 + $0x30] sm:%s1268]
                  %1305 = vst [vmem:[%s1279 + $0x30] sm:%s1268] %v1304
                  %v1306 = vld [vmem:[%s1278 + $0x34] sm:%s1268]
                  %1307 = vst [vmem:[%s1279 + $0x34] sm:%s1268] %v1306
                  %v1308 = vld [vmem:[%s1278 + $0x38] sm:%s1268]
                  %1309 = vst [vmem:[%s1279 + $0x38] sm:%s1268] %v1308
                  %v1310 = vld [vmem:[%s1278 + $0x3c] sm:%s1268]
                  %1311 = vst [vmem:[%s1279 + $0x3c] sm:%s1268] %v1310
                  %v1312 = vld [vmem:[%s1278 + $0x40] sm:%s1268]
                  %1313 = vst [vmem:[%s1279 + $0x40] sm:%s1268] %v1312
                  %v1314 = vld [vmem:[%s1278 + $0x44] sm:%s1268]
                  %1315 = vst [vmem:[%s1279 + $0x44] sm:%s1268] %v1314
                  %v1316 = vld [vmem:[%s1278 + $0x48] sm:%s1268]
                  %1317 = vst [vmem:[%s1279 + $0x48] sm:%s1268] %v1316
                  %v1318 = vld [vmem:[%s1278 + $0x4c] sm:%s1268]
                  %1319 = vst [vmem:[%s1279 + $0x4c] sm:%s1268] %v1318
                  %v1320 = vld [vmem:[%s1278 + $0x50] sm:%s1268]
                  %1321 = vst [vmem:[%s1279 + $0x50] sm:%s1268] %v1320
                  %v1322 = vld [vmem:[%s1278 + $0x54] sm:%s1268]
                  %1323 = vst [vmem:[%s1279 + $0x54] sm:%s1268] %v1322
                  %v1324 = vld [vmem:[%s1278 + $0x58] sm:%s1268]
                  %1325 = vst [vmem:[%s1279 + $0x58] sm:%s1268] %v1324
                  %v1326 = vld [vmem:[%s1278 + $0x5c] sm:%s1268]
                  %1327 = vst [vmem:[%s1279 + $0x5c] sm:%s1268] %v1326
                  %v1328 = vld [vmem:[%s1278 + $0x60] sm:%s1268]
                  %1329 = vst [vmem:[%s1279 + $0x60] sm:%s1268] %v1328
                  %v1330 = vld [vmem:[%s1278 + $0x64] sm:%s1268]
                  %1331 = vst [vmem:[%s1279 + $0x64] sm:%s1268] %v1330
                  %v1332 = vld [vmem:[%s1278 + $0x68] sm:%s1268]
                  %1333 = vst [vmem:[%s1279 + $0x68] sm:%s1268] %v1332
                  %v1334 = vld [vmem:[%s1278 + $0x6c] sm:%s1268]
                  %1335 = vst [vmem:[%s1279 + $0x6c] sm:%s1268] %v1334
                  %v1336 = vld [vmem:[%s1278 + $0x70] sm:%s1268]
                  %1337 = vst [vmem:[%s1279 + $0x70] sm:%s1268] %v1336
                  %v1338 = vld [vmem:[%s1278 + $0x74] sm:%s1268]
                  %1339 = vst [vmem:[%s1279 + $0x74] sm:%s1268] %v1338
                  %v1340 = vld [vmem:[%s1278 + $0x78] sm:%s1268]
                  %1341 = vst [vmem:[%s1279 + $0x78] sm:%s1268] %v1340
                  %v1342 = vld [vmem:[%s1278 + $0x7c] sm:%s1268]
                  %1343 = vst [vmem:[%s1279 + $0x7c] sm:%s1268] %v1342
                  %v1344 = vld [vmem:[%s1278 + $0x80] sm:%s1268]
                  %1345 = vst [vmem:[%s1279 + $0x80] sm:%s1268] %v1344
                  %v1346 = vld [vmem:[%s1278 + $0x84] sm:%s1268]
                  %1347 = vst [vmem:[%s1279 + $0x84] sm:%s1268] %v1346
                  %v1348 = vld [vmem:[%s1278 + $0x88] sm:%s1268]
                  %1349 = vst [vmem:[%s1279 + $0x88] sm:%s1268] %v1348
                  %v1350 = vld [vmem:[%s1278 + $0x8c] sm:%s1268]
                  %1351 = vst [vmem:[%s1279 + $0x8c] sm:%s1268] %v1350
                  %v1352 = vld [vmem:[%s1278 + $0x90] sm:%s1268]
                  %1353 = vst [vmem:[%s1279 + $0x90] sm:%s1268] %v1352
                  %v1354 = vld [vmem:[%s1278 + $0x94] sm:%s1268]
                  %1355 = vst [vmem:[%s1279 + $0x94] sm:%s1268] %v1354
                  %v1356 = vld [vmem:[%s1278 + $0x98] sm:%s1268]
                  %1357 = vst [vmem:[%s1279 + $0x98] sm:%s1268] %v1356
                  %v1358 = vld [vmem:[%s1278 + $0x9c] sm:%s1268]
                  %1359 = vst [vmem:[%s1279 + $0x9c] sm:%s1268] %v1358
                  %v1360 = vld [vmem:[%s1278 + $0xa0] sm:%s1268]
                  %1361 = vst [vmem:[%s1279 + $0xa0] sm:%s1268] %v1360
                  %v1362 = vld [vmem:[%s1278 + $0xa4] sm:%s1268]
                  %1363 = vst [vmem:[%s1279 + $0xa4] sm:%s1268] %v1362
                  %v1364 = vld [vmem:[%s1278 + $0xa8] sm:%s1268]
                  %1365 = vst [vmem:[%s1279 + $0xa8] sm:%s1268] %v1364
                  %v1366 = vld [vmem:[%s1278 + $0xac] sm:%s1268]
                  %1367 = vst [vmem:[%s1279 + $0xac] sm:%s1268] %v1366
                  %v1368 = vld [vmem:[%s1278 + $0xb0] sm:%s1268]
                  %1369 = vst [vmem:[%s1279 + $0xb0] sm:%s1268] %v1368
                  %v1370 = vld [vmem:[%s1278 + $0xb4] sm:%s1268]
                  %1371 = vst [vmem:[%s1279 + $0xb4] sm:%s1268] %v1370
                  %s1372 = sadd.s32 1, %s1277
                  %p1373 = scmp.ge.s32.totalorder %s1372, %s1269
                  %s1374 = scalar_select %p1373, 0, %s1372
                  %s1375 = smul.u32 %s1374, 184
                  %s1376 = smul.u32 %s1374, 184
                  %s1377 = scalar_lea.vmem %s1109, %s1375 [#allocation2]
                  %s1378 = scalar_lea.vmem %s1120, %s1376
                $region71: #{dqn_forward.3} parent=65 // loop_footer
                  %s1274 = sadd.s32 %s1272, 1
                $region72: #{dqn_forward.3} parent=65 // loop_footer_branch
                  %1271 = sbr.rel target = $region68
                $region73: #{dqn_forward.3} parent=65 // loop_exit
                  _
                %s1379 = sdiv.u32.pop %s1116, 46
                %s1380 = srem.u32.pop %s1116, 46
                %s1381 = smul.u32 %s1379, 46
                %s1382 = smul.u32 4, %s1381
                %s1383 = scalar_lea.vmem %s1109, %s1382 [#allocation2]
                %s1384 = smul.u32 4, %s1381
                %s1385 = scalar_lea.vmem %s1120, %s1384
                // While loop
                $region74: #{dqn_forward.3} parent=65 // loop_pre_header
                  _
                $region75: #{dqn_forward.3} parent=65 // loop_header
                  %s1387 = sphi 0, %s1389
                  %p1388 = scmp.ge.s32.totalorder %s1387, %s1380
                  %s1392 = sphi 0, %s1399
                  %s1393 = sphi %s1383, %s1402
                  %s1394 = sphi %s1385, %s1403
                $region76: #{dqn_forward.3} parent=65 // loop_header_branch
                  %1391 = sbr.rel (%p1388) target = $region80
                $region77: #{dqn_forward.3} parent=65 // loop_body
                  %v1395 = vld [vmem:[%s1393] sm:%s1268]
                  %1396 = vst [vmem:[%s1394] sm:%s1268] %v1395
                  %s1397 = sadd.s32 1, %s1392
                  %p1398 = scmp.ge.s32.totalorder %s1397, %s1380
                  %s1399 = scalar_select %p1398, 0, %s1397
                  %s1400 = smul.u32 %s1399, 4
                  %s1401 = smul.u32 %s1399, 4
                  %s1402 = scalar_lea.vmem %s1383, %s1400 [#allocation2]
                  %s1403 = scalar_lea.vmem %s1385, %s1401
                $region78: #{dqn_forward.3} parent=65 // loop_footer
                  %s1389 = sadd.s32 %s1387, 1
                $region79: #{dqn_forward.3} parent=65 // loop_footer_branch
                  %1386 = sbr.rel target = $region75
                $region80: #{dqn_forward.3} parent=65 // loop_exit
                  _
              $region66: #{dqn_forward.3} parent=43 // pred_fallthru
                _
            $region44: #{dqn_forward.3} parent=39 // pred_fallthru
              _
            // Predicated region
            $region45: #{dqn_forward.3} parent=39 // pred_check
              _
            $region46: #{dqn_forward.3} parent=39 // pred_check_branch
              %1127 = sbr.rel (0) target = $region48
            $region47: #{dqn_forward.3} parent=39 // pred_region
              %s1129 = ssub.s32 16, 1
              %s1130 = sdiv.u32.pop %s1116, 46
              %s1131 = srem.u32.pop %s1116, 46
              // While loop
              $region49: #{dqn_forward.3} parent=47 // loop_pre_header
                _
              $region50: #{dqn_forward.3} parent=47 // loop_header
                %s1133 = sphi 0, %s1135
                %p1134 = scmp.ge.s32.totalorder %s1133, %s1130
                %s1138 = sphi 0, %s1235
                %s1139 = sphi %s1109, %s1238
                %s1140 = sphi %s1120, %s1239
              $region51: #{dqn_forward.3} parent=47 // loop_header_branch
                %1137 = sbr.rel (%p1134) target = $region55
              $region52: #{dqn_forward.3} parent=47 // loop_body
                %v1141 = vld [vmem:[%s1139] sm:%s1129]
                %1142 = vst [vmem:[%s1140] sm:%s1129] %v1141
                %v1143 = vld [vmem:[%s1139 + $0x4] sm:%s1129]
                %1144 = vst [vmem:[%s1140 + $0x4] sm:%s1129] %v1143
                %v1145 = vld [vmem:[%s1139 + $0x8] sm:%s1129]
                %1146 = vst [vmem:[%s1140 + $0x8] sm:%s1129] %v1145
                %v1147 = vld [vmem:[%s1139 + $0xc] sm:%s1129]
                %1148 = vst [vmem:[%s1140 + $0xc] sm:%s1129] %v1147
                %v1149 = vld [vmem:[%s1139 + $0x10] sm:%s1129]
                %1150 = vst [vmem:[%s1140 + $0x10] sm:%s1129] %v1149
                %v1151 = vld [vmem:[%s1139 + $0x14] sm:%s1129]
                %1152 = vst [vmem:[%s1140 + $0x14] sm:%s1129] %v1151
                %v1153 = vld [vmem:[%s1139 + $0x18] sm:%s1129]
                %1154 = vst [vmem:[%s1140 + $0x18] sm:%s1129] %v1153
                %v1155 = vld [vmem:[%s1139 + $0x1c] sm:%s1129]
                %1156 = vst [vmem:[%s1140 + $0x1c] sm:%s1129] %v1155
                %v1157 = vld [vmem:[%s1139 + $0x20] sm:%s1129]
                %1158 = vst [vmem:[%s1140 + $0x20] sm:%s1129] %v1157
                %v1159 = vld [vmem:[%s1139 + $0x24] sm:%s1129]
                %1160 = vst [vmem:[%s1140 + $0x24] sm:%s1129] %v1159
                %v1161 = vld [vmem:[%s1139 + $0x28] sm:%s1129]
                %1162 = vst [vmem:[%s1140 + $0x28] sm:%s1129] %v1161
                %v1163 = vld [vmem:[%s1139 + $0x2c] sm:%s1129]
                %1164 = vst [vmem:[%s1140 + $0x2c] sm:%s1129] %v1163
                %v1165 = vld [vmem:[%s1139 + $0x30] sm:%s1129]
                %1166 = vst [vmem:[%s1140 + $0x30] sm:%s1129] %v1165
                %v1167 = vld [vmem:[%s1139 + $0x34] sm:%s1129]
                %1168 = vst [vmem:[%s1140 + $0x34] sm:%s1129] %v1167
                %v1169 = vld [vmem:[%s1139 + $0x38] sm:%s1129]
                %1170 = vst [vmem:[%s1140 + $0x38] sm:%s1129] %v1169
                %v1171 = vld [vmem:[%s1139 + $0x3c] sm:%s1129]
                %1172 = vst [vmem:[%s1140 + $0x3c] sm:%s1129] %v1171
                %v1173 = vld [vmem:[%s1139 + $0x40] sm:%s1129]
                %1174 = vst [vmem:[%s1140 + $0x40] sm:%s1129] %v1173
                %v1175 = vld [vmem:[%s1139 + $0x44] sm:%s1129]
                %1176 = vst [vmem:[%s1140 + $0x44] sm:%s1129] %v1175
                %v1177 = vld [vmem:[%s1139 + $0x48] sm:%s1129]
                %1178 = vst [vmem:[%s1140 + $0x48] sm:%s1129] %v1177
                %v1179 = vld [vmem:[%s1139 + $0x4c] sm:%s1129]
                %1180 = vst [vmem:[%s1140 + $0x4c] sm:%s1129] %v1179
                %v1181 = vld [vmem:[%s1139 + $0x50] sm:%s1129]
                %1182 = vst [vmem:[%s1140 + $0x50] sm:%s1129] %v1181
                %v1183 = vld [vmem:[%s1139 + $0x54] sm:%s1129]
                %1184 = vst [vmem:[%s1140 + $0x54] sm:%s1129] %v1183
                %v1185 = vld [vmem:[%s1139 + $0x58] sm:%s1129]
                %1186 = vst [vmem:[%s1140 + $0x58] sm:%s1129] %v1185
                %v1187 = vld [vmem:[%s1139 + $0x5c] sm:%s1129]
                %1188 = vst [vmem:[%s1140 + $0x5c] sm:%s1129] %v1187
                %v1189 = vld [vmem:[%s1139 + $0x60] sm:%s1129]
                %1190 = vst [vmem:[%s1140 + $0x60] sm:%s1129] %v1189
                %v1191 = vld [vmem:[%s1139 + $0x64] sm:%s1129]
                %1192 = vst [vmem:[%s1140 + $0x64] sm:%s1129] %v1191
                %v1193 = vld [vmem:[%s1139 + $0x68] sm:%s1129]
                %1194 = vst [vmem:[%s1140 + $0x68] sm:%s1129] %v1193
                %v1195 = vld [vmem:[%s1139 + $0x6c] sm:%s1129]
                %1196 = vst [vmem:[%s1140 + $0x6c] sm:%s1129] %v1195
                %v1197 = vld [vmem:[%s1139 + $0x70] sm:%s1129]
                %1198 = vst [vmem:[%s1140 + $0x70] sm:%s1129] %v1197
                %v1199 = vld [vmem:[%s1139 + $0x74] sm:%s1129]
                %1200 = vst [vmem:[%s1140 + $0x74] sm:%s1129] %v1199
                %v1201 = vld [vmem:[%s1139 + $0x78] sm:%s1129]
                %1202 = vst [vmem:[%s1140 + $0x78] sm:%s1129] %v1201
                %v1203 = vld [vmem:[%s1139 + $0x7c] sm:%s1129]
                %1204 = vst [vmem:[%s1140 + $0x7c] sm:%s1129] %v1203
                %v1205 = vld [vmem:[%s1139 + $0x80] sm:%s1129]
                %1206 = vst [vmem:[%s1140 + $0x80] sm:%s1129] %v1205
                %v1207 = vld [vmem:[%s1139 + $0x84] sm:%s1129]
                %1208 = vst [vmem:[%s1140 + $0x84] sm:%s1129] %v1207
                %v1209 = vld [vmem:[%s1139 + $0x88] sm:%s1129]
                %1210 = vst [vmem:[%s1140 + $0x88] sm:%s1129] %v1209
                %v1211 = vld [vmem:[%s1139 + $0x8c] sm:%s1129]
                %1212 = vst [vmem:[%s1140 + $0x8c] sm:%s1129] %v1211
                %v1213 = vld [vmem:[%s1139 + $0x90] sm:%s1129]
                %1214 = vst [vmem:[%s1140 + $0x90] sm:%s1129] %v1213
                %v1215 = vld [vmem:[%s1139 + $0x94] sm:%s1129]
                %1216 = vst [vmem:[%s1140 + $0x94] sm:%s1129] %v1215
                %v1217 = vld [vmem:[%s1139 + $0x98] sm:%s1129]
                %1218 = vst [vmem:[%s1140 + $0x98] sm:%s1129] %v1217
                %v1219 = vld [vmem:[%s1139 + $0x9c] sm:%s1129]
                %1220 = vst [vmem:[%s1140 + $0x9c] sm:%s1129] %v1219
                %v1221 = vld [vmem:[%s1139 + $0xa0] sm:%s1129]
                %1222 = vst [vmem:[%s1140 + $0xa0] sm:%s1129] %v1221
                %v1223 = vld [vmem:[%s1139 + $0xa4] sm:%s1129]
                %1224 = vst [vmem:[%s1140 + $0xa4] sm:%s1129] %v1223
                %v1225 = vld [vmem:[%s1139 + $0xa8] sm:%s1129]
                %1226 = vst [vmem:[%s1140 + $0xa8] sm:%s1129] %v1225
                %v1227 = vld [vmem:[%s1139 + $0xac] sm:%s1129]
                %1228 = vst [vmem:[%s1140 + $0xac] sm:%s1129] %v1227
                %v1229 = vld [vmem:[%s1139 + $0xb0] sm:%s1129]
                %1230 = vst [vmem:[%s1140 + $0xb0] sm:%s1129] %v1229
                %v1231 = vld [vmem:[%s1139 + $0xb4] sm:%s1129]
                %1232 = vst [vmem:[%s1140 + $0xb4] sm:%s1129] %v1231
                %s1233 = sadd.s32 1, %s1138
                %p1234 = scmp.ge.s32.totalorder %s1233, %s1130
                %s1235 = scalar_select %p1234, 0, %s1233
                %s1236 = smul.u32 %s1235, 184
                %s1237 = smul.u32 %s1235, 184
                %s1238 = scalar_lea.vmem %s1109, %s1236 [#allocation2]
                %s1239 = scalar_lea.vmem %s1120, %s1237
              $region53: #{dqn_forward.3} parent=47 // loop_footer
                %s1135 = sadd.s32 %s1133, 1
              $region54: #{dqn_forward.3} parent=47 // loop_footer_branch
                %1132 = sbr.rel target = $region50
              $region55: #{dqn_forward.3} parent=47 // loop_exit
                _
              %s1240 = sdiv.u32.pop %s1116, 46
              %s1241 = srem.u32.pop %s1116, 46
              %s1242 = smul.u32 %s1240, 46
              %s1243 = smul.u32 4, %s1242
              %s1244 = scalar_lea.vmem %s1109, %s1243 [#allocation2]
              %s1245 = smul.u32 4, %s1242
              %s1246 = scalar_lea.vmem %s1120, %s1245
              // While loop
              $region56: #{dqn_forward.3} parent=47 // loop_pre_header
                _
              $region57: #{dqn_forward.3} parent=47 // loop_header
                %s1248 = sphi 0, %s1250
                %p1249 = scmp.ge.s32.totalorder %s1248, %s1241
                %s1253 = sphi 0, %s1260
                %s1254 = sphi %s1244, %s1263
                %s1255 = sphi %s1246, %s1264
              $region58: #{dqn_forward.3} parent=47 // loop_header_branch
                %1252 = sbr.rel (%p1249) target = $region62
              $region59: #{dqn_forward.3} parent=47 // loop_body
                %v1256 = vld [vmem:[%s1254] sm:%s1129]
                %1257 = vst [vmem:[%s1255] sm:%s1129] %v1256
                %s1258 = sadd.s32 1, %s1253
                %p1259 = scmp.ge.s32.totalorder %s1258, %s1241
                %s1260 = scalar_select %p1259, 0, %s1258
                %s1261 = smul.u32 %s1260, 4
                %s1262 = smul.u32 %s1260, 4
                %s1263 = scalar_lea.vmem %s1244, %s1261 [#allocation2]
                %s1264 = scalar_lea.vmem %s1246, %s1262
              $region60: #{dqn_forward.3} parent=47 // loop_footer
                %s1250 = sadd.s32 %s1248, 1
              $region61: #{dqn_forward.3} parent=47 // loop_footer_branch
                %1247 = sbr.rel target = $region57
              $region62: #{dqn_forward.3} parent=47 // loop_exit
                _
            $region48: #{dqn_forward.3} parent=39 // pred_fallthru
              _
          $region40: #{dqn_forward.3} parent=35 // pred_fallthru
            _
          %1404 = vnop
        $region36: #{dqn_forward.3} parent=31 // pred_fallthru
          _
      $region32: #{dqn_forward.3} parent=5 // pred_fallthru
        _
      %p1405 = scmp.le.s32.totalorder 2, %s9
      // Predicated region
      $region81: #{dqn_forward.3} parent=5 // pred_check
        %p1406 = pneg %p1405
      $region82: #{dqn_forward.3} parent=5 // pred_check_branch
        %1408 = sbr.rel (%p1406) target = $region84
      $region83: #{dqn_forward.3} parent=5 // pred_region
        %s1409 = ssub.s32 %s9, 2
        // Predicated region
        $region85: #{dqn_forward.3} parent=83 // pred_check
          %p1410 = pneg %p106
        $region86: #{dqn_forward.3} parent=83 // pred_check_branch
          %1412 = sbr.rel (%p1410) target = $region88
        $region87: #{dqn_forward.3} parent=83 // pred_region
          %s1413 = sand.u32 %s91, 1
          %s1414 = sand.u32 %s91, 1
          %s1415 = smul.addr %s1414, 184
          %s1416 = scalar_lea.vmem [#allocation2], %s1415
        $region88: #{dqn_forward.3} parent=83 // pred_fallthru
          _
      $region84: #{dqn_forward.3} parent=5 // pred_fallthru
        _
    $region6: #{dqn_forward.3} parent=1 // loop_footer
      %s13 = sadd.s32 1, %s9
    $region7: #{dqn_forward.3} parent=1 // loop_footer_branch
      %8 = sbr.rel target = $region3
    $region8: #{dqn_forward.3} parent=1 // loop_exit
      _

// kernel: dqn_forward.4
$region0: #{dqn_forward.4}
  #allocation0 [shape = 'u32[]', space=smem, size = 0x4, offset = 0x4, fixed_abs, tag = 'smem constant byte address 0x4 - core index']
  #allocation1 [shape = 'u32[144,128]{1,0:T(1,128)}', space=vmem, size = 0x12000, scoped, tag = 'internal scratch']
  %s0 = inlined_call_operand.vmem [shape: bf16[144,256], index: 0, kind: input, shape index: {}]
  %s1 = inlined_call_operand.vmem [shape: bf16[256,32], index: 1, kind: input, shape index: {}]
  %s2 = inlined_call_operand.vmem [shape: f32[1,32], index: 2, kind: input, shape index: {}]
  %s3 = inlined_call_operand.vmem [shape: bf16[144,32], index: 3, kind: output, shape index: {}]
  %s4 = sld [smem:[#allocation0]]
  $region89: #{dqn_forward.4} parent=0
    _
  %s6 = ssub.s32 1, %s4
  %s7 = scalar_select 0, %s6, %s4
  $region1: #{dqn_forward.4} parent=0
    #allocation2 [shape = 'u8[40960]{0}', space=vmem, size = 0xa000, scoped, tag = 'output window, operand 0']
    loop: start=0, step=1, limit=4
    $region2: #{dqn_forward.4} parent=1 // loop_pre_header
      _
    $region3: #{dqn_forward.4} parent=1 // loop_header
      %s9 = sphi 0, %s13
      %p10 = scmp.ge.s32.totalorder %s9, 4
      %s19 = sphi 0, %s21
      %s22 = sphi 0, %s19
      %s23 = sphi 0, %s22
      %s39 = sphi 0, %s23
      %s43 = sphi 0, %s43
      %s45 = sphi 0, %s43
      %s46 = sphi 0, %s45
      %s60 = sphi 0, %s46
      %s64 = sphi 0, %s64
      %s66 = sphi 0, %s64
      %s67 = sphi 0, %s66
      %s81 = sphi 0, %s67
      %s87 = sphi 0, %s89
      %s90 = sphi 0, %s87
      %s91 = sphi 0, %s90
      %s107 = sphi 0, %s91
    $region4: #{dqn_forward.4} parent=1 // loop_header_branch
      %12 = sbr.rel (%p10) target = $region8
    $region5: #{dqn_forward.4} parent=1 // loop_body
      %s14 = ssub.s32 %s9, 1
      %s15 = ssub.s32 %s9, 2
      %s16 = sadd.s32 %s9, 1
      %s17 = ssub.s32 %s9, %s16
      %p18 = scmp.eq.s32.totalorder %s17, 0
      %s20 = sadd.s32 %s19, 1
      %s21 = scalar_select %p18, %s19, %s20
      %p24 = pneg %p18
      %p25 = scmp.eq.s32.totalorder %s9, 1
      %p26 = por %p24, %p25
      %p27 = scmp.ne.s32.totalorder %s19, %s22
      %p28 = scmp.eq.s32.totalorder %s9, 0
      %p29 = por %p27, %p28
      %p30 = scmp.ne.s32.totalorder %s19, %s22
      %p31 = scmp.eq.s32.totalorder %s14, 1
      %p32 = por %p30, %p31
      %p33 = scmp.ne.s32.totalorder %s22, %s23
      %p34 = scmp.eq.s32.totalorder %s14, 0
      %p35 = por %p33, %p34
      %p36 = scmp.ne.s32.totalorder %s22, %s23
      %p37 = scmp.eq.s32.totalorder %s15, 1
      %p38 = por %p36, %p37
      %p40 = scmp.ne.s32.totalorder %s23, %s39
      %p41 = scmp.eq.s32.totalorder %s15, 0
      %p42 = por %p40, %p41
      %s44 = sadd.s32 %s43, 1
      %p47 = scmp.eq.s32.totalorder %s9, 1
      %p48 = scmp.ne.s32.totalorder %s43, %s45
      %p49 = scmp.eq.s32.totalorder %s9, 0
      %p50 = por %p48, %p49
      %p51 = scmp.ne.s32.totalorder %s43, %s45
      %p52 = scmp.eq.s32.totalorder %s14, 1
      %p53 = por %p51, %p52
      %p54 = scmp.ne.s32.totalorder %s45, %s46
      %p55 = scmp.eq.s32.totalorder %s14, 0
      %p56 = por %p54, %p55
      %p57 = scmp.ne.s32.totalorder %s45, %s46
      %p58 = scmp.eq.s32.totalorder %s15, 1
      %p59 = por %p57, %p58
      %p61 = scmp.ne.s32.totalorder %s46, %s60
      %p62 = scmp.eq.s32.totalorder %s15, 0
      %p63 = por %p61, %p62
      %s65 = sadd.s32 %s64, 1
      %p68 = scmp.eq.s32.totalorder %s9, 1
      %p69 = scmp.ne.s32.totalorder %s64, %s66
      %p70 = scmp.eq.s32.totalorder %s9, 0
      %p71 = por %p69, %p70
      %p72 = scmp.ne.s32.totalorder %s64, %s66
      %p73 = scmp.eq.s32.totalorder %s14, 1
      %p74 = por %p72, %p73
      %p75 = scmp.ne.s32.totalorder %s66, %s67
      %p76 = scmp.eq.s32.totalorder %s14, 0
      %p77 = por %p75, %p76
      %p78 = scmp.ne.s32.totalorder %s66, %s67
      %p79 = scmp.eq.s32.totalorder %s15, 1
      %p80 = por %p78, %p79
      %p82 = scmp.ne.s32.totalorder %s67, %s81
      %p83 = scmp.eq.s32.totalorder %s15, 0
      %p84 = por %p82, %p83
      %s85 = ssub.s32 %s9, %s16
      %p86 = scmp.eq.s32.totalorder %s85, 0
      %s88 = sadd.s32 %s87, 1
      %s89 = scalar_select %p86, %s87, %s88
      %p92 = pneg %p86
      %p93 = scmp.eq.s32.totalorder %s9, 1
      %p94 = por %p92, %p93
      %p95 = scmp.ne.s32.totalorder %s87, %s90
      %p96 = scmp.eq.s32.totalorder %s9, 0
      %p97 = por %p95, %p96
      %p98 = scmp.ne.s32.totalorder %s87, %s90
      %p99 = scmp.eq.s32.totalorder %s14, 1
      %p100 = por %p98, %p99
      %p101 = scmp.ne.s32.totalorder %s90, %s91
      %p102 = scmp.eq.s32.totalorder %s14, 0
      %p103 = por %p101, %p102
      %p104 = scmp.ne.s32.totalorder %s90, %s91
      %p105 = scmp.eq.s32.totalorder %s15, 1
      %p106 = por %p104, %p105
      %p108 = scmp.ne.s32.totalorder %s91, %s107
      %p109 = scmp.eq.s32.totalorder %s15, 0
      %p110 = por %p108, %p109
      %p111 = scmp.le.s32.totalorder 1, %s9
      %p112 = scmp.lt.s32.totalorder %s9, 3
      %p113 = pnand %p111, %p112
      %p114 = pneg %p113
      // Predicated region
      $region9: #{dqn_forward.4} parent=5 // pred_check
        _
      $region10: #{dqn_forward.4} parent=5 // pred_check_branch
        %116 = sbr.rel (%p113) target = $region12
      $region11: #{dqn_forward.4} parent=5 // pred_region
        %s117 = ssub.s32 %s9, 1
        // Predicated region
        $region13: #{dqn_forward.4} parent=11 // pred_check
          %p118 = pneg %p56
        $region14: #{dqn_forward.4} parent=11 // pred_check_branch
          %120 = sbr.rel (%p118) target = $region16
        $region15: #{dqn_forward.4} parent=11 // pred_region
          _
        $region16: #{dqn_forward.4} parent=11 // pred_fallthru
          _
        // Predicated region
        $region17: #{dqn_forward.4} parent=11 // pred_check
          %p121 = pneg %p77
        $region18: #{dqn_forward.4} parent=11 // pred_check_branch
          %123 = sbr.rel (%p121) target = $region20
        $region19: #{dqn_forward.4} parent=11 // pred_region
          _
        $region20: #{dqn_forward.4} parent=11 // pred_fallthru
          _
      $region12: #{dqn_forward.4} parent=5 // pred_fallthru
        _
      %p124 = scmp.lt.s32.totalorder %s9, 2
      // Predicated region
      $region21: #{dqn_forward.4} parent=5 // pred_check
        %p125 = pneg %p124
      $region22: #{dqn_forward.4} parent=5 // pred_check_branch
        %127 = sbr.rel (%p125) target = $region24
      $region23: #{dqn_forward.4} parent=5 // pred_region
        // Predicated region
        $region25: #{dqn_forward.4} parent=23 // pred_check
          %p128 = pneg %p29
        $region26: #{dqn_forward.4} parent=23 // pred_check_branch
          %130 = sbr.rel (%p128) target = $region28
        $region27: #{dqn_forward.4} parent=23 // pred_region
          %s131 = smul.u32 10, %s9
          %s132 = ssub.s32 18, %s131
          %p133 = scmp.lt.s32.totalorder %s132, 10
          %s134 = scalar_select %p133, %s132, 10
          %s135 = smul.u32 64, %s134
          %s136 = smul.u32 %s135, 2
          %p137 = scmp.lt.s32.totalorder %s131, 17
          %s138 = scalar_select %p137, %s131, 17
          %s139 = smul.addr %s138, 2
          %s140 = smul.addr %s139, 4
          %s141 = scalar_lea.vmem %s0, %s140
          %s142 = smul.u32 10, %s9
          %s143 = ssub.s32 18, %s142
          %p144 = scmp.lt.s32.totalorder %s143, 10
          %s145 = scalar_select %p144, %s143, 10
          %s146 = smul.u32 64, %s145
          %s147 = smul.u32 %s146, 2
        $region28: #{dqn_forward.4} parent=23 // pred_fallthru
          _
      $region24: #{dqn_forward.4} parent=5 // pred_fallthru
        _
      %p148 = scmp.le.s32.totalorder 1, %s9
      %p149 = scmp.lt.s32.totalorder %s9, 3
      %p150 = pnand %p148, %p149
      %p151 = pneg %p150
      // Predicated region
      $region29: #{dqn_forward.4} parent=5 // pred_check
        _
      $region30: #{dqn_forward.4} parent=5 // pred_check_branch
        %153 = sbr.rel (%p150) target = $region32
      $region31: #{dqn_forward.4} parent=5 // pred_region
        %s154 = ssub.s32 %s9, 1
        %s155 = smul.u32 10, %s14
        %s156 = ssub.s32 18, %s155
        %p157 = scmp.lt.s32.totalorder %s156, 10
        %s158 = scalar_select %p157, %s156, 10
        %s159 = smul.u32 64, %s158
        %s160 = smul.u32 %s159, 2
        %p161 = scmp.lt.s32.totalorder %s155, 17
        %s162 = scalar_select %p161, %s155, 17
        %s163 = smul.addr %s162, 2
        %s164 = smul.addr %s163, 4
        %s165 = scalar_lea.vmem %s0, %s164
        %p166 = pneg %p35
        %p167 = pneg %p32
        %p168 = pneg %p56
        %p169 = pneg %p53
        %p170 = pneg %p77
        %p171 = pneg %p74
        %p172 = pneg %p103
        %p173 = pneg %p100
        %s174 = sand.u32 %s90, 1
        %s175 = sand.u32 %s90, 1
        %s176 = smul.addr %s175, 40
        %s177 = scalar_lea.vmem [#allocation2], %s176
        %s178 = smul.u32 10, %s14
        %s179 = ssub.s32 18, %s178
        %p180 = scmp.lt.s32.totalorder %s179, 10
        %s181 = scalar_select %p180, %s179, 10
        %s182 = smul.u32 64, %s181
        %s183 = smul.u32 %s182, 2
        %p184 = scmp.lt.s32.totalorder %s178, 17
        %s185 = scalar_select %p184, %s178, 17
        %s186 = smul.addr %s185, 2
        %s187 = smul.addr %s186, 4
        %s188 = scalar_lea.vmem %s0, %s187
        %s189 = smul.u32 10, %s14
        %s190 = ssub.s32 18, %s189
        %p191 = scmp.lt.s32.totalorder %s190, 10
        %s192 = scalar_select %p191, %s190, 10
        %s193 = smul.u32 64, %s192
        %s194 = smul.u32 %s193, 2
        %s195 = smul.u32 10, %s14
        %s196 = ssub.s32 18, %s195
        %p197 = scmp.lt.s32.totalorder %s196, 10
        %s198 = scalar_select %p197, %s196, 10
        %s199 = smul.u32 64, %s198
        %v201 = vld [vmem:[%s188] sm:$0xff]
        %v202 = vld [vmem:[%s188 + $0x8] sm:$0xff]
        %v203 = vld [vmem:[%s188 + $0x10] sm:$0xff]
        %v204 = vld [vmem:[%s188 + $0x18] sm:$0xff]
        %v205 = vld [vmem:[%s188 + $0x20] sm:$0xff]
        %v206 = vld [vmem:[%s188 + $0x28] sm:$0xff]
        %v207 = vld [vmem:[%s188 + $0x30] sm:$0xff]
        %v208 = vld [vmem:[%s188 + $0x38] sm:$0xff]
        %v209 = vld [vmem:[%s188 + $0x40] sm:$0xff]
        %v210 = vld [vmem:[%s188 + $0x48] sm:$0xff]
        %v211 = vld [vmem:[%s1] sm:$0xf]
        %v212 = vld [vmem:[%s1 + $0x4] sm:$0xf]
        %v213 = vld [vmem:[%s1 + $0x8] sm:$0xf]
        %v214 = vld [vmem:[%s1 + $0xc] sm:$0xf]
        %v215 = vld [vmem:[%s1 + $0x10] sm:$0xf]
        %v216 = vld [vmem:[%s1 + $0x14] sm:$0xf]
        %v217 = vld [vmem:[%s1 + $0x18] sm:$0xf]
        %v218 = vld [vmem:[%s1 + $0x1c] sm:$0xf]
        %v219 = vld [vmem:[%s1 + $0x20] sm:$0xf]
        %v220 = vld [vmem:[%s1 + $0x24] sm:$0xf]
        %v221 = vld [vmem:[%s1 + $0x28] sm:$0xf]
        %v222 = vld [vmem:[%s1 + $0x2c] sm:$0xf]
        %v223 = vld [vmem:[%s1 + $0x30] sm:$0xf]
        %v224 = vld [vmem:[%s1 + $0x34] sm:$0xf]
        %v225 = vld [vmem:[%s1 + $0x38] sm:$0xf]
        %v226 = vld [vmem:[%s1 + $0x3c] sm:$0xf]
        %v227 = vld [vmem:[%s1 + $0x40] sm:$0xf]
        %v228 = vld [vmem:[%s1 + $0x44] sm:$0xf]
        %v229 = vld [vmem:[%s1 + $0x48] sm:$0xf]
        %v230 = vld [vmem:[%s1 + $0x4c] sm:$0xf]
        %v231 = vld [vmem:[%s1 + $0x50] sm:$0xf]
        %v232 = vld [vmem:[%s1 + $0x54] sm:$0xf]
        %v233 = vld [vmem:[%s1 + $0x58] sm:$0xf]
        %v234 = vld [vmem:[%s1 + $0x5c] sm:$0xf]
        %v235 = vld [vmem:[%s1 + $0x60] sm:$0xf]
        %v236 = vld [vmem:[%s1 + $0x64] sm:$0xf]
        %v237 = vld [vmem:[%s1 + $0x68] sm:$0xf]
        %v238 = vld [vmem:[%s1 + $0x6c] sm:$0xf]
        %v239 = vld [vmem:[%s1 + $0x70] sm:$0xf]
        %v240 = vld [vmem:[%s1 + $0x74] sm:$0xf]
        %v241 = vld [vmem:[%s1 + $0x78] sm:$0xf]
        %v242 = vld [vmem:[%s1 + $0x7c] sm:$0xf]
        %v243 = vld [vmem:[%s2] sm:$0x1]
        %v245 = vlaneseq
        %v246 = vshrl.u32 %v245, 7
        %v247 = vsub.s32 0, %v246
        %v248 = vrot.slane %v243, %v247
        %v260 = vunpack.c.l.b16 %v201
        %v261 = vunpack.c.h.b16 %v201
        %v262 = vunpack.c.l.b16 %v202
        %v263 = vunpack.c.h.b16 %v202
        %v264 = vunpack.c.l.b16 %v203
        %v265 = vunpack.c.h.b16 %v203
        %v266 = vunpack.c.l.b16 %v204
        %v267 = vunpack.c.h.b16 %v204
        %v268 = vunpack.c.l.b16 %v205
        %v269 = vunpack.c.h.b16 %v205
        %v270 = vunpack.c.l.b16 %v206
        %v271 = vunpack.c.h.b16 %v206
        %v272 = vunpack.c.l.b16 %v207
        %v273 = vunpack.c.h.b16 %v207
        %v274 = vunpack.c.l.b16 %v208
        %v275 = vunpack.c.h.b16 %v208
        %v276 = vunpack.c.l.b16 %v209
        %v277 = vunpack.c.h.b16 %v209
        %v278 = vunpack.c.l.b16 %v210
        %v279 = vunpack.c.h.b16 %v210
        %v280 = vpack.c.b16 %v262, %v260
        %v281 = vpack.c.b16 %v263, %v261
        %v282 = vpack.c.b16 %v266, %v264
        %v283 = vpack.c.b16 %v267, %v265
        %v284 = vpack.c.b16 %v270, %v268
        %v285 = vpack.c.b16 %v271, %v269
        %v286 = vpack.c.b16 %v274, %v272
        %v287 = vpack.c.b16 %v275, %v273
        %v288 = vpack.c.b16 %v278, %v276
        %v289 = vpack.c.b16 %v279, %v277
        %v332 = vunpack.c.l.b16 %v211
        %v333 = vunpack.c.l.b16 %v212
        %v334 = vunpack.c.l.b16 %v213
        %v335 = vunpack.c.l.b16 %v214
        %v336 = vunpack.c.l.b16 %v215
        %v337 = vunpack.c.l.b16 %v216
        %v338 = vunpack.c.l.b16 %v217
        %v339 = vunpack.c.l.b16 %v218
        %v340 = vunpack.c.l.b16 %v219
        %v341 = vunpack.c.l.b16 %v220
        %v342 = vunpack.c.l.b16 %v221
        %v343 = vunpack.c.l.b16 %v222
        %v344 = vunpack.c.l.b16 %v223
        %v345 = vunpack.c.l.b16 %v224
        %v346 = vunpack.c.l.b16 %v225
        %v347 = vunpack.c.l.b16 %v226
        %v348 = vunpack.c.l.b16 %v227
        %v349 = vunpack.c.l.b16 %v228
        %v350 = vunpack.c.l.b16 %v229
        %v351 = vunpack.c.l.b16 %v230
        %v352 = vunpack.c.l.b16 %v231
        %v353 = vunpack.c.l.b16 %v232
        %v354 = vunpack.c.l.b16 %v233
        %v355 = vunpack.c.l.b16 %v234
        %v356 = vunpack.c.l.b16 %v235
        %v357 = vunpack.c.l.b16 %v236
        %v358 = vunpack.c.l.b16 %v237
        %v359 = vunpack.c.l.b16 %v238
        %v360 = vunpack.c.l.b16 %v239
        %v361 = vunpack.c.l.b16 %v240
        %v362 = vunpack.c.l.b16 %v241
        %v363 = vunpack.c.l.b16 %v242
        %v364 = vpack.c.b16 %v333, %v332
        %v365 = vpack.c.b16 %v335, %v334
        %v366 = vpack.c.b16 %v337, %v336
        %v367 = vpack.c.b16 %v339, %v338
        %v368 = vpack.c.b16 %v341, %v340
        %v369 = vpack.c.b16 %v343, %v342
        %v370 = vpack.c.b16 %v345, %v344
        %v371 = vpack.c.b16 %v347, %v346
        %v372 = vpack.c.b16 %v349, %v348
        %v373 = vpack.c.b16 %v351, %v350
        %v374 = vpack.c.b16 %v353, %v352
        %v375 = vpack.c.b16 %v355, %v354
        %v376 = vpack.c.b16 %v357, %v356
        %v377 = vpack.c.b16 %v359, %v358
        %v378 = vpack.c.b16 %v361, %v360
        %v379 = vpack.c.b16 %v363, %v362
        %396 = vmatprep.subr.bf16.mxu0 0
        %397 = vmatpush1.bf16.msra.mxu0 %v371
        %398 = vmatprep.subr.bf16.mxu0 0
        %399 = vmatpush1.bf16.msra.mxu0 %v370
        %400 = vmatprep.subr.bf16.mxu0 0
        %401 = vmatpush1.bf16.msra.mxu0 %v369
        %402 = vmatprep.subr.bf16.mxu0 0
        %403 = vmatpush1.bf16.msra.mxu0 %v368
        %404 = vmatprep.subr.bf16.mxu0 0
        %405 = vmatpush1.bf16.msra.mxu0 %v367
        %406 = vmatprep.subr.bf16.mxu0 0
        %407 = vmatpush1.bf16.msra.mxu0 %v366
        %408 = vmatprep.subr.bf16.mxu0 0
        %409 = vmatpush1.bf16.msra.mxu0 %v365
        %410 = vmatprep.subr.bf16.mxu0 0
        %411 = vmatpush1.bf16.msra.mxu0 %v364
        %412 = vmatprep.subr.bf16.mxu0 0
        %413 = vmatpush2.bf16.msra.mxu0 %v379
        %414 = vmatprep.subr.bf16.mxu0 0
        %415 = vmatpush2.bf16.msra.mxu0 %v378
        %416 = vmatprep.subr.bf16.mxu0 0
        %417 = vmatpush2.bf16.msra.mxu0 %v377
        %418 = vmatprep.subr.bf16.mxu0 0
        %419 = vmatpush2.bf16.msra.mxu0 %v376
        %420 = vmatprep.subr.bf16.mxu0 0
        %421 = vmatpush2.bf16.msra.mxu0 %v375
        %422 = vmatprep.subr.bf16.mxu0 0
        %423 = vmatpush2.bf16.msra.mxu0 %v374
        %424 = vmatprep.subr.bf16.mxu0 0
        %425 = vmatpush2.bf16.msra.mxu0 %v373
        %426 = vmatprep.subr.bf16.mxu0 0
        %427 = vmatpush2.bf16.msra.mxu0 %v372
        %428 = vmatprep.mubr.bf16.mxu0 %v281
        %429 = vmatmul.mubr.bf16.gmra.mxu0 %v280
        %v430 = vpop.f32.mrf.mxu0
        %v431 = vadd.f32 %v248, %v430
        %v432 = vpop.f32.mrf.mxu0
        %v433 = vpop.f32.mrf.mxu0
        %v434 = vadd.f32 %v248, %v433
        %v435 = vpop.f32.mrf.mxu0
        %436 = vmatprep.mubr.bf16.mxu0 %v283
        %437 = vmatmul.mubr.bf16.gmra.mxu0 %v282
        %v438 = vpop.f32.mrf.mxu0
        %v439 = vadd.f32 %v248, %v438
        %v440 = vpop.f32.mrf.mxu0
        %v441 = vpop.f32.mrf.mxu0
        %v442 = vadd.f32 %v248, %v441
        %v443 = vpop.f32.mrf.mxu0
        %444 = vmatprep.mubr.bf16.mxu0 %v285
        %445 = vmatmul.mubr.bf16.gmra.mxu0 %v284
        %v446 = vpop.f32.mrf.mxu0
        %v447 = vadd.f32 %v248, %v446
        %v448 = vpop.f32.mrf.mxu0
        %v449 = vpop.f32.mrf.mxu0
        %v450 = vadd.f32 %v248, %v449
        %v451 = vpop.f32.mrf.mxu0
        %452 = vmatprep.mubr.bf16.mxu0 %v287
        %453 = vmatmul.mubr.bf16.gmra.mxu0 %v286
        %v454 = vpop.f32.mrf.mxu0
        %v455 = vadd.f32 %v248, %v454
        %v456 = vpop.f32.mrf.mxu0
        %v457 = vpop.f32.mrf.mxu0
        %v458 = vadd.f32 %v248, %v457
        %v459 = vpop.f32.mrf.mxu0
        %460 = vmatprep.mubr.bf16.mxu0 %v289
        %461 = vmatmul.mubr.bf16.gmra.mxu0 %v288
        %v462 = vpop.f32.mrf.mxu0
        %v463 = vadd.f32 %v248, %v462
        %v464 = vpop.f32.mrf.mxu0
        %v465 = vpop.f32.mrf.mxu0
        %v466 = vadd.f32 %v248, %v465
        %v467 = vpop.f32.mrf.mxu0
        %468 = vdwg.mxu0
        %v469 = vmax.f32 %v431, 0.0
        %v470 = vmax.f32 %v434, 0.0
        %v471 = vmax.f32 %v439, 0.0
        %v472 = vmax.f32 %v442, 0.0
        %v473 = vmax.f32 %v447, 0.0
        %v474 = vmax.f32 %v450, 0.0
        %v475 = vmax.f32 %v455, 0.0
        %v476 = vmax.f32 %v458, 0.0
        %v477 = vmax.f32 %v463, 0.0
        %v478 = vmax.f32 %v466, 0.0
        %v479 = vpack.c.bf16 %v470, %v469
        %v480 = vpack.c.bf16 %v472, %v471
        %v481 = vpack.c.bf16 %v474, %v473
        %v482 = vpack.c.bf16 %v476, %v475
        %v483 = vpack.c.bf16 %v478, %v477
        %v489 = vunpack.c.l.b16 %v479
        %v490 = vunpack.c.h.b16 %v479
        %v491 = vunpack.c.l.b16 %v480
        %v492 = vunpack.c.h.b16 %v480
        %v493 = vunpack.c.l.b16 %v481
        %v494 = vunpack.c.h.b16 %v481
        %v495 = vunpack.c.l.b16 %v482
        %v496 = vunpack.c.h.b16 %v482
        %v497 = vunpack.c.l.b16 %v483
        %v498 = vunpack.c.h.b16 %v483
        %v499 = vpack.c.b16 %v489, %v489
        %v500 = vpack.c.b16 %v490, %v490
        %v501 = vpack.c.b16 %v491, %v491
        %v502 = vpack.c.b16 %v492, %v492
        %v503 = vpack.c.b16 %v493, %v493
        %v504 = vpack.c.b16 %v494, %v494
        %v505 = vpack.c.b16 %v495, %v495
        %v506 = vpack.c.b16 %v496, %v496
        %v507 = vpack.c.b16 %v497, %v497
        %v508 = vpack.c.b16 %v498, %v498
        %vm519 = vcmask 257024
        %520 = vst.msk [vmem:[%s177] sm:$0xf] %vm519, %v499
        %521 = vst.msk [vmem:[%s177 + $0x4] sm:$0xf] %vm519, %v500
        %522 = vst.msk [vmem:[%s177 + $0x8] sm:$0xf] %vm519, %v501
        %523 = vst.msk [vmem:[%s177 + $0xc] sm:$0xf] %vm519, %v502
        %524 = vst.msk [vmem:[%s177 + $0x10] sm:$0xf] %vm519, %v503
        %525 = vst.msk [vmem:[%s177 + $0x14] sm:$0xf] %vm519, %v504
        %526 = vst.msk [vmem:[%s177 + $0x18] sm:$0xf] %vm519, %v505
        %527 = vst.msk [vmem:[%s177 + $0x1c] sm:$0xf] %vm519, %v506
        %528 = vst.msk [vmem:[%s177 + $0x20] sm:$0xf] %vm519, %v507
        %529 = vst.msk [vmem:[%s177 + $0x24] sm:$0xf] %vm519, %v508
        %s530 = sand.u32 %s90, 1
        %s531 = sand.u32 %s90, 1
        %s532 = smul.addr %s531, 40
        %s533 = scalar_lea.vmem [#allocation2], %s532
        // Predicated region
        $region33: #{dqn_forward.4} parent=31 // pred_check
          %p534 = pneg %p100
        $region34: #{dqn_forward.4} parent=31 // pred_check_branch
          %536 = sbr.rel (%p534) target = $region36
        $region35: #{dqn_forward.4} parent=31 // pred_region
          %s537 = smul.u32 10, %s14
          %s538 = ssub.s32 18, %s537
          %p539 = scmp.lt.s32.totalorder %s538, 10
          %s540 = scalar_select %p539, %s538, 10
          %s541 = smul.u32 64, %s540
          %p542 = scmp.ne.s32.totalorder 0, %s541
          %s543 = smul.addr %s537, 4
          %s544 = scalar_lea.vmem %s3, %s543
          // Predicated region
          $region37: #{dqn_forward.4} parent=35 // pred_check
            %p545 = pneg %p542
          $region38: #{dqn_forward.4} parent=35 // pred_check_branch
            %547 = sbr.rel (%p545) target = $region40
          $region39: #{dqn_forward.4} parent=35 // pred_region
            // Predicated region
            $region41: #{dqn_forward.4} parent=39 // pred_check
              _
            $region42: #{dqn_forward.4} parent=39 // pred_check_branch
              %549 = sbr.rel target = $region44
            $region43: #{dqn_forward.4} parent=39 // pred_region
              // Predicated region
              $region63: #{dqn_forward.4} parent=43 // pred_check
                _
              $region64: #{dqn_forward.4} parent=43 // pred_check_branch
                %618 = sbr.rel (0) target = $region66
              $region65: #{dqn_forward.4} parent=43 // pred_region
                %s620 = ssub.s32 16, 1
                %s621 = sdiv.u32.pop %s540, 10
                %s622 = srem.u32.pop %s540, 10
                // While loop
                $region67: #{dqn_forward.4} parent=65 // loop_pre_header
                  _
                $region68: #{dqn_forward.4} parent=65 // loop_header
                  %s624 = sphi 0, %s626
                  %p625 = scmp.ge.s32.totalorder %s624, %s621
                  %s629 = sphi 0, %s654
                  %s630 = sphi %s533, %s657
                  %s631 = sphi %s544, %s658
                $region69: #{dqn_forward.4} parent=65 // loop_header_branch
                  %628 = sbr.rel (%p625) target = $region73
                $region70: #{dqn_forward.4} parent=65 // loop_body
                  %v632 = vld [vmem:[%s630] sm:%s620]
                  %633 = vst [vmem:[%s631] sm:%s620] %v632
                  %v634 = vld [vmem:[%s630 + $0x4] sm:%s620]
                  %635 = vst [vmem:[%s631 + $0x4] sm:%s620] %v634
                  %v636 = vld [vmem:[%s630 + $0x8] sm:%s620]
                  %637 = vst [vmem:[%s631 + $0x8] sm:%s620] %v636
                  %v638 = vld [vmem:[%s630 + $0xc] sm:%s620]
                  %639 = vst [vmem:[%s631 + $0xc] sm:%s620] %v638
                  %v640 = vld [vmem:[%s630 + $0x10] sm:%s620]
                  %641 = vst [vmem:[%s631 + $0x10] sm:%s620] %v640
                  %v642 = vld [vmem:[%s630 + $0x14] sm:%s620]
                  %643 = vst [vmem:[%s631 + $0x14] sm:%s620] %v642
                  %v644 = vld [vmem:[%s630 + $0x18] sm:%s620]
                  %645 = vst [vmem:[%s631 + $0x18] sm:%s620] %v644
                  %v646 = vld [vmem:[%s630 + $0x1c] sm:%s620]
                  %647 = vst [vmem:[%s631 + $0x1c] sm:%s620] %v646
                  %v648 = vld [vmem:[%s630 + $0x20] sm:%s620]
                  %649 = vst [vmem:[%s631 + $0x20] sm:%s620] %v648
                  %v650 = vld [vmem:[%s630 + $0x24] sm:%s620]
                  %651 = vst [vmem:[%s631 + $0x24] sm:%s620] %v650
                  %s652 = sadd.s32 1, %s629
                  %p653 = scmp.ge.s32.totalorder %s652, %s621
                  %s654 = scalar_select %p653, 0, %s652
                  %s655 = smul.u32 %s654, 40
                  %s656 = smul.u32 %s654, 40
                  %s657 = scalar_lea.vmem %s533, %s655 [#allocation2]
                  %s658 = scalar_lea.vmem %s544, %s656
                $region71: #{dqn_forward.4} parent=65 // loop_footer
                  %s626 = sadd.s32 %s624, 1
                $region72: #{dqn_forward.4} parent=65 // loop_footer_branch
                  %623 = sbr.rel target = $region68
                $region73: #{dqn_forward.4} parent=65 // loop_exit
                  _
                %s659 = sdiv.u32.pop %s540, 10
                %s660 = srem.u32.pop %s540, 10
                %s661 = smul.u32 %s659, 10
                %s662 = smul.u32 4, %s661
                %s663 = scalar_lea.vmem %s533, %s662 [#allocation2]
                %s664 = smul.u32 4, %s661
                %s665 = scalar_lea.vmem %s544, %s664
                // While loop
                $region74: #{dqn_forward.4} parent=65 // loop_pre_header
                  _
                $region75: #{dqn_forward.4} parent=65 // loop_header
                  %s667 = sphi 0, %s669
                  %p668 = scmp.ge.s32.totalorder %s667, %s660
                  %s672 = sphi 0, %s679
                  %s673 = sphi %s663, %s682
                  %s674 = sphi %s665, %s683
                $region76: #{dqn_forward.4} parent=65 // loop_header_branch
                  %671 = sbr.rel (%p668) target = $region80
                $region77: #{dqn_forward.4} parent=65 // loop_body
                  %v675 = vld [vmem:[%s673] sm:%s620]
                  %676 = vst [vmem:[%s674] sm:%s620] %v675
                  %s677 = sadd.s32 1, %s672
                  %p678 = scmp.ge.s32.totalorder %s677, %s660
                  %s679 = scalar_select %p678, 0, %s677
                  %s680 = smul.u32 %s679, 4
                  %s681 = smul.u32 %s679, 4
                  %s682 = scalar_lea.vmem %s663, %s680 [#allocation2]
                  %s683 = scalar_lea.vmem %s665, %s681
                $region78: #{dqn_forward.4} parent=65 // loop_footer
                  %s669 = sadd.s32 %s667, 1
                $region79: #{dqn_forward.4} parent=65 // loop_footer_branch
                  %666 = sbr.rel target = $region75
                $region80: #{dqn_forward.4} parent=65 // loop_exit
                  _
              $region66: #{dqn_forward.4} parent=43 // pred_fallthru
                _
            $region44: #{dqn_forward.4} parent=39 // pred_fallthru
              _
            // Predicated region
            $region45: #{dqn_forward.4} parent=39 // pred_check
              _
            $region46: #{dqn_forward.4} parent=39 // pred_check_branch
              %551 = sbr.rel (0) target = $region48
            $region47: #{dqn_forward.4} parent=39 // pred_region
              %s553 = ssub.s32 16, 1
              %s554 = sdiv.u32.pop %s540, 10
              %s555 = srem.u32.pop %s540, 10
              // While loop
              $region49: #{dqn_forward.4} parent=47 // loop_pre_header
                _
              $region50: #{dqn_forward.4} parent=47 // loop_header
                %s557 = sphi 0, %s559
                %p558 = scmp.ge.s32.totalorder %s557, %s554
                %s562 = sphi 0, %s587
                %s563 = sphi %s533, %s590
                %s564 = sphi %s544, %s591
              $region51: #{dqn_forward.4} parent=47 // loop_header_branch
                %561 = sbr.rel (%p558) target = $region55
              $region52: #{dqn_forward.4} parent=47 // loop_body
                %v565 = vld [vmem:[%s563] sm:%s553]
                %566 = vst [vmem:[%s564] sm:%s553] %v565
                %v567 = vld [vmem:[%s563 + $0x4] sm:%s553]
                %568 = vst [vmem:[%s564 + $0x4] sm:%s553] %v567
                %v569 = vld [vmem:[%s563 + $0x8] sm:%s553]
                %570 = vst [vmem:[%s564 + $0x8] sm:%s553] %v569
                %v571 = vld [vmem:[%s563 + $0xc] sm:%s553]
                %572 = vst [vmem:[%s564 + $0xc] sm:%s553] %v571
                %v573 = vld [vmem:[%s563 + $0x10] sm:%s553]
                %574 = vst [vmem:[%s564 + $0x10] sm:%s553] %v573
                %v575 = vld [vmem:[%s563 + $0x14] sm:%s553]
                %576 = vst [vmem:[%s564 + $0x14] sm:%s553] %v575
                %v577 = vld [vmem:[%s563 + $0x18] sm:%s553]
                %578 = vst [vmem:[%s564 + $0x18] sm:%s553] %v577
                %v579 = vld [vmem:[%s563 + $0x1c] sm:%s553]
                %580 = vst [vmem:[%s564 + $0x1c] sm:%s553] %v579
                %v581 = vld [vmem:[%s563 + $0x20] sm:%s553]
                %582 = vst [vmem:[%s564 + $0x20] sm:%s553] %v581
                %v583 = vld [vmem:[%s563 + $0x24] sm:%s553]
                %584 = vst [vmem:[%s564 + $0x24] sm:%s553] %v583
                %s585 = sadd.s32 1, %s562
                %p586 = scmp.ge.s32.totalorder %s585, %s554
                %s587 = scalar_select %p586, 0, %s585
                %s588 = smul.u32 %s587, 40
                %s589 = smul.u32 %s587, 40
                %s590 = scalar_lea.vmem %s533, %s588 [#allocation2]
                %s591 = scalar_lea.vmem %s544, %s589
              $region53: #{dqn_forward.4} parent=47 // loop_footer
                %s559 = sadd.s32 %s557, 1
              $region54: #{dqn_forward.4} parent=47 // loop_footer_branch
                %556 = sbr.rel target = $region50
              $region55: #{dqn_forward.4} parent=47 // loop_exit
                _
              %s592 = sdiv.u32.pop %s540, 10
              %s593 = srem.u32.pop %s540, 10
              %s594 = smul.u32 %s592, 10
              %s595 = smul.u32 4, %s594
              %s596 = scalar_lea.vmem %s533, %s595 [#allocation2]
              %s597 = smul.u32 4, %s594
              %s598 = scalar_lea.vmem %s544, %s597
              // While loop
              $region56: #{dqn_forward.4} parent=47 // loop_pre_header
                _
              $region57: #{dqn_forward.4} parent=47 // loop_header
                %s600 = sphi 0, %s602
                %p601 = scmp.ge.s32.totalorder %s600, %s593
                %s605 = sphi 0, %s612
                %s606 = sphi %s596, %s615
                %s607 = sphi %s598, %s616
              $region58: #{dqn_forward.4} parent=47 // loop_header_branch
                %604 = sbr.rel (%p601) target = $region62
              $region59: #{dqn_forward.4} parent=47 // loop_body
                %v608 = vld [vmem:[%s606] sm:%s553]
                %609 = vst [vmem:[%s607] sm:%s553] %v608
                %s610 = sadd.s32 1, %s605
                %p611 = scmp.ge.s32.totalorder %s610, %s593
                %s612 = scalar_select %p611, 0, %s610
                %s613 = smul.u32 %s612, 4
                %s614 = smul.u32 %s612, 4
                %s615 = scalar_lea.vmem %s596, %s613 [#allocation2]
                %s616 = scalar_lea.vmem %s598, %s614
              $region60: #{dqn_forward.4} parent=47 // loop_footer
                %s602 = sadd.s32 %s600, 1
              $region61: #{dqn_forward.4} parent=47 // loop_footer_branch
                %599 = sbr.rel target = $region57
              $region62: #{dqn_forward.4} parent=47 // loop_exit
                _
            $region48: #{dqn_forward.4} parent=39 // pred_fallthru
              _
          $region40: #{dqn_forward.4} parent=35 // pred_fallthru
            _
          %684 = vnop
        $region36: #{dqn_forward.4} parent=31 // pred_fallthru
          _
      $region32: #{dqn_forward.4} parent=5 // pred_fallthru
        _
      %p685 = scmp.le.s32.totalorder 2, %s9
      // Predicated region
      $region81: #{dqn_forward.4} parent=5 // pred_check
        %p686 = pneg %p685
      $region82: #{dqn_forward.4} parent=5 // pred_check_branch
        %688 = sbr.rel (%p686) target = $region84
      $region83: #{dqn_forward.4} parent=5 // pred_region
        %s689 = ssub.s32 %s9, 2
        // Predicated region
        $region85: #{dqn_forward.4} parent=83 // pred_check
          %p690 = pneg %p106
        $region86: #{dqn_forward.4} parent=83 // pred_check_branch
          %692 = sbr.rel (%p690) target = $region88
        $region87: #{dqn_forward.4} parent=83 // pred_region
          %s693 = sand.u32 %s91, 1
          %s694 = sand.u32 %s91, 1
          %s695 = smul.addr %s694, 40
          %s696 = scalar_lea.vmem [#allocation2], %s695
        $region88: #{dqn_forward.4} parent=83 // pred_fallthru
          _
      $region84: #{dqn_forward.4} parent=5 // pred_fallthru
        _
    $region6: #{dqn_forward.4} parent=1 // loop_footer
      %s13 = sadd.s32 1, %s9
    $region7: #{dqn_forward.4} parent=1 // loop_footer_branch
      %8 = sbr.rel target = $region3
    $region8: #{dqn_forward.4} parent=1 // loop_exit
      _

// kernel: dqn_forward.5
$region0: #{dqn_forward.5}
  #allocation0 [shape = 'u32[]', space=smem, size = 0x4, offset = 0x4, fixed_abs, tag = 'smem constant byte address 0x4 - core index']
  #allocation1 [shape = 'u32[144,128]{1,0:T(1,128)}', space=vmem, size = 0x12000, scoped, tag = 'internal scratch']
  %s0 = inlined_call_operand.vmem [shape: bf16[2,2304], index: 0, kind: input, shape index: {}]
  %s1 = inlined_call_operand.vmem [shape: bf16[2304,256], index: 1, kind: input, shape index: {}]
  %s2 = inlined_call_operand.vmem [shape: f32[1,256], index: 2, kind: input, shape index: {}]
  %s3 = inlined_call_operand.vmem [shape: f32[256,128], index: 3, kind: input, shape index: {}]
  %s4 = inlined_call_operand.vmem [shape: f32[1,128], index: 4, kind: input, shape index: {}]
  %s5 = inlined_call_operand.hbm [shape: f32[2,128], index: 5, kind: output, shape index: {}]
  %s6 = sld [smem:[#allocation0]]
  $region30: #{dqn_forward.5} parent=0
    _
  %s8 = ssub.s32 1, %s6
  %s9 = scalar_select 0, %s8, %s6
  $region1: #{dqn_forward.5} parent=0
    #allocation2 [shape = 'u8[1024]{0}', space=vmem, size = 0x400, scoped, tag = 'output window, operand 0, single buffered']
    #allocation3 [shape = 's32[1]{0}', space=sflag, size = 0x4, scoped, tag = 'scoped memory for dqn_forward.5']
    %10 = vsyncpa [#allocation3], 0
    // Predicated region
    $region2: #{dqn_forward.5} parent=1 // pred_check
      _
    $region3: #{dqn_forward.5} parent=1 // pred_check_branch
      %12 = sbr.rel (0) target = $region5
    $region4: #{dqn_forward.5} parent=1 // pred_region
      _
    $region5: #{dqn_forward.5} parent=1 // pred_fallthru
      _
    // Predicated region
    $region6: #{dqn_forward.5} parent=1 // pred_check
      _
    $region7: #{dqn_forward.5} parent=1 // pred_check_branch
      %14 = sbr.rel (0) target = $region9
    $region8: #{dqn_forward.5} parent=1 // pred_region
      _
    $region9: #{dqn_forward.5} parent=1 // pred_fallthru
      _
    // Predicated region
    $region10: #{dqn_forward.5} parent=1 // pred_check
      _
    $region11: #{dqn_forward.5} parent=1 // pred_check_branch
      %16 = sbr.rel (0) target = $region13
    $region12: #{dqn_forward.5} parent=1 // pred_region
      _
    $region13: #{dqn_forward.5} parent=1 // pred_fallthru
      _
    // Predicated region
    $region14: #{dqn_forward.5} parent=1 // pred_check
      _
    $region15: #{dqn_forward.5} parent=1 // pred_check_branch
      %18 = sbr.rel (0) target = $region17
    $region16: #{dqn_forward.5} parent=1 // pred_region
      _
    $region17: #{dqn_forward.5} parent=1 // pred_fallthru
      _
    // Predicated region
    $region18: #{dqn_forward.5} parent=1 // pred_check
      _
    $region19: #{dqn_forward.5} parent=1 // pred_check_branch
      %20 = sbr.rel (0) target = $region21
    $region20: #{dqn_forward.5} parent=1 // pred_region
      _
    $region21: #{dqn_forward.5} parent=1 // pred_fallthru
      _
    %v21 = vld [vmem:[%s0] sm:$0xff]
    %v22 = vld [vmem:[%s0 + $0x8] sm:$0xff]
    %v23 = vld [vmem:[%s0 + $0x10] sm:$0x3]
    %v24 = vld [vmem:[%s1] sm:$0xff]
    %v25 = vld [vmem:[%s1 + $0x8] sm:$0xff]
    %v26 = vld [vmem:[%s1 + $0x10] sm:$0xff]
    %v27 = vld [vmem:[%s1 + $0x18] sm:$0xff]
    %v28 = vld [vmem:[%s1 + $0x20] sm:$0xff]
    %v29 = vld [vmem:[%s1 + $0x28] sm:$0xff]
    %v30 = vld [vmem:[%s1 + $0x30] sm:$0xff]
    %v31 = vld [vmem:[%s1 + $0x38] sm:$0xff]
    %v32 = vld [vmem:[%s1 + $0x40] sm:$0xff]
    %v33 = vld [vmem:[%s1 + $0x48] sm:$0xff]
    %v34 = vld [vmem:[%s1 + $0x50] sm:$0xff]
    %v35 = vld [vmem:[%s1 + $0x58] sm:$0xff]
    %v36 = vld [vmem:[%s1 + $0x60] sm:$0xff]
    %v37 = vld [vmem:[%s1 + $0x68] sm:$0xff]
    %v38 = vld [vmem:[%s1 + $0x70] sm:$0xff]
    %v39 = vld [vmem:[%s1 + $0x78] sm:$0xff]
    %v40 = vld [vmem:[%s1 + $0x80] sm:$0xff]
    %v41 = vld [vmem:[%s1 + $0x88] sm:$0xff]
    %v42 = vld [vmem:[%s1 + $0x90] sm:$0xff]
    %v43 = vld [vmem:[%s1 + $0x98] sm:$0xff]
    %v44 = vld [vmem:[%s1 + $0xa0] sm:$0xff]
    %v45 = vld [vmem:[%s1 + $0xa8] sm:$0xff]
    %v46 = vld [vmem:[%s1 + $0xb0] sm:$0xff]
    %v47 = vld [vmem:[%s1 + $0xb8] sm:$0xff]
    %v48 = vld [vmem:[%s1 + $0xc0] sm:$0xff]
    %v49 = vld [vmem:[%s1 + $0xc8] sm:$0xff]
    %v50 = vld [vmem:[%s1 + $0xd0] sm:$0xff]
    %v51 = vld [vmem:[%s1 + $0xd8] sm:$0xff]
    %v52 = vld [vmem:[%s1 + $0xe0] sm:$0xff]
    %v53 = vld [vmem:[%s1 + $0xe8] sm:$0xff]
    %v54 = vld [vmem:[%s1 + $0xf0] sm:$0xff]
    %v55 = vld [vmem:[%s1 + $0xf8] sm:$0xff]
    %v56 = vld [vmem:[%s1 + $0x100] sm:$0xff]
    %v57 = vld [vmem:[%s1 + $0x108] sm:$0xff]
    %v58 = vld [vmem:[%s1 + $0x110] sm:$0xff]
    %v59 = vld [vmem:[%s1 + $0x118] sm:$0xff]
    %v60 = vld [vmem:[%s1 + $0x120] sm:$0xff]
    %v61 = vld [vmem:[%s1 + $0x128] sm:$0xff]
    %v62 = vld [vmem:[%s1 + $0x130] sm:$0xff]
    %v63 = vld [vmem:[%s1 + $0x138] sm:$0xff]
    %v64 = vld [vmem:[%s1 + $0x140] sm:$0xff]
    %v65 = vld [vmem:[%s1 + $0x148] sm:$0xff]
    %v66 = vld [vmem:[%s1 + $0x150] sm:$0xff]
    %v67 = vld [vmem:[%s1 + $0x158] sm:$0xff]
    %v68 = vld [vmem:[%s1 + $0x160] sm:$0xff]
    %v69 = vld [vmem:[%s1 + $0x168] sm:$0xff]
    %v70 = vld [vmem:[%s1 + $0x170] sm:$0xff]
    %v71 = vld [vmem:[%s1 + $0x178] sm:$0xff]
    %v72 = vld [vmem:[%s1 + $0x180] sm:$0xff]
    %v73 = vld [vmem:[%s1 + $0x188] sm:$0xff]
    %v74 = vld [vmem:[%s1 + $0x190] sm:$0xff]
    %v75 = vld [vmem:[%s1 + $0x198] sm:$0xff]
    %v76 = vld [vmem:[%s1 + $0x1a0] sm:$0xff]
    %v77 = vld [vmem:[%s1 + $0x1a8] sm:$0xff]
    %v78 = vld [vmem:[%s1 + $0x1b0] sm:$0xff]
    %v79 = vld [vmem:[%s1 + $0x1b8] sm:$0xff]
    %v80 = vld [vmem:[%s1 + $0x1c0] sm:$0xff]
    %v81 = vld [vmem:[%s1 + $0x1c8] sm:$0xff]
    %v82 = vld [vmem:[%s1 + $0x1d0] sm:$0xff]
    %v83 = vld [vmem:[%s1 + $0x1d8] sm:$0xff]
    %v84 = vld [vmem:[%s1 + $0x1e0] sm:$0xff]
    %v85 = vld [vmem:[%s1 + $0x1e8] sm:$0xff]
    %v86 = vld [vmem:[%s1 + $0x1f0] sm:$0xff]
    %v87 = vld [vmem:[%s1 + $0x1f8] sm:$0xff]
    %v88 = vld [vmem:[%s1 + $0x200] sm:$0xff]
    %v89 = vld [vmem:[%s1 + $0x208] sm:$0xff]
    %v90 = vld [vmem:[%s1 + $0x210] sm:$0xff]
    %v91 = vld [vmem:[%s1 + $0x218] sm:$0xff]
    %v92 = vld [vmem:[%s1 + $0x220] sm:$0xff]
    %v93 = vld [vmem:[%s1 + $0x228] sm:$0xff]
    %v94 = vld [vmem:[%s1 + $0x230] sm:$0xff]
    %v95 = vld [vmem:[%s1 + $0x238] sm:$0xff]
    %v96 = vld [vmem:[%s1 + $0x240] sm:$0xff]
    %v97 = vld [vmem:[%s1 + $0x248] sm:$0xff]
    %v98 = vld [vmem:[%s1 + $0x250] sm:$0xff]
    %v99 = vld [vmem:[%s1 + $0x258] sm:$0xff]
    %v100 = vld [vmem:[%s1 + $0x260] sm:$0xff]
    %v101 = vld [vmem:[%s1 + $0x268] sm:$0xff]
    %v102 = vld [vmem:[%s1 + $0x270] sm:$0xff]
    %v103 = vld [vmem:[%s1 + $0x278] sm:$0xff]
    %v104 = vld [vmem:[%s1 + $0x280] sm:$0xff]
    %v105 = vld [vmem:[%s1 + $0x288] sm:$0xff]
    %v106 = vld [vmem:[%s1 + $0x290] sm:$0xff]
    %v107 = vld [vmem:[%s1 + $0x298] sm:$0xff]
    %v108 = vld [vmem:[%s1 + $0x2a0] sm:$0xff]
    %v109 = vld [vmem:[%s1 + $0x2a8] sm:$0xff]
    %v110 = vld [vmem:[%s1 + $0x2b0] sm:$0xff]
    %v111 = vld [vmem:[%s1 + $0x2b8] sm:$0xff]
    %v112 = vld [vmem:[%s1 + $0x2c0] sm:$0xff]
    %v113 = vld [vmem:[%s1 + $0x2c8] sm:$0xff]
    %v114 = vld [vmem:[%s1 + $0x2d0] sm:$0xff]
    %v115 = vld [vmem:[%s1 + $0x2d8] sm:$0xff]
    %v116 = vld [vmem:[%s1 + $0x2e0] sm:$0xff]
    %v117 = vld [vmem:[%s1 + $0x2e8] sm:$0xff]
    %v118 = vld [vmem:[%s1 + $0x2f0] sm:$0xff]
    %v119 = vld [vmem:[%s1 + $0x2f8] sm:$0xff]
    %v120 = vld [vmem:[%s1 + $0x300] sm:$0xff]
    %v121 = vld [vmem:[%s1 + $0x308] sm:$0xff]
    %v122 = vld [vmem:[%s1 + $0x310] sm:$0xff]
    %v123 = vld [vmem:[%s1 + $0x318] sm:$0xff]
    %v124 = vld [vmem:[%s1 + $0x320] sm:$0xff]
    %v125 = vld [vmem:[%s1 + $0x328] sm:$0xff]
    %v126 = vld [vmem:[%s1 + $0x330] sm:$0xff]
    %v127 = vld [vmem:[%s1 + $0x338] sm:$0xff]
    %v128 = vld [vmem:[%s1 + $0x340] sm:$0xff]
    %v129 = vld [vmem:[%s1 + $0x348] sm:$0xff]
    %v130 = vld [vmem:[%s1 + $0x350] sm:$0xff]
    %v131 = vld [vmem:[%s1 + $0x358] sm:$0xff]
    %v132 = vld [vmem:[%s1 + $0x360] sm:$0xff]
    %v133 = vld [vmem:[%s1 + $0x368] sm:$0xff]
    %v134 = vld [vmem:[%s1 + $0x370] sm:$0xff]
    %v135 = vld [vmem:[%s1 + $0x378] sm:$0xff]
    %v136 = vld [vmem:[%s1 + $0x380] sm:$0xff]
    %v137 = vld [vmem:[%s1 + $0x388] sm:$0xff]
    %v138 = vld [vmem:[%s1 + $0x390] sm:$0xff]
    %v139 = vld [vmem:[%s1 + $0x398] sm:$0xff]
    %v140 = vld [vmem:[%s1 + $0x3a0] sm:$0xff]
    %v141 = vld [vmem:[%s1 + $0x3a8] sm:$0xff]
    %v142 = vld [vmem:[%s1 + $0x3b0] sm:$0xff]
    %v143 = vld [vmem:[%s1 + $0x3b8] sm:$0xff]
    %v144 = vld [vmem:[%s1 + $0x3c0] sm:$0xff]
    %v145 = vld [vmem:[%s1 + $0x3c8] sm:$0xff]
    %v146 = vld [vmem:[%s1 + $0x3d0] sm:$0xff]
    %v147 = vld [vmem:[%s1 + $0x3d8] sm:$0xff]
    %v148 = vld [vmem:[%s1 + $0x3e0] sm:$0xff]
    %v149 = vld [vmem:[%s1 + $0x3e8] sm:$0xff]
    %v150 = vld [vmem:[%s1 + $0x3f0] sm:$0xff]
    %v151 = vld [vmem:[%s1 + $0x3f8] sm:$0xff]
    %v152 = vld [vmem:[%s1 + $0x400] sm:$0xff]
    %v153 = vld [vmem:[%s1 + $0x408] sm:$0xff]
    %v154 = vld [vmem:[%s1 + $0x410] sm:$0xff]
    %v155 = vld [vmem:[%s1 + $0x418] sm:$0xff]
    %v156 = vld [vmem:[%s1 + $0x420] sm:$0xff]
    %v157 = vld [vmem:[%s1 + $0x428] sm:$0xff]
    %v158 = vld [vmem:[%s1 + $0x430] sm:$0xff]
    %v159 = vld [vmem:[%s1 + $0x438] sm:$0xff]
    %v160 = vld [vmem:[%s1 + $0x440] sm:$0xff]
    %v161 = vld [vmem:[%s1 + $0x448] sm:$0xff]
    %v162 = vld [vmem:[%s1 + $0x450] sm:$0xff]
    %v163 = vld [vmem:[%s1 + $0x458] sm:$0xff]
    %v164 = vld [vmem:[%s1 + $0x460] sm:$0xff]
    %v165 = vld [vmem:[%s1 + $0x468] sm:$0xff]
    %v166 = vld [vmem:[%s1 + $0x470] sm:$0xff]
    %v167 = vld [vmem:[%s1 + $0x478] sm:$0xff]
    %v168 = vld [vmem:[%s1 + $0x480] sm:$0xff]
    %v169 = vld [vmem:[%s1 + $0x488] sm:$0xff]
    %v170 = vld [vmem:[%s1 + $0x490] sm:$0xff]
    %v171 = vld [vmem:[%s1 + $0x498] sm:$0xff]
    %v172 = vld [vmem:[%s1 + $0x4a0] sm:$0xff]
    %v173 = vld [vmem:[%s1 + $0x4a8] sm:$0xff]
    %v174 = vld [vmem:[%s1 + $0x4b0] sm:$0xff]
    %v175 = vld [vmem:[%s1 + $0x4b8] sm:$0xff]
    %v176 = vld [vmem:[%s1 + $0x4c0] sm:$0xff]
    %v177 = vld [vmem:[%s1 + $0x4c8] sm:$0xff]
    %v178 = vld [vmem:[%s1 + $0x4d0] sm:$0xff]
    %v179 = vld [vmem:[%s1 + $0x4d8] sm:$0xff]
    %v180 = vld [vmem:[%s1 + $0x4e0] sm:$0xff]
    %v181 = vld [vmem:[%s1 + $0x4e8] sm:$0xff]
    %v182 = vld [vmem:[%s1 + $0x4f0] sm:$0xff]
    %v183 = vld [vmem:[%s1 + $0x4f8] sm:$0xff]
    %v184 = vld [vmem:[%s1 + $0x500] sm:$0xff]
    %v185 = vld [vmem:[%s1 + $0x508] sm:$0xff]
    %v186 = vld [vmem:[%s1 + $0x510] sm:$0xff]
    %v187 = vld [vmem:[%s1 + $0x518] sm:$0xff]
    %v188 = vld [vmem:[%s1 + $0x520] sm:$0xff]
    %v189 = vld [vmem:[%s1 + $0x528] sm:$0xff]
    %v190 = vld [vmem:[%s1 + $0x530] sm:$0xff]
    %v191 = vld [vmem:[%s1 + $0x538] sm:$0xff]
    %v192 = vld [vmem:[%s1 + $0x540] sm:$0xff]
    %v193 = vld [vmem:[%s1 + $0x548] sm:$0xff]
    %v194 = vld [vmem:[%s1 + $0x550] sm:$0xff]
    %v195 = vld [vmem:[%s1 + $0x558] sm:$0xff]
    %v196 = vld [vmem:[%s1 + $0x560] sm:$0xff]
    %v197 = vld [vmem:[%s1 + $0x568] sm:$0xff]
    %v198 = vld [vmem:[%s1 + $0x570] sm:$0xff]
    %v199 = vld [vmem:[%s1 + $0x578] sm:$0xff]
    %v200 = vld [vmem:[%s1 + $0x580] sm:$0xff]
    %v201 = vld [vmem:[%s1 + $0x588] sm:$0xff]
    %v202 = vld [vmem:[%s1 + $0x590] sm:$0xff]
    %v203 = vld [vmem:[%s1 + $0x598] sm:$0xff]
    %v204 = vld [vmem:[%s1 + $0x5a0] sm:$0xff]
    %v205 = vld [vmem:[%s1 + $0x5a8] sm:$0xff]
    %v206 = vld [vmem:[%s1 + $0x5b0] sm:$0xff]
    %v207 = vld [vmem:[%s1 + $0x5b8] sm:$0xff]
    %v208 = vld [vmem:[%s1 + $0x5c0] sm:$0xff]
    %v209 = vld [vmem:[%s1 + $0x5c8] sm:$0xff]
    %v210 = vld [vmem:[%s1 + $0x5d0] sm:$0xff]
    %v211 = vld [vmem:[%s1 + $0x5d8] sm:$0xff]
    %v212 = vld [vmem:[%s1 + $0x5e0] sm:$0xff]
    %v213 = vld [vmem:[%s1 + $0x5e8] sm:$0xff]
    %v214 = vld [vmem:[%s1 + $0x5f0] sm:$0xff]
    %v215 = vld [vmem:[%s1 + $0x5f8] sm:$0xff]
    %v216 = vld [vmem:[%s1 + $0x600] sm:$0xff]
    %v217 = vld [vmem:[%s1 + $0x608] sm:$0xff]
    %v218 = vld [vmem:[%s1 + $0x610] sm:$0xff]
    %v219 = vld [vmem:[%s1 + $0x618] sm:$0xff]
    %v220 = vld [vmem:[%s1 + $0x620] sm:$0xff]
    %v221 = vld [vmem:[%s1 + $0x628] sm:$0xff]
    %v222 = vld [vmem:[%s1 + $0x630] sm:$0xff]
    %v223 = vld [vmem:[%s1 + $0x638] sm:$0xff]
    %v224 = vld [vmem:[%s1 + $0x640] sm:$0xff]
    %v225 = vld [vmem:[%s1 + $0x648] sm:$0xff]
    %v226 = vld [vmem:[%s1 + $0x650] sm:$0xff]
    %v227 = vld [vmem:[%s1 + $0x658] sm:$0xff]
    %v228 = vld [vmem:[%s1 + $0x660] sm:$0xff]
    %v229 = vld [vmem:[%s1 + $0x668] sm:$0xff]
    %v230 = vld [vmem:[%s1 + $0x670] sm:$0xff]
    %v231 = vld [vmem:[%s1 + $0x678] sm:$0xff]
    %v232 = vld [vmem:[%s1 + $0x680] sm:$0xff]
    %v233 = vld [vmem:[%s1 + $0x688] sm:$0xff]
    %v234 = vld [vmem:[%s1 + $0x690] sm:$0xff]
    %v235 = vld [vmem:[%s1 + $0x698] sm:$0xff]
    %v236 = vld [vmem:[%s1 + $0x6a0] sm:$0xff]
    %v237 = vld [vmem:[%s1 + $0x6a8] sm:$0xff]
    %v238 = vld [vmem:[%s1 + $0x6b0] sm:$0xff]
    %v239 = vld [vmem:[%s1 + $0x6b8] sm:$0xff]
    %v240 = vld [vmem:[%s1 + $0x6c0] sm:$0xff]
    %v241 = vld [vmem:[%s1 + $0x6c8] sm:$0xff]
    %v242 = vld [vmem:[%s1 + $0x6d0] sm:$0xff]
    %v243 = vld [vmem:[%s1 + $0x6d8] sm:$0xff]
    %v244 = vld [vmem:[%s1 + $0x6e0] sm:$0xff]
    %v245 = vld [vmem:[%s1 + $0x6e8] sm:$0xff]
    %v246 = vld [vmem:[%s1 + $0x6f0] sm:$0xff]
    %v247 = vld [vmem:[%s1 + $0x6f8] sm:$0xff]
    %v248 = vld [vmem:[%s1 + $0x700] sm:$0xff]
    %v249 = vld [vmem:[%s1 + $0x708] sm:$0xff]
    %v250 = vld [vmem:[%s1 + $0x710] sm:$0xff]
    %v251 = vld [vmem:[%s1 + $0x718] sm:$0xff]
    %v252 = vld [vmem:[%s1 + $0x720] sm:$0xff]
    %v253 = vld [vmem:[%s1 + $0x728] sm:$0xff]
    %v254 = vld [vmem:[%s1 + $0x730] sm:$0xff]
    %v255 = vld [vmem:[%s1 + $0x738] sm:$0xff]
    %v256 = vld [vmem:[%s1 + $0x740] sm:$0xff]
    %v257 = vld [vmem:[%s1 + $0x748] sm:$0xff]
    %v258 = vld [vmem:[%s1 + $0x750] sm:$0xff]
    %v259 = vld [vmem:[%s1 + $0x758] sm:$0xff]
    %v260 = vld [vmem:[%s1 + $0x760] sm:$0xff]
    %v261 = vld [vmem:[%s1 + $0x768] sm:$0xff]
    %v262 = vld [vmem:[%s1 + $0x770] sm:$0xff]
    %v263 = vld [vmem:[%s1 + $0x778] sm:$0xff]
    %v264 = vld [vmem:[%s1 + $0x780] sm:$0xff]
    %v265 = vld [vmem:[%s1 + $0x788] sm:$0xff]
    %v266 = vld [vmem:[%s1 + $0x790] sm:$0xff]
    %v267 = vld [vmem:[%s1 + $0x798] sm:$0xff]
    %v268 = vld [vmem:[%s1 + $0x7a0] sm:$0xff]
    %v269 = vld [vmem:[%s1 + $0x7a8] sm:$0xff]
    %v270 = vld [vmem:[%s1 + $0x7b0] sm:$0xff]
    %v271 = vld [vmem:[%s1 + $0x7b8] sm:$0xff]
    %v272 = vld [vmem:[%s1 + $0x7c0] sm:$0xff]
    %v273 = vld [vmem:[%s1 + $0x7c8] sm:$0xff]
    %v274 = vld [vmem:[%s1 + $0x7d0] sm:$0xff]
    %v275 = vld [vmem:[%s1 + $0x7d8] sm:$0xff]
    %v276 = vld [vmem:[%s1 + $0x7e0] sm:$0xff]
    %v277 = vld [vmem:[%s1 + $0x7e8] sm:$0xff]
    %v278 = vld [vmem:[%s1 + $0x7f0] sm:$0xff]
    %v279 = vld [vmem:[%s1 + $0x7f8] sm:$0xff]
    %v280 = vld [vmem:[%s1 + $0x800] sm:$0xff]
    %v281 = vld [vmem:[%s1 + $0x808] sm:$0xff]
    %v282 = vld [vmem:[%s1 + $0x810] sm:$0xff]
    %v283 = vld [vmem:[%s1 + $0x818] sm:$0xff]
    %v284 = vld [vmem:[%s1 + $0x820] sm:$0xff]
    %v285 = vld [vmem:[%s1 + $0x828] sm:$0xff]
    %v286 = vld [vmem:[%s1 + $0x830] sm:$0xff]
    %v287 = vld [vmem:[%s1 + $0x838] sm:$0xff]
    %v288 = vld [vmem:[%s1 + $0x840] sm:$0xff]
    %v289 = vld [vmem:[%s1 + $0x848] sm:$0xff]
    %v290 = vld [vmem:[%s1 + $0x850] sm:$0xff]
    %v291 = vld [vmem:[%s1 + $0x858] sm:$0xff]
    %v292 = vld [vmem:[%s1 + $0x860] sm:$0xff]
    %v293 = vld [vmem:[%s1 + $0x868] sm:$0xff]
    %v294 = vld [vmem:[%s1 + $0x870] sm:$0xff]
    %v295 = vld [vmem:[%s1 + $0x878] sm:$0xff]
    %v296 = vld [vmem:[%s1 + $0x880] sm:$0xff]
    %v297 = vld [vmem:[%s1 + $0x888] sm:$0xff]
    %v298 = vld [vmem:[%s1 + $0x890] sm:$0xff]
    %v299 = vld [vmem:[%s1 + $0x898] sm:$0xff]
    %v300 = vld [vmem:[%s1 + $0x8a0] sm:$0xff]
    %v301 = vld [vmem:[%s1 + $0x8a8] sm:$0xff]
    %v302 = vld [vmem:[%s1 + $0x8b0] sm:$0xff]
    %v303 = vld [vmem:[%s1 + $0x8b8] sm:$0xff]
    %v304 = vld [vmem:[%s1 + $0x8c0] sm:$0xff]
    %v305 = vld [vmem:[%s1 + $0x8c8] sm:$0xff]
    %v306 = vld [vmem:[%s1 + $0x8d0] sm:$0xff]
    %v307 = vld [vmem:[%s1 + $0x8d8] sm:$0xff]
    %v308 = vld [vmem:[%s1 + $0x8e0] sm:$0xff]
    %v309 = vld [vmem:[%s1 + $0x8e8] sm:$0xff]
    %v310 = vld [vmem:[%s1 + $0x8f0] sm:$0xff]
    %v311 = vld [vmem:[%s1 + $0x8f8] sm:$0xff]
    %v312 = vld [vmem:[%s2] sm:$0x3]
    %v314 = vlaneseq
    %v315 = vshrl.u32 %v314, 7
    %v316 = vsub.s32 0, %v315
    %v317 = vrot.slane %v312, %v316
    %v318 = vlaneseq
    %v319 = vshrl.u32 %v318, 7
    %v320 = vsub.s32 1, %v319
    %v321 = vrot.slane %v312, %v320
    %v327 = vcombine.high %v21, %v21
    %v329 = vunpack.c.l.s4 1966171168
    %v330 = vunpack.c.0.s8 %v329
    %v331 = vlaneseq
    %v332 = vshrl.u32 %v331, 7
    %v333 = vsub.s32 %v330, %v332
    %v334 = vrot.slane %v21, %v333
    %v336 = vunpack.c.l.s4 1966171168
    %v337 = vunpack.c.0.s8 %v336
    %v338 = vlaneseq
    %v339 = vshrl.u32 %v338, 7
    %v340 = vsub.s32 %v337, %v339
    %v341 = vrot.slane %v327, %v340
    %v342 = vcombine.high %v334, %v334
    %v343 = vcombine.high %v341, %v341
    %v345 = vunpack.c.l.s4 1966171168
    %v346 = vunpack.c.0.s8 %v345
    %v347 = vlaneseq
    %v348 = vshrl.u32 %v347, 7
    %v349 = vsub.s32 %v346, %v348
    %v350 = vrot.slane %v334, %v349
    %v352 = vunpack.c.l.s4 1966171168
    %v353 = vunpack.c.0.s8 %v352
    %v354 = vlaneseq
    %v355 = vshrl.u32 %v354, 7
    %v356 = vsub.s32 %v353, %v355
    %v357 = vrot.slane %v341, %v356
    %v359 = vunpack.c.l.s4 1966171168
    %v360 = vunpack.c.0.s8 %v359
    %v361 = vlaneseq
    %v362 = vshrl.u32 %v361, 7
    %v363 = vsub.s32 %v360, %v362
    %v364 = vrot.slane %v342, %v363
    %v366 = vunpack.c.l.s4 1966171168
    %v367 = vunpack.c.0.s8 %v366
    %v368 = vlaneseq
    %v369 = vshrl.u32 %v368, 7
    %v370 = vsub.s32 %v367, %v369
    %v371 = vrot.slane %v343, %v370
    %v372 = vcombine.high %v350, %v350
    %v373 = vcombine.high %v357, %v357
    %v374 = vcombine.high %v364, %v364
    %v375 = vcombine.high %v371, %v371
    %v376 = vcombine.high %v22, %v22
    %v378 = vunpack.c.l.s4 1966171168
    %v379 = vunpack.c.0.s8 %v378
    %v380 = vlaneseq
    %v381 = vshrl.u32 %v380, 7
    %v382 = vsub.s32 %v379, %v381
    %v383 = vrot.slane %v22, %v382
    %v385 = vunpack.c.l.s4 1966171168
    %v386 = vunpack.c.0.s8 %v385
    %v387 = vlaneseq
    %v388 = vshrl.u32 %v387, 7
    %v389 = vsub.s32 %v386, %v388
    %v390 = vrot.slane %v376, %v389
    %v391 = vcombine.high %v383, %v383
    %v392 = vcombine.high %v390, %v390
    %v394 = vunpack.c.l.s4 1966171168
    %v395 = vunpack.c.0.s8 %v394
    %v396 = vlaneseq
    %v397 = vshrl.u32 %v396, 7
    %v398 = vsub.s32 %v395, %v397
    %v399 = vrot.slane %v383, %v398
    %v401 = vunpack.c.l.s4 1966171168
    %v402 = vunpack.c.0.s8 %v401
    %v403 = vlaneseq
    %v404 = vshrl.u32 %v403, 7
    %v405 = vsub.s32 %v402, %v404
    %v406 = vrot.slane %v390, %v405
    %v408 = vunpack.c.l.s4 1966171168
    %v409 = vunpack.c.0.s8 %v408
    %v410 = vlaneseq
    %v411 = vshrl.u32 %v410, 7
    %v412 = vsub.s32 %v409, %v411
    %v413 = vrot.slane %v391, %v412
    %v415 = vunpack.c.l.s4 1966171168
    %v416 = vunpack.c.0.s8 %v415
    %v417 = vlaneseq
    %v418 = vshrl.u32 %v417, 7
    %v419 = vsub.s32 %v416, %v418
    %v420 = vrot.slane %v392, %v419
    %v421 = vcombine.high %v399, %v399
    %v422 = vcombine.high %v406, %v406
    %v423 = vcombine.high %v413, %v413
    %v424 = vcombine.high %v420, %v420
    %v426 = vunpack.c.l.s4 1966171168
    %v427 = vunpack.c.0.s8 %v426
    %v428 = vlaneseq
    %v429 = vshrl.u32 %v428, 7
    %v430 = vsub.s32 %v427, %v429
    %v431 = vrot.slane %v23, %v430
    %v432 = vcombine.high %v431, %v431
    %v434 = vunpack.c.l.s4 1966171168
    %v435 = vunpack.c.0.s8 %v434
    %v436 = vlaneseq
    %v437 = vshrl.u32 %v436, 7
    %v438 = vsub.s32 %v435, %v437
    %v439 = vrot.slane %v431, %v438
    %v441 = vunpack.c.l.s4 1966171168
    %v442 = vunpack.c.0.s8 %v441
    %v443 = vlaneseq
    %v444 = vshrl.u32 %v443, 7
    %v445 = vsub.s32 %v442, %v444
    %v446 = vrot.slane %v432, %v445
    %v753 = vunpack.c.l.b16 %v24
    %v754 = vunpack.c.h.b16 %v24
    %v755 = vunpack.c.l.b16 %v25
    %v756 = vunpack.c.h.b16 %v25
    %v757 = vunpack.c.l.b16 %v26
    %v758 = vunpack.c.h.b16 %v26
    %v759 = vunpack.c.l.b16 %v27
    %v760 = vunpack.c.h.b16 %v27
    %v761 = vunpack.c.l.b16 %v28
    %v762 = vunpack.c.h.b16 %v28
    %v763 = vunpack.c.l.b16 %v29
    %v764 = vunpack.c.h.b16 %v29
    %v765 = vunpack.c.l.b16 %v30
    %v766 = vunpack.c.h.b16 %v30
    %v767 = vunpack.c.l.b16 %v31
    %v768 = vunpack.c.h.b16 %v31
    %v769 = vunpack.c.l.b16 %v32
    %v770 = vunpack.c.h.b16 %v32
    %v771 = vunpack.c.l.b16 %v33
    %v772 = vunpack.c.h.b16 %v33
    %v773 = vunpack.c.l.b16 %v34
    %v774 = vunpack.c.h.b16 %v34
    %v775 = vunpack.c.l.b16 %v35
    %v776 = vunpack.c.h.b16 %v35
    %v777 = vunpack.c.l.b16 %v36
    %v778 = vunpack.c.h.b16 %v36
    %v779 = vunpack.c.l.b16 %v37
    %v780 = vunpack.c.h.b16 %v37
    %v781 = vunpack.c.l.b16 %v38
    %v782 = vunpack.c.h.b16 %v38
    %v783 = vunpack.c.l.b16 %v39
    %v784 = vunpack.c.h.b16 %v39
    %v785 = vunpack.c.l.b16 %v40
    %v786 = vunpack.c.h.b16 %v40
    %v787 = vunpack.c.l.b16 %v41
    %v788 = vunpack.c.h.b16 %v41
    %v789 = vunpack.c.l.b16 %v42
    %v790 = vunpack.c.h.b16 %v42
    %v791 = vunpack.c.l.b16 %v43
    %v792 = vunpack.c.h.b16 %v43
    %v793 = vunpack.c.l.b16 %v44
    %v794 = vunpack.c.h.b16 %v44
    %v795 = vunpack.c.l.b16 %v45
    %v796 = vunpack.c.h.b16 %v45
    %v797 = vunpack.c.l.b16 %v46
    %v798 = vunpack.c.h.b16 %v46
    %v799 = vunpack.c.l.b16 %v47
    %v800 = vunpack.c.h.b16 %v47
    %v801 = vunpack.c.l.b16 %v48
    %v802 = vunpack.c.h.b16 %v48
    %v803 = vunpack.c.l.b16 %v49
    %v804 = vunpack.c.h.b16 %v49
    %v805 = vunpack.c.l.b16 %v50
    %v806 = vunpack.c.h.b16 %v50
    %v807 = vunpack.c.l.b16 %v51
    %v808 = vunpack.c.h.b16 %v51
    %v809 = vunpack.c.l.b16 %v52
    %v810 = vunpack.c.h.b16 %v52
    %v811 = vunpack.c.l.b16 %v53
    %v812 = vunpack.c.h.b16 %v53
    %v813 = vunpack.c.l.b16 %v54
    %v814 = vunpack.c.h.b16 %v54
    %v815 = vunpack.c.l.b16 %v55
    %v816 = vunpack.c.h.b16 %v55
    %v817 = vunpack.c.l.b16 %v56
    %v818 = vunpack.c.h.b16 %v56
    %v819 = vunpack.c.l.b16 %v57
    %v820 = vunpack.c.h.b16 %v57
    %v821 = vunpack.c.l.b16 %v58
    %v822 = vunpack.c.h.b16 %v58
    %v823 = vunpack.c.l.b16 %v59
    %v824 = vunpack.c.h.b16 %v59
    %v825 = vunpack.c.l.b16 %v60
    %v826 = vunpack.c.h.b16 %v60
    %v827 = vunpack.c.l.b16 %v61
    %v828 = vunpack.c.h.b16 %v61
    %v829 = vunpack.c.l.b16 %v62
    %v830 = vunpack.c.h.b16 %v62
    %v831 = vunpack.c.l.b16 %v63
    %v832 = vunpack.c.h.b16 %v63
    %v833 = vunpack.c.l.b16 %v64
    %v834 = vunpack.c.h.b16 %v64
    %v835 = vunpack.c.l.b16 %v65
    %v836 = vunpack.c.h.b16 %v65
    %v837 = vunpack.c.l.b16 %v66
    %v838 = vunpack.c.h.b16 %v66
    %v839 = vunpack.c.l.b16 %v67
    %v840 = vunpack.c.h.b16 %v67
    %v841 = vunpack.c.l.b16 %v68
    %v842 = vunpack.c.h.b16 %v68
    %v843 = vunpack.c.l.b16 %v69
    %v844 = vunpack.c.h.b16 %v69
    %v845 = vunpack.c.l.b16 %v70
    %v846 = vunpack.c.h.b16 %v70
    %v847 = vunpack.c.l.b16 %v71
    %v848 = vunpack.c.h.b16 %v71
    %v849 = vunpack.c.l.b16 %v72
    %v850 = vunpack.c.h.b16 %v72
    %v851 = vunpack.c.l.b16 %v73
    %v852 = vunpack.c.h.b16 %v73
    %v853 = vunpack.c.l.b16 %v74
    %v854 = vunpack.c.h.b16 %v74
    %v855 = vunpack.c.l.b16 %v75
    %v856 = vunpack.c.h.b16 %v75
    %v857 = vunpack.c.l.b16 %v76
    %v858 = vunpack.c.h.b16 %v76
    %v859 = vunpack.c.l.b16 %v77
    %v860 = vunpack.c.h.b16 %v77
    %v861 = vunpack.c.l.b16 %v78
    %v862 = vunpack.c.h.b16 %v78
    %v863 = vunpack.c.l.b16 %v79
    %v864 = vunpack.c.h.b16 %v79
    %v865 = vunpack.c.l.b16 %v80
    %v866 = vunpack.c.h.b16 %v80
    %v867 = vunpack.c.l.b16 %v81
    %v868 = vunpack.c.h.b16 %v81
    %v869 = vunpack.c.l.b16 %v82
    %v870 = vunpack.c.h.b16 %v82
    %v871 = vunpack.c.l.b16 %v83
    %v872 = vunpack.c.h.b16 %v83
    %v873 = vunpack.c.l.b16 %v84
    %v874 = vunpack.c.h.b16 %v84
    %v875 = vunpack.c.l.b16 %v85
    %v876 = vunpack.c.h.b16 %v85
    %v877 = vunpack.c.l.b16 %v86
    %v878 = vunpack.c.h.b16 %v86
    %v879 = vunpack.c.l.b16 %v87
    %v880 = vunpack.c.h.b16 %v87
    %v881 = vunpack.c.l.b16 %v88
    %v882 = vunpack.c.h.b16 %v88
    %v883 = vunpack.c.l.b16 %v89
    %v884 = vunpack.c.h.b16 %v89
    %v885 = vunpack.c.l.b16 %v90
    %v886 = vunpack.c.h.b16 %v90
    %v887 = vunpack.c.l.b16 %v91
    %v888 = vunpack.c.h.b16 %v91
    %v889 = vunpack.c.l.b16 %v92
    %v890 = vunpack.c.h.b16 %v92
    %v891 = vunpack.c.l.b16 %v93
    %v892 = vunpack.c.h.b16 %v93
    %v893 = vunpack.c.l.b16 %v94
    %v894 = vunpack.c.h.b16 %v94
    %v895 = vunpack.c.l.b16 %v95
    %v896 = vunpack.c.h.b16 %v95
    %v897 = vunpack.c.l.b16 %v96
    %v898 = vunpack.c.h.b16 %v96
    %v899 = vunpack.c.l.b16 %v97
    %v900 = vunpack.c.h.b16 %v97
    %v901 = vunpack.c.l.b16 %v98
    %v902 = vunpack.c.h.b16 %v98
    %v903 = vunpack.c.l.b16 %v99
    %v904 = vunpack.c.h.b16 %v99
    %v905 = vunpack.c.l.b16 %v100
    %v906 = vunpack.c.h.b16 %v100
    %v907 = vunpack.c.l.b16 %v101
    %v908 = vunpack.c.h.b16 %v101
    %v909 = vunpack.c.l.b16 %v102
    %v910 = vunpack.c.h.b16 %v102
    %v911 = vunpack.c.l.b16 %v103
    %v912 = vunpack.c.h.b16 %v103
    %v913 = vunpack.c.l.b16 %v104
    %v914 = vunpack.c.h.b16 %v104
    %v915 = vunpack.c.l.b16 %v105
    %v916 = vunpack.c.h.b16 %v105
    %v917 = vunpack.c.l.b16 %v106
    %v918 = vunpack.c.h.b16 %v106
    %v919 = vunpack.c.l.b16 %v107
    %v920 = vunpack.c.h.b16 %v107
    %v921 = vunpack.c.l.b16 %v108
    %v922 = vunpack.c.h.b16 %v108
    %v923 = vunpack.c.l.b16 %v109
    %v924 = vunpack.c.h.b16 %v109
    %v925 = vunpack.c.l.b16 %v110
    %v926 = vunpack.c.h.b16 %v110
    %v927 = vunpack.c.l.b16 %v111
    %v928 = vunpack.c.h.b16 %v111
    %v929 = vunpack.c.l.b16 %v112
    %v930 = vunpack.c.h.b16 %v112
    %v931 = vunpack.c.l.b16 %v113
    %v932 = vunpack.c.h.b16 %v113
    %v933 = vunpack.c.l.b16 %v114
    %v934 = vunpack.c.h.b16 %v114
    %v935 = vunpack.c.l.b16 %v115
    %v936 = vunpack.c.h.b16 %v115
    %v937 = vunpack.c.l.b16 %v116
    %v938 = vunpack.c.h.b16 %v116
    %v939 = vunpack.c.l.b16 %v117
    %v940 = vunpack.c.h.b16 %v117
    %v941 = vunpack.c.l.b16 %v118
    %v942 = vunpack.c.h.b16 %v118
    %v943 = vunpack.c.l.b16 %v119
    %v944 = vunpack.c.h.b16 %v119
    %v945 = vunpack.c.l.b16 %v120
    %v946 = vunpack.c.h.b16 %v120
    %v947 = vunpack.c.l.b16 %v121
    %v948 = vunpack.c.h.b16 %v121
    %v949 = vunpack.c.l.b16 %v122
    %v950 = vunpack.c.h.b16 %v122
    %v951 = vunpack.c.l.b16 %v123
    %v952 = vunpack.c.h.b16 %v123
    %v953 = vunpack.c.l.b16 %v124
    %v954 = vunpack.c.h.b16 %v124
    %v955 = vunpack.c.l.b16 %v125
    %v956 = vunpack.c.h.b16 %v125
    %v957 = vunpack.c.l.b16 %v126
    %v958 = vunpack.c.h.b16 %v126
    %v959 = vunpack.c.l.b16 %v127
    %v960 = vunpack.c.h.b16 %v127
    %v961 = vunpack.c.l.b16 %v128
    %v962 = vunpack.c.h.b16 %v128
    %v963 = vunpack.c.l.b16 %v129
    %v964 = vunpack.c.h.b16 %v129
    %v965 = vunpack.c.l.b16 %v130
    %v966 = vunpack.c.h.b16 %v130
    %v967 = vunpack.c.l.b16 %v131
    %v968 = vunpack.c.h.b16 %v131
    %v969 = vunpack.c.l.b16 %v132
    %v970 = vunpack.c.h.b16 %v132
    %v971 = vunpack.c.l.b16 %v133
    %v972 = vunpack.c.h.b16 %v133
    %v973 = vunpack.c.l.b16 %v134
    %v974 = vunpack.c.h.b16 %v134
    %v975 = vunpack.c.l.b16 %v135
    %v976 = vunpack.c.h.b16 %v135
    %v977 = vunpack.c.l.b16 %v136
    %v978 = vunpack.c.h.b16 %v136
    %v979 = vunpack.c.l.b16 %v137
    %v980 = vunpack.c.h.b16 %v137
    %v981 = vunpack.c.l.b16 %v138
    %v982 = vunpack.c.h.b16 %v138
    %v983 = vunpack.c.l.b16 %v139
    %v984 = vunpack.c.h.b16 %v139
    %v985 = vunpack.c.l.b16 %v140
    %v986 = vunpack.c.h.b16 %v140
    %v987 = vunpack.c.l.b16 %v141
    %v988 = vunpack.c.h.b16 %v141
    %v989 = vunpack.c.l.b16 %v142
    %v990 = vunpack.c.h.b16 %v142
    %v991 = vunpack.c.l.b16 %v143
    %v992 = vunpack.c.h.b16 %v143
    %v993 = vunpack.c.l.b16 %v144
    %v994 = vunpack.c.h.b16 %v144
    %v995 = vunpack.c.l.b16 %v145
    %v996 = vunpack.c.h.b16 %v145
    %v997 = vunpack.c.l.b16 %v146
    %v998 = vunpack.c.h.b16 %v146
    %v999 = vunpack.c.l.b16 %v147
    %v1000 = vunpack.c.h.b16 %v147
    %v1001 = vunpack.c.l.b16 %v148
    %v1002 = vunpack.c.h.b16 %v148
    %v1003 = vunpack.c.l.b16 %v149
    %v1004 = vunpack.c.h.b16 %v149
    %v1005 = vunpack.c.l.b16 %v150
    %v1006 = vunpack.c.h.b16 %v150
    %v1007 = vunpack.c.l.b16 %v151
    %v1008 = vunpack.c.h.b16 %v151
    %v1009 = vunpack.c.l.b16 %v152
    %v1010 = vunpack.c.h.b16 %v152
    %v1011 = vunpack.c.l.b16 %v153
    %v1012 = vunpack.c.h.b16 %v153
    %v1013 = vunpack.c.l.b16 %v154
    %v1014 = vunpack.c.h.b16 %v154
    %v1015 = vunpack.c.l.b16 %v155
    %v1016 = vunpack.c.h.b16 %v155
    %v1017 = vunpack.c.l.b16 %v156
    %v1018 = vunpack.c.h.b16 %v156
    %v1019 = vunpack.c.l.b16 %v157
    %v1020 = vunpack.c.h.b16 %v157
    %v1021 = vunpack.c.l.b16 %v158
    %v1022 = vunpack.c.h.b16 %v158
    %v1023 = vunpack.c.l.b16 %v159
    %v1024 = vunpack.c.h.b16 %v159
    %v1025 = vunpack.c.l.b16 %v160
    %v1026 = vunpack.c.h.b16 %v160
    %v1027 = vunpack.c.l.b16 %v161
    %v1028 = vunpack.c.h.b16 %v161
    %v1029 = vunpack.c.l.b16 %v162
    %v1030 = vunpack.c.h.b16 %v162
    %v1031 = vunpack.c.l.b16 %v163
    %v1032 = vunpack.c.h.b16 %v163
    %v1033 = vunpack.c.l.b16 %v164
    %v1034 = vunpack.c.h.b16 %v164
    %v1035 = vunpack.c.l.b16 %v165
    %v1036 = vunpack.c.h.b16 %v165
    %v1037 = vunpack.c.l.b16 %v166
    %v1038 = vunpack.c.h.b16 %v166
    %v1039 = vunpack.c.l.b16 %v167
    %v1040 = vunpack.c.h.b16 %v167
    %v1041 = vunpack.c.l.b16 %v168
    %v1042 = vunpack.c.h.b16 %v168
    %v1043 = vunpack.c.l.b16 %v169
    %v1044 = vunpack.c.h.b16 %v169
    %v1045 = vunpack.c.l.b16 %v170
    %v1046 = vunpack.c.h.b16 %v170
    %v1047 = vunpack.c.l.b16 %v171
    %v1048 = vunpack.c.h.b16 %v171
    %v1049 = vunpack.c.l.b16 %v172
    %v1050 = vunpack.c.h.b16 %v172
    %v1051 = vunpack.c.l.b16 %v173
    %v1052 = vunpack.c.h.b16 %v173
    %v1053 = vunpack.c.l.b16 %v174
    %v1054 = vunpack.c.h.b16 %v174
    %v1055 = vunpack.c.l.b16 %v175
    %v1056 = vunpack.c.h.b16 %v175
    %v1057 = vunpack.c.l.b16 %v176
    %v1058 = vunpack.c.h.b16 %v176
    %v1059 = vunpack.c.l.b16 %v177
    %v1060 = vunpack.c.h.b16 %v177
    %v1061 = vunpack.c.l.b16 %v178
    %v1062 = vunpack.c.h.b16 %v178
    %v1063 = vunpack.c.l.b16 %v179
    %v1064 = vunpack.c.h.b16 %v179
    %v1065 = vunpack.c.l.b16 %v180
    %v1066 = vunpack.c.h.b16 %v180
    %v1067 = vunpack.c.l.b16 %v181
    %v1068 = vunpack.c.h.b16 %v181
    %v1069 = vunpack.c.l.b16 %v182
    %v1070 = vunpack.c.h.b16 %v182
    %v1071 = vunpack.c.l.b16 %v183
    %v1072 = vunpack.c.h.b16 %v183
    %v1073 = vunpack.c.l.b16 %v184
    %v1074 = vunpack.c.h.b16 %v184
    %v1075 = vunpack.c.l.b16 %v185
    %v1076 = vunpack.c.h.b16 %v185
    %v1077 = vunpack.c.l.b16 %v186
    %v1078 = vunpack.c.h.b16 %v186
    %v1079 = vunpack.c.l.b16 %v187
    %v1080 = vunpack.c.h.b16 %v187
    %v1081 = vunpack.c.l.b16 %v188
    %v1082 = vunpack.c.h.b16 %v188
    %v1083 = vunpack.c.l.b16 %v189
    %v1084 = vunpack.c.h.b16 %v189
    %v1085 = vunpack.c.l.b16 %v190
    %v1086 = vunpack.c.h.b16 %v190
    %v1087 = vunpack.c.l.b16 %v191
    %v1088 = vunpack.c.h.b16 %v191
    %v1089 = vunpack.c.l.b16 %v192
    %v1090 = vunpack.c.h.b16 %v192
    %v1091 = vunpack.c.l.b16 %v193
    %v1092 = vunpack.c.h.b16 %v193
    %v1093 = vunpack.c.l.b16 %v194
    %v1094 = vunpack.c.h.b16 %v194
    %v1095 = vunpack.c.l.b16 %v195
    %v1096 = vunpack.c.h.b16 %v195
    %v1097 = vunpack.c.l.b16 %v196
    %v1098 = vunpack.c.h.b16 %v196
    %v1099 = vunpack.c.l.b16 %v197
    %v1100 = vunpack.c.h.b16 %v197
    %v1101 = vunpack.c.l.b16 %v198
    %v1102 = vunpack.c.h.b16 %v198
    %v1103 = vunpack.c.l.b16 %v199
    %v1104 = vunpack.c.h.b16 %v199
    %v1105 = vunpack.c.l.b16 %v200
    %v1106 = vunpack.c.h.b16 %v200
    %v1107 = vunpack.c.l.b16 %v201
    %v1108 = vunpack.c.h.b16 %v201
    %v1109 = vunpack.c.l.b16 %v202
    %v1110 = vunpack.c.h.b16 %v202
    %v1111 = vunpack.c.l.b16 %v203
    %v1112 = vunpack.c.h.b16 %v203
    %v1113 = vunpack.c.l.b16 %v204
    %v1114 = vunpack.c.h.b16 %v204
    %v1115 = vunpack.c.l.b16 %v205
    %v1116 = vunpack.c.h.b16 %v205
    %v1117 = vunpack.c.l.b16 %v206
    %v1118 = vunpack.c.h.b16 %v206
    %v1119 = vunpack.c.l.b16 %v207
    %v1120 = vunpack.c.h.b16 %v207
    %v1121 = vunpack.c.l.b16 %v208
    %v1122 = vunpack.c.h.b16 %v208
    %v1123 = vunpack.c.l.b16 %v209
    %v1124 = vunpack.c.h.b16 %v209
    %v1125 = vunpack.c.l.b16 %v210
    %v1126 = vunpack.c.h.b16 %v210
    %v1127 = vunpack.c.l.b16 %v211
    %v1128 = vunpack.c.h.b16 %v211
    %v1129 = vunpack.c.l.b16 %v212
    %v1130 = vunpack.c.h.b16 %v212
    %v1131 = vunpack.c.l.b16 %v213
    %v1132 = vunpack.c.h.b16 %v213
    %v1133 = vunpack.c.l.b16 %v214
    %v1134 = vunpack.c.h.b16 %v214
    %v1135 = vunpack.c.l.b16 %v215
    %v1136 = vunpack.c.h.b16 %v215
    %v1137 = vunpack.c.l.b16 %v216
    %v1138 = vunpack.c.h.b16 %v216
    %v1139 = vunpack.c.l.b16 %v217
    %v1140 = vunpack.c.h.b16 %v217
    %v1141 = vunpack.c.l.b16 %v218
    %v1142 = vunpack.c.h.b16 %v218
    %v1143 = vunpack.c.l.b16 %v219
    %v1144 = vunpack.c.h.b16 %v219
    %v1145 = vunpack.c.l.b16 %v220
    %v1146 = vunpack.c.h.b16 %v220
    %v1147 = vunpack.c.l.b16 %v221
    %v1148 = vunpack.c.h.b16 %v221
    %v1149 = vunpack.c.l.b16 %v222
    %v1150 = vunpack.c.h.b16 %v222
    %v1151 = vunpack.c.l.b16 %v223
    %v1152 = vunpack.c.h.b16 %v223
    %v1153 = vunpack.c.l.b16 %v224
    %v1154 = vunpack.c.h.b16 %v224
    %v1155 = vunpack.c.l.b16 %v225
    %v1156 = vunpack.c.h.b16 %v225
    %v1157 = vunpack.c.l.b16 %v226
    %v1158 = vunpack.c.h.b16 %v226
    %v1159 = vunpack.c.l.b16 %v227
    %v1160 = vunpack.c.h.b16 %v227
    %v1161 = vunpack.c.l.b16 %v228
    %v1162 = vunpack.c.h.b16 %v228
    %v1163 = vunpack.c.l.b16 %v229
    %v1164 = vunpack.c.h.b16 %v229
    %v1165 = vunpack.c.l.b16 %v230
    %v1166 = vunpack.c.h.b16 %v230
    %v1167 = vunpack.c.l.b16 %v231
    %v1168 = vunpack.c.h.b16 %v231
    %v1169 = vunpack.c.l.b16 %v232
    %v1170 = vunpack.c.h.b16 %v232
    %v1171 = vunpack.c.l.b16 %v233
    %v1172 = vunpack.c.h.b16 %v233
    %v1173 = vunpack.c.l.b16 %v234
    %v1174 = vunpack.c.h.b16 %v234
    %v1175 = vunpack.c.l.b16 %v235
    %v1176 = vunpack.c.h.b16 %v235
    %v1177 = vunpack.c.l.b16 %v236
    %v1178 = vunpack.c.h.b16 %v236
    %v1179 = vunpack.c.l.b16 %v237
    %v1180 = vunpack.c.h.b16 %v237
    %v1181 = vunpack.c.l.b16 %v238
    %v1182 = vunpack.c.h.b16 %v238
    %v1183 = vunpack.c.l.b16 %v239
    %v1184 = vunpack.c.h.b16 %v239
    %v1185 = vunpack.c.l.b16 %v240
    %v1186 = vunpack.c.h.b16 %v240
    %v1187 = vunpack.c.l.b16 %v241
    %v1188 = vunpack.c.h.b16 %v241
    %v1189 = vunpack.c.l.b16 %v242
    %v1190 = vunpack.c.h.b16 %v242
    %v1191 = vunpack.c.l.b16 %v243
    %v1192 = vunpack.c.h.b16 %v243
    %v1193 = vunpack.c.l.b16 %v244
    %v1194 = vunpack.c.h.b16 %v244
    %v1195 = vunpack.c.l.b16 %v245
    %v1196 = vunpack.c.h.b16 %v245
    %v1197 = vunpack.c.l.b16 %v246
    %v1198 = vunpack.c.h.b16 %v246
    %v1199 = vunpack.c.l.b16 %v247
    %v1200 = vunpack.c.h.b16 %v247
    %v1201 = vunpack.c.l.b16 %v248
    %v1202 = vunpack.c.h.b16 %v248
    %v1203 = vunpack.c.l.b16 %v249
    %v1204 = vunpack.c.h.b16 %v249
    %v1205 = vunpack.c.l.b16 %v250
    %v1206 = vunpack.c.h.b16 %v250
    %v1207 = vunpack.c.l.b16 %v251
    %v1208 = vunpack.c.h.b16 %v251
    %v1209 = vunpack.c.l.b16 %v252
    %v1210 = vunpack.c.h.b16 %v252
    %v1211 = vunpack.c.l.b16 %v253
    %v1212 = vunpack.c.h.b16 %v253
    %v1213 = vunpack.c.l.b16 %v254
    %v1214 = vunpack.c.h.b16 %v254
    %v1215 = vunpack.c.l.b16 %v255
    %v1216 = vunpack.c.h.b16 %v255
    %v1217 = vunpack.c.l.b16 %v256
    %v1218 = vunpack.c.h.b16 %v256
    %v1219 = vunpack.c.l.b16 %v257
    %v1220 = vunpack.c.h.b16 %v257
    %v1221 = vunpack.c.l.b16 %v258
    %v1222 = vunpack.c.h.b16 %v258
    %v1223 = vunpack.c.l.b16 %v259
    %v1224 = vunpack.c.h.b16 %v259
    %v1225 = vunpack.c.l.b16 %v260
    %v1226 = vunpack.c.h.b16 %v260
    %v1227 = vunpack.c.l.b16 %v261
    %v1228 = vunpack.c.h.b16 %v261
    %v1229 = vunpack.c.l.b16 %v262
    %v1230 = vunpack.c.h.b16 %v262
    %v1231 = vunpack.c.l.b16 %v263
    %v1232 = vunpack.c.h.b16 %v263
    %v1233 = vunpack.c.l.b16 %v264
    %v1234 = vunpack.c.h.b16 %v264
    %v1235 = vunpack.c.l.b16 %v265
    %v1236 = vunpack.c.h.b16 %v265
    %v1237 = vunpack.c.l.b16 %v266
    %v1238 = vunpack.c.h.b16 %v266
    %v1239 = vunpack.c.l.b16 %v267
    %v1240 = vunpack.c.h.b16 %v267
    %v1241 = vunpack.c.l.b16 %v268
    %v1242 = vunpack.c.h.b16 %v268
    %v1243 = vunpack.c.l.b16 %v269
    %v1244 = vunpack.c.h.b16 %v269
    %v1245 = vunpack.c.l.b16 %v270
    %v1246 = vunpack.c.h.b16 %v270
    %v1247 = vunpack.c.l.b16 %v271
    %v1248 = vunpack.c.h.b16 %v271
    %v1249 = vunpack.c.l.b16 %v272
    %v1250 = vunpack.c.h.b16 %v272
    %v1251 = vunpack.c.l.b16 %v273
    %v1252 = vunpack.c.h.b16 %v273
    %v1253 = vunpack.c.l.b16 %v274
    %v1254 = vunpack.c.h.b16 %v274
    %v1255 = vunpack.c.l.b16 %v275
    %v1256 = vunpack.c.h.b16 %v275
    %v1257 = vunpack.c.l.b16 %v276
    %v1258 = vunpack.c.h.b16 %v276
    %v1259 = vunpack.c.l.b16 %v277
    %v1260 = vunpack.c.h.b16 %v277
    %v1261 = vunpack.c.l.b16 %v278
    %v1262 = vunpack.c.h.b16 %v278
    %v1263 = vunpack.c.l.b16 %v279
    %v1264 = vunpack.c.h.b16 %v279
    %v1265 = vunpack.c.l.b16 %v280
    %v1266 = vunpack.c.h.b16 %v280
    %v1267 = vunpack.c.l.b16 %v281
    %v1268 = vunpack.c.h.b16 %v281
    %v1269 = vunpack.c.l.b16 %v282
    %v1270 = vunpack.c.h.b16 %v282
    %v1271 = vunpack.c.l.b16 %v283
    %v1272 = vunpack.c.h.b16 %v283
    %v1273 = vunpack.c.l.b16 %v284
    %v1274 = vunpack.c.h.b16 %v284
    %v1275 = vunpack.c.l.b16 %v285
    %v1276 = vunpack.c.h.b16 %v285
    %v1277 = vunpack.c.l.b16 %v286
    %v1278 = vunpack.c.h.b16 %v286
    %v1279 = vunpack.c.l.b16 %v287
    %v1280 = vunpack.c.h.b16 %v287
    %v1281 = vunpack.c.l.b16 %v288
    %v1282 = vunpack.c.h.b16 %v288
    %v1283 = vunpack.c.l.b16 %v289
    %v1284 = vunpack.c.h.b16 %v289
    %v1285 = vunpack.c.l.b16 %v290
    %v1286 = vunpack.c.h.b16 %v290
    %v1287 = vunpack.c.l.b16 %v291
    %v1288 = vunpack.c.h.b16 %v291
    %v1289 = vunpack.c.l.b16 %v292
    %v1290 = vunpack.c.h.b16 %v292
    %v1291 = vunpack.c.l.b16 %v293
    %v1292 = vunpack.c.h.b16 %v293
    %v1293 = vunpack.c.l.b16 %v294
    %v1294 = vunpack.c.h.b16 %v294
    %v1295 = vunpack.c.l.b16 %v295
    %v1296 = vunpack.c.h.b16 %v295
    %v1297 = vunpack.c.l.b16 %v296
    %v1298 = vunpack.c.h.b16 %v296
    %v1299 = vunpack.c.l.b16 %v297
    %v1300 = vunpack.c.h.b16 %v297
    %v1301 = vunpack.c.l.b16 %v298
    %v1302 = vunpack.c.h.b16 %v298
    %v1303 = vunpack.c.l.b16 %v299
    %v1304 = vunpack.c.h.b16 %v299
    %v1305 = vunpack.c.l.b16 %v300
    %v1306 = vunpack.c.h.b16 %v300
    %v1307 = vunpack.c.l.b16 %v301
    %v1308 = vunpack.c.h.b16 %v301
    %v1309 = vunpack.c.l.b16 %v302
    %v1310 = vunpack.c.h.b16 %v302
    %v1311 = vunpack.c.l.b16 %v303
    %v1312 = vunpack.c.h.b16 %v303
    %v1313 = vunpack.c.l.b16 %v304
    %v1314 = vunpack.c.h.b16 %v304
    %v1315 = vunpack.c.l.b16 %v305
    %v1316 = vunpack.c.h.b16 %v305
    %v1317 = vunpack.c.l.b16 %v306
    %v1318 = vunpack.c.h.b16 %v306
    %v1319 = vunpack.c.l.b16 %v307
    %v1320 = vunpack.c.h.b16 %v307
    %v1321 = vunpack.c.l.b16 %v308
    %v1322 = vunpack.c.h.b16 %v308
    %v1323 = vunpack.c.l.b16 %v309
    %v1324 = vunpack.c.h.b16 %v309
    %v1325 = vunpack.c.l.b16 %v310
    %v1326 = vunpack.c.h.b16 %v310
    %v1327 = vunpack.c.l.b16 %v311
    %v1328 = vunpack.c.h.b16 %v311
    %v1329 = vpack.c.b16 %v755, %v753
    %v1330 = vpack.c.b16 %v756, %v754
    %v1331 = vpack.c.b16 %v759, %v757
    %v1332 = vpack.c.b16 %v760, %v758
    %v1333 = vpack.c.b16 %v763, %v761
    %v1334 = vpack.c.b16 %v764, %v762
    %v1335 = vpack.c.b16 %v767, %v765
    %v1336 = vpack.c.b16 %v768, %v766
    %v1337 = vpack.c.b16 %v771, %v769
    %v1338 = vpack.c.b16 %v772, %v770
    %v1339 = vpack.c.b16 %v775, %v773
    %v1340 = vpack.c.b16 %v776, %v774
    %v1341 = vpack.c.b16 %v779, %v777
    %v1342 = vpack.c.b16 %v780, %v778
    %v1343 = vpack.c.b16 %v783, %v781
    %v1344 = vpack.c.b16 %v784, %v782
    %v1345 = vpack.c.b16 %v787, %v785
    %v1346 = vpack.c.b16 %v788, %v786
    %v1347 = vpack.c.b16 %v791, %v789
    %v1348 = vpack.c.b16 %v792, %v790
    %v1349 = vpack.c.b16 %v795, %v793
    %v1350 = vpack.c.b16 %v796, %v794
    %v1351 = vpack.c.b16 %v799, %v797
    %v1352 = vpack.c.b16 %v800, %v798
    %v1353 = vpack.c.b16 %v803, %v801
    %v1354 = vpack.c.b16 %v804, %v802
    %v1355 = vpack.c.b16 %v807, %v805
    %v1356 = vpack.c.b16 %v808, %v806
    %v1357 = vpack.c.b16 %v811, %v809
    %v1358 = vpack.c.b16 %v812, %v810
    %v1359 = vpack.c.b16 %v815, %v813
    %v1360 = vpack.c.b16 %v816, %v814
    %v1361 = vpack.c.b16 %v819, %v817
    %v1362 = vpack.c.b16 %v820, %v818
    %v1363 = vpack.c.b16 %v823, %v821
    %v1364 = vpack.c.b16 %v824, %v822
    %v1365 = vpack.c.b16 %v827, %v825
    %v1366 = vpack.c.b16 %v828, %v826
    %v1367 = vpack.c.b16 %v831, %v829
    %v1368 = vpack.c.b16 %v832, %v830
    %v1369 = vpack.c.b16 %v835, %v833
    %v1370 = vpack.c.b16 %v836, %v834
    %v1371 = vpack.c.b16 %v839, %v837
    %v1372 = vpack.c.b16 %v840, %v838
    %v1373 = vpack.c.b16 %v843, %v841
    %v1374 = vpack.c.b16 %v844, %v842
    %v1375 = vpack.c.b16 %v847, %v845
    %v1376 = vpack.c.b16 %v848, %v846
    %v1377 = vpack.c.b16 %v851, %v849
    %v1378 = vpack.c.b16 %v852, %v850
    %v1379 = vpack.c.b16 %v855, %v853
    %v1380 = vpack.c.b16 %v856, %v854
    %v1381 = vpack.c.b16 %v859, %v857
    %v1382 = vpack.c.b16 %v860, %v858
    %v1383 = vpack.c.b16 %v863, %v861
    %v1384 = vpack.c.b16 %v864, %v862
    %v1385 = vpack.c.b16 %v867, %v865
    %v1386 = vpack.c.b16 %v868, %v866
    %v1387 = vpack.c.b16 %v871, %v869
    %v1388 = vpack.c.b16 %v872, %v870
    %v1389 = vpack.c.b16 %v875, %v873
    %v1390 = vpack.c.b16 %v876, %v874
    %v1391 = vpack.c.b16 %v879, %v877
    %v1392 = vpack.c.b16 %v880, %v878
    %v1393 = vpack.c.b16 %v883, %v881
    %v1394 = vpack.c.b16 %v884, %v882
    %v1395 = vpack.c.b16 %v887, %v885
    %v1396 = vpack.c.b16 %v888, %v886
    %v1397 = vpack.c.b16 %v891, %v889
    %v1398 = vpack.c.b16 %v892, %v890
    %v1399 = vpack.c.b16 %v895, %v893
    %v1400 = vpack.c.b16 %v896, %v894
    %v1401 = vpack.c.b16 %v899, %v897
    %v1402 = vpack.c.b16 %v900, %v898
    %v1403 = vpack.c.b16 %v903, %v901
    %v1404 = vpack.c.b16 %v904, %v902
    %v1405 = vpack.c.b16 %v907, %v905
    %v1406 = vpack.c.b16 %v908, %v906
    %v1407 = vpack.c.b16 %v911, %v909
    %v1408 = vpack.c.b16 %v912, %v910
    %v1409 = vpack.c.b16 %v915, %v913
    %v1410 = vpack.c.b16 %v916, %v914
    %v1411 = vpack.c.b16 %v919, %v917
    %v1412 = vpack.c.b16 %v920, %v918
    %v1413 = vpack.c.b16 %v923, %v921
    %v1414 = vpack.c.b16 %v924, %v922
    %v1415 = vpack.c.b16 %v927, %v925
    %v1416 = vpack.c.b16 %v928, %v926
    %v1417 = vpack.c.b16 %v931, %v929
    %v1418 = vpack.c.b16 %v932, %v930
    %v1419 = vpack.c.b16 %v935, %v933
    %v1420 = vpack.c.b16 %v936, %v934
    %v1421 = vpack.c.b16 %v939, %v937
    %v1422 = vpack.c.b16 %v940, %v938
    %v1423 = vpack.c.b16 %v943, %v941
    %v1424 = vpack.c.b16 %v944, %v942
    %v1425 = vpack.c.b16 %v947, %v945
    %v1426 = vpack.c.b16 %v948, %v946
    %v1427 = vpack.c.b16 %v951, %v949
    %v1428 = vpack.c.b16 %v952, %v950
    %v1429 = vpack.c.b16 %v955, %v953
    %v1430 = vpack.c.b16 %v956, %v954
    %v1431 = vpack.c.b16 %v959, %v957
    %v1432 = vpack.c.b16 %v960, %v958
    %v1433 = vpack.c.b16 %v963, %v961
    %v1434 = vpack.c.b16 %v964, %v962
    %v1435 = vpack.c.b16 %v967, %v965
    %v1436 = vpack.c.b16 %v968, %v966
    %v1437 = vpack.c.b16 %v971, %v969
    %v1438 = vpack.c.b16 %v972, %v970
    %v1439 = vpack.c.b16 %v975, %v973
    %v1440 = vpack.c.b16 %v976, %v974
    %v1441 = vpack.c.b16 %v979, %v977
    %v1442 = vpack.c.b16 %v980, %v978
    %v1443 = vpack.c.b16 %v983, %v981
    %v1444 = vpack.c.b16 %v984, %v982
    %v1445 = vpack.c.b16 %v987, %v985
    %v1446 = vpack.c.b16 %v988, %v986
    %v1447 = vpack.c.b16 %v991, %v989
    %v1448 = vpack.c.b16 %v992, %v990
    %v1449 = vpack.c.b16 %v995, %v993
    %v1450 = vpack.c.b16 %v996, %v994
    %v1451 = vpack.c.b16 %v999, %v997
    %v1452 = vpack.c.b16 %v1000, %v998
    %v1453 = vpack.c.b16 %v1003, %v1001
    %v1454 = vpack.c.b16 %v1004, %v1002
    %v1455 = vpack.c.b16 %v1007, %v1005
    %v1456 = vpack.c.b16 %v1008, %v1006
    %v1457 = vpack.c.b16 %v1011, %v1009
    %v1458 = vpack.c.b16 %v1012, %v1010
    %v1459 = vpack.c.b16 %v1015, %v1013
    %v1460 = vpack.c.b16 %v1016, %v1014
    %v1461 = vpack.c.b16 %v1019, %v1017
    %v1462 = vpack.c.b16 %v1020, %v1018
    %v1463 = vpack.c.b16 %v1023, %v1021
    %v1464 = vpack.c.b16 %v1024, %v1022
    %v1465 = vpack.c.b16 %v1027, %v1025
    %v1466 = vpack.c.b16 %v1028, %v1026
    %v1467 = vpack.c.b16 %v1031, %v1029
    %v1468 = vpack.c.b16 %v1032, %v1030
    %v1469 = vpack.c.b16 %v1035, %v1033
    %v1470 = vpack.c.b16 %v1036, %v1034
    %v1471 = vpack.c.b16 %v1039, %v1037
    %v1472 = vpack.c.b16 %v1040, %v1038
    %v1473 = vpack.c.b16 %v1043, %v1041
    %v1474 = vpack.c.b16 %v1044, %v1042
    %v1475 = vpack.c.b16 %v1047, %v1045
    %v1476 = vpack.c.b16 %v1048, %v1046
    %v1477 = vpack.c.b16 %v1051, %v1049
    %v1478 = vpack.c.b16 %v1052, %v1050
    %v1479 = vpack.c.b16 %v1055, %v1053
    %v1480 = vpack.c.b16 %v1056, %v1054
    %v1481 = vpack.c.b16 %v1059, %v1057
    %v1482 = vpack.c.b16 %v1060, %v1058
    %v1483 = vpack.c.b16 %v1063, %v1061
    %v1484 = vpack.c.b16 %v1064, %v1062
    %v1485 = vpack.c.b16 %v1067, %v1065
    %v1486 = vpack.c.b16 %v1068, %v1066
    %v1487 = vpack.c.b16 %v1071, %v1069
    %v1488 = vpack.c.b16 %v1072, %v1070
    %v1489 = vpack.c.b16 %v1075, %v1073
    %v1490 = vpack.c.b16 %v1076, %v1074
    %v1491 = vpack.c.b16 %v1079, %v1077
    %v1492 = vpack.c.b16 %v1080, %v1078
    %v1493 = vpack.c.b16 %v1083, %v1081
    %v1494 = vpack.c.b16 %v1084, %v1082
    %v1495 = vpack.c.b16 %v1087, %v1085
    %v1496 = vpack.c.b16 %v1088, %v1086
    %v1497 = vpack.c.b16 %v1091, %v1089
    %v1498 = vpack.c.b16 %v1092, %v1090
    %v1499 = vpack.c.b16 %v1095, %v1093
    %v1500 = vpack.c.b16 %v1096, %v1094
    %v1501 = vpack.c.b16 %v1099, %v1097
    %v1502 = vpack.c.b16 %v1100, %v1098
    %v1503 = vpack.c.b16 %v1103, %v1101
    %v1504 = vpack.c.b16 %v1104, %v1102
    %v1505 = vpack.c.b16 %v1107, %v1105
    %v1506 = vpack.c.b16 %v1108, %v1106
    %v1507 = vpack.c.b16 %v1111, %v1109
    %v1508 = vpack.c.b16 %v1112, %v1110
    %v1509 = vpack.c.b16 %v1115, %v1113
    %v1510 = vpack.c.b16 %v1116, %v1114
    %v1511 = vpack.c.b16 %v1119, %v1117
    %v1512 = vpack.c.b16 %v1120, %v1118
    %v1513 = vpack.c.b16 %v1123, %v1121
    %v1514 = vpack.c.b16 %v1124, %v1122
    %v1515 = vpack.c.b16 %v1127, %v1125
    %v1516 = vpack.c.b16 %v1128, %v1126
    %v1517 = vpack.c.b16 %v1131, %v1129
    %v1518 = vpack.c.b16 %v1132, %v1130
    %v1519 = vpack.c.b16 %v1135, %v1133
    %v1520 = vpack.c.b16 %v1136, %v1134
    %v1521 = vpack.c.b16 %v1139, %v1137
    %v1522 = vpack.c.b16 %v1140, %v1138
    %v1523 = vpack.c.b16 %v1143, %v1141
    %v1524 = vpack.c.b16 %v1144, %v1142
    %v1525 = vpack.c.b16 %v1147, %v1145
    %v1526 = vpack.c.b16 %v1148, %v1146
    %v1527 = vpack.c.b16 %v1151, %v1149
    %v1528 = vpack.c.b16 %v1152, %v1150
    %v1529 = vpack.c.b16 %v1155, %v1153
    %v1530 = vpack.c.b16 %v1156, %v1154
    %v1531 = vpack.c.b16 %v1159, %v1157
    %v1532 = vpack.c.b16 %v1160, %v1158
    %v1533 = vpack.c.b16 %v1163, %v1161
    %v1534 = vpack.c.b16 %v1164, %v1162
    %v1535 = vpack.c.b16 %v1167, %v1165
    %v1536 = vpack.c.b16 %v1168, %v1166
    %v1537 = vpack.c.b16 %v1171, %v1169
    %v1538 = vpack.c.b16 %v1172, %v1170
    %v1539 = vpack.c.b16 %v1175, %v1173
    %v1540 = vpack.c.b16 %v1176, %v1174
    %v1541 = vpack.c.b16 %v1179, %v1177
    %v1542 = vpack.c.b16 %v1180, %v1178
    %v1543 = vpack.c.b16 %v1183, %v1181
    %v1544 = vpack.c.b16 %v1184, %v1182
    %v1545 = vpack.c.b16 %v1187, %v1185
    %v1546 = vpack.c.b16 %v1188, %v1186
    %v1547 = vpack.c.b16 %v1191, %v1189
    %v1548 = vpack.c.b16 %v1192, %v1190
    %v1549 = vpack.c.b16 %v1195, %v1193
    %v1550 = vpack.c.b16 %v1196, %v1194
    %v1551 = vpack.c.b16 %v1199, %v1197
    %v1552 = vpack.c.b16 %v1200, %v1198
    %v1553 = vpack.c.b16 %v1203, %v1201
    %v1554 = vpack.c.b16 %v1204, %v1202
    %v1555 = vpack.c.b16 %v1207, %v1205
    %v1556 = vpack.c.b16 %v1208, %v1206
    %v1557 = vpack.c.b16 %v1211, %v1209
    %v1558 = vpack.c.b16 %v1212, %v1210
    %v1559 = vpack.c.b16 %v1215, %v1213
    %v1560 = vpack.c.b16 %v1216, %v1214
    %v1561 = vpack.c.b16 %v1219, %v1217
    %v1562 = vpack.c.b16 %v1220, %v1218
    %v1563 = vpack.c.b16 %v1223, %v1221
    %v1564 = vpack.c.b16 %v1224, %v1222
    %v1565 = vpack.c.b16 %v1227, %v1225
    %v1566 = vpack.c.b16 %v1228, %v1226
    %v1567 = vpack.c.b16 %v1231, %v1229
    %v1568 = vpack.c.b16 %v1232, %v1230
    %v1569 = vpack.c.b16 %v1235, %v1233
    %v1570 = vpack.c.b16 %v1236, %v1234
    %v1571 = vpack.c.b16 %v1239, %v1237
    %v1572 = vpack.c.b16 %v1240, %v1238
    %v1573 = vpack.c.b16 %v1243, %v1241
    %v1574 = vpack.c.b16 %v1244, %v1242
    %v1575 = vpack.c.b16 %v1247, %v1245
    %v1576 = vpack.c.b16 %v1248, %v1246
    %v1577 = vpack.c.b16 %v1251, %v1249
    %v1578 = vpack.c.b16 %v1252, %v1250
    %v1579 = vpack.c.b16 %v1255, %v1253
    %v1580 = vpack.c.b16 %v1256, %v1254
    %v1581 = vpack.c.b16 %v1259, %v1257
    %v1582 = vpack.c.b16 %v1260, %v1258
    %v1583 = vpack.c.b16 %v1263, %v1261
    %v1584 = vpack.c.b16 %v1264, %v1262
    %v1585 = vpack.c.b16 %v1267, %v1265
    %v1586 = vpack.c.b16 %v1268, %v1266
    %v1587 = vpack.c.b16 %v1271, %v1269
    %v1588 = vpack.c.b16 %v1272, %v1270
    %v1589 = vpack.c.b16 %v1275, %v1273
    %v1590 = vpack.c.b16 %v1276, %v1274
    %v1591 = vpack.c.b16 %v1279, %v1277
    %v1592 = vpack.c.b16 %v1280, %v1278
    %v1593 = vpack.c.b16 %v1283, %v1281
    %v1594 = vpack.c.b16 %v1284, %v1282
    %v1595 = vpack.c.b16 %v1287, %v1285
    %v1596 = vpack.c.b16 %v1288, %v1286
    %v1597 = vpack.c.b16 %v1291, %v1289
    %v1598 = vpack.c.b16 %v1292, %v1290
    %v1599 = vpack.c.b16 %v1295, %v1293
    %v1600 = vpack.c.b16 %v1296, %v1294
    %v1601 = vpack.c.b16 %v1299, %v1297
    %v1602 = vpack.c.b16 %v1300, %v1298
    %v1603 = vpack.c.b16 %v1303, %v1301
    %v1604 = vpack.c.b16 %v1304, %v1302
    %v1605 = vpack.c.b16 %v1307, %v1305
    %v1606 = vpack.c.b16 %v1308, %v1306
    %v1607 = vpack.c.b16 %v1311, %v1309
    %v1608 = vpack.c.b16 %v1312, %v1310
    %v1609 = vpack.c.b16 %v1315, %v1313
    %v1610 = vpack.c.b16 %v1316, %v1314
    %v1611 = vpack.c.b16 %v1319, %v1317
    %v1612 = vpack.c.b16 %v1320, %v1318
    %v1613 = vpack.c.b16 %v1323, %v1321
    %v1614 = vpack.c.b16 %v1324, %v1322
    %v1615 = vpack.c.b16 %v1327, %v1325
    %v1616 = vpack.c.b16 %v1328, %v1326
    %1905 = vmatprep.subr.bf16.mxu0 %v1344
    %1906 = vmatpush1.bf16.msra.mxu0 %v1343
    %1907 = vmatprep.subr.bf16.mxu0 %v1342
    %1908 = vmatpush1.bf16.msra.mxu0 %v1341
    %1909 = vmatprep.subr.bf16.mxu0 %v1340
    %1910 = vmatpush1.bf16.msra.mxu0 %v1339
    %1911 = vmatprep.subr.bf16.mxu0 %v1338
    %1912 = vmatpush1.bf16.msra.mxu0 %v1337
    %1913 = vmatprep.subr.bf16.mxu0 %v1336
    %1914 = vmatpush1.bf16.msra.mxu0 %v1335
    %1915 = vmatprep.subr.bf16.mxu0 %v1334
    %1916 = vmatpush1.bf16.msra.mxu0 %v1333
    %1917 = vmatprep.subr.bf16.mxu0 %v1332
    %1918 = vmatpush1.bf16.msra.mxu0 %v1331
    %1919 = vmatprep.subr.bf16.mxu0 %v1330
    %1920 = vmatpush1.bf16.msra.mxu0 %v1329
    %1921 = vmatprep.subr.bf16.mxu0 %v1360
    %1922 = vmatpush2.bf16.msra.mxu0 %v1359
    %1923 = vmatprep.subr.bf16.mxu0 %v1358
    %1924 = vmatpush2.bf16.msra.mxu0 %v1357
    %1925 = vmatprep.subr.bf16.mxu0 %v1356
    %1926 = vmatpush2.bf16.msra.mxu0 %v1355
    %1927 = vmatprep.subr.bf16.mxu0 %v1354
    %1928 = vmatpush2.bf16.msra.mxu0 %v1353
    %1929 = vmatprep.subr.bf16.mxu0 %v1352
    %1930 = vmatpush2.bf16.msra.mxu0 %v1351
    %1931 = vmatprep.subr.bf16.mxu0 %v1350
    %1932 = vmatpush2.bf16.msra.mxu0 %v1349
    %1933 = vmatprep.subr.bf16.mxu0 %v1348
    %1934 = vmatpush2.bf16.msra.mxu0 %v1347
    %1935 = vmatprep.subr.bf16.mxu0 %v1346
    %1936 = vmatpush2.bf16.msra.mxu0 %v1345
    %1937 = vmatprep.mubr.bf16.mxu0 %v364
    %1938 = vmatmul.mubr.bf16.gmra.mxu0 %v350
    %v1939 = vpop.f32.mrf.mxu0
    %v1940 = vadd.f32 %v317, %v1939
    %v1941 = vpop.f32.mrf.mxu0
    %v1942 = vadd.f32 %v321, %v1941
    %v1943 = vpop.f32.mrf.mxu0
    %v1944 = vpop.f32.mrf.mxu0
    %1945 = vdwg.mxu0
    %1946 = vmatprep.subr.bf16.mxu0 %v1376
    %1947 = vmatpush1.bf16.msra.mxu0 %v1375
    %1948 = vmatprep.subr.bf16.mxu0 %v1374
    %1949 = vmatpush1.bf16.msra.mxu0 %v1373
    %1950 = vmatprep.subr.bf16.mxu0 %v1372
    %1951 = vmatpush1.bf16.msra.mxu0 %v1371
    %1952 = vmatprep.subr.bf16.mxu0 %v1370
    %1953 = vmatpush1.bf16.msra.mxu0 %v1369
    %1954 = vmatprep.subr.bf16.mxu0 %v1368
    %1955 = vmatpush1.bf16.msra.mxu0 %v1367
    %1956 = vmatprep.subr.bf16.mxu0 %v1366
    %1957 = vmatpush1.bf16.msra.mxu0 %v1365
    %1958 = vmatprep.subr.bf16.mxu0 %v1364
    %1959 = vmatpush1.bf16.msra.mxu0 %v1363
    %1960 = vmatprep.subr.bf16.mxu0 %v1362
    %1961 = vmatpush1.bf16.msra.mxu0 %v1361
    %1962 = vmatprep.subr.bf16.mxu0 %v1392
    %1963 = vmatpush2.bf16.msra.mxu0 %v1391
    %1964 = vmatprep.subr.bf16.mxu0 %v1390
    %1965 = vmatpush2.bf16.msra.mxu0 %v1389
    %1966 = vmatprep.subr.bf16.mxu0 %v1388
    %1967 = vmatpush2.bf16.msra.mxu0 %v1387
    %1968 = vmatprep.subr.bf16.mxu0 %v1386
    %1969 = vmatpush2.bf16.msra.mxu0 %v1385
    %1970 = vmatprep.subr.bf16.mxu0 %v1384
    %1971 = vmatpush2.bf16.msra.mxu0 %v1383
    %1972 = vmatprep.subr.bf16.mxu0 %v1382
    %1973 = vmatpush2.bf16.msra.mxu0 %v1381
    %1974 = vmatprep.subr.bf16.mxu0 %v1380
    %1975 = vmatpush2.bf16.msra.mxu0 %v1379
    %1976 = vmatprep.subr.bf16.mxu0 %v1378
    %1977 = vmatpush2.bf16.msra.mxu0 %v1377
    %1978 = vmatprep.mubr.bf16.mxu0 %v374
    %1979 = vmatmul.mubr.bf16.gmra.mxu0 %v372
    %v1980 = vpop.f32.mrf.mxu0
    %v1981 = vadd.f32 %v1940, %v1980
    %v1982 = vpop.f32.mrf.mxu0
    %v1983 = vadd.f32 %v1942, %v1982
    %v1984 = vpop.f32.mrf.mxu0
    %v1985 = vpop.f32.mrf.mxu0
    %1986 = vdwg.mxu0
    %1987 = vmatprep.subr.bf16.mxu0 %v1408
    %1988 = vmatpush1.bf16.msra.mxu0 %v1407
    %1989 = vmatprep.subr.bf16.mxu0 %v1406
    %1990 = vmatpush1.bf16.msra.mxu0 %v1405
    %1991 = vmatprep.subr.bf16.mxu0 %v1404
    %1992 = vmatpush1.bf16.msra.mxu0 %v1403
    %1993 = vmatprep.subr.bf16.mxu0 %v1402
    %1994 = vmatpush1.bf16.msra.mxu0 %v1401
    %1995 = vmatprep.subr.bf16.mxu0 %v1400
    %1996 = vmatpush1.bf16.msra.mxu0 %v1399
    %1997 = vmatprep.subr.bf16.mxu0 %v1398
    %1998 = vmatpush1.bf16.msra.mxu0 %v1397
    %1999 = vmatprep.subr.bf16.mxu0 %v1396
    %2000 = vmatpush1.bf16.msra.mxu0 %v1395
    %2001 = vmatprep.subr.bf16.mxu0 %v1394
    %2002 = vmatpush1.bf16.msra.mxu0 %v1393
    %2003 = vmatprep.subr.bf16.mxu0 %v1424
    %2004 = vmatpush2.bf16.msra.mxu0 %v1423
    %2005 = vmatprep.subr.bf16.mxu0 %v1422
    %2006 = vmatpush2.bf16.msra.mxu0 %v1421
    %2007 = vmatprep.subr.bf16.mxu0 %v1420
    %2008 = vmatpush2.bf16.msra.mxu0 %v1419
    %2009 = vmatprep.subr.bf16.mxu0 %v1418
    %2010 = vmatpush2.bf16.msra.mxu0 %v1417
    %2011 = vmatprep.subr.bf16.mxu0 %v1416
    %2012 = vmatpush2.bf16.msra.mxu0 %v1415
    %2013 = vmatprep.subr.bf16.mxu0 %v1414
    %2014 = vmatpush2.bf16.msra.mxu0 %v1413
    %2015 = vmatprep.subr.bf16.mxu0 %v1412
    %2016 = vmatpush2.bf16.msra.mxu0 %v1411
    %2017 = vmatprep.subr.bf16.mxu0 %v1410
    %2018 = vmatpush2.bf16.msra.mxu0 %v1409
    %2019 = vmatprep.mubr.bf16.mxu0 %v371
    %2020 = vmatmul.mubr.bf16.gmra.mxu0 %v357
    %v2021 = vpop.f32.mrf.mxu0
    %v2022 = vadd.f32 %v1981, %v2021
    %v2023 = vpop.f32.mrf.mxu0
    %v2024 = vadd.f32 %v1983, %v2023
    %v2025 = vpop.f32.mrf.mxu0
    %v2026 = vpop.f32.mrf.mxu0
    %2027 = vdwg.mxu0
    %2028 = vmatprep.subr.bf16.mxu0 %v1440
    %2029 = vmatpush1.bf16.msra.mxu0 %v1439
    %2030 = vmatprep.subr.bf16.mxu0 %v1438
    %2031 = vmatpush1.bf16.msra.mxu0 %v1437
    %2032 = vmatprep.subr.bf16.mxu0 %v1436
    %2033 = vmatpush1.bf16.msra.mxu0 %v1435
    %2034 = vmatprep.subr.bf16.mxu0 %v1434
    %2035 = vmatpush1.bf16.msra.mxu0 %v1433
    %2036 = vmatprep.subr.bf16.mxu0 %v1432
    %2037 = vmatpush1.bf16.msra.mxu0 %v1431
    %2038 = vmatprep.subr.bf16.mxu0 %v1430
    %2039 = vmatpush1.bf16.msra.mxu0 %v1429
    %2040 = vmatprep.subr.bf16.mxu0 %v1428
    %2041 = vmatpush1.bf16.msra.mxu0 %v1427
    %2042 = vmatprep.subr.bf16.mxu0 %v1426
    %2043 = vmatpush1.bf16.msra.mxu0 %v1425
    %2044 = vmatprep.subr.bf16.mxu0 %v1456
    %2045 = vmatpush2.bf16.msra.mxu0 %v1455
    %2046 = vmatprep.subr.bf16.mxu0 %v1454
    %2047 = vmatpush2.bf16.msra.mxu0 %v1453
    %2048 = vmatprep.subr.bf16.mxu0 %v1452
    %2049 = vmatpush2.bf16.msra.mxu0 %v1451
    %2050 = vmatprep.subr.bf16.mxu0 %v1450
    %2051 = vmatpush2.bf16.msra.mxu0 %v1449
    %2052 = vmatprep.subr.bf16.mxu0 %v1448
    %2053 = vmatpush2.bf16.msra.mxu0 %v1447
    %2054 = vmatprep.subr.bf16.mxu0 %v1446
    %2055 = vmatpush2.bf16.msra.mxu0 %v1445
    %2056 = vmatprep.subr.bf16.mxu0 %v1444
    %2057 = vmatpush2.bf16.msra.mxu0 %v1443
    %2058 = vmatprep.subr.bf16.mxu0 %v1442
    %2059 = vmatpush2.bf16.msra.mxu0 %v1441
    %2060 = vmatprep.mubr.bf16.mxu0 %v375
    %2061 = vmatmul.mubr.bf16.gmra.mxu0 %v373
    %v2062 = vpop.f32.mrf.mxu0
    %v2063 = vadd.f32 %v2022, %v2062
    %v2064 = vpop.f32.mrf.mxu0
    %v2065 = vadd.f32 %v2024, %v2064
    %v2066 = vpop.f32.mrf.mxu0
    %v2067 = vpop.f32.mrf.mxu0
    %2068 = vdwg.mxu0
    %2069 = vmatprep.subr.bf16.mxu0 %v1472
    %2070 = vmatpush1.bf16.msra.mxu0 %v1471
    %2071 = vmatprep.subr.bf16.mxu0 %v1470
    %2072 = vmatpush1.bf16.msra.mxu0 %v1469
    %2073 = vmatprep.subr.bf16.mxu0 %v1468
    %2074 = vmatpush1.bf16.msra.mxu0 %v1467
    %2075 = vmatprep.subr.bf16.mxu0 %v1466
    %2076 = vmatpush1.bf16.msra.mxu0 %v1465
    %2077 = vmatprep.subr.bf16.mxu0 %v1464
    %2078 = vmatpush1.bf16.msra.mxu0 %v1463
    %2079 = vmatprep.subr.bf16.mxu0 %v1462
    %2080 = vmatpush1.bf16.msra.mxu0 %v1461
    %2081 = vmatprep.subr.bf16.mxu0 %v1460
    %2082 = vmatpush1.bf16.msra.mxu0 %v1459
    %2083 = vmatprep.subr.bf16.mxu0 %v1458
    %2084 = vmatpush1.bf16.msra.mxu0 %v1457
    %2085 = vmatprep.subr.bf16.mxu0 %v1488
    %2086 = vmatpush2.bf16.msra.mxu0 %v1487
    %2087 = vmatprep.subr.bf16.mxu0 %v1486
    %2088 = vmatpush2.bf16.msra.mxu0 %v1485
    %2089 = vmatprep.subr.bf16.mxu0 %v1484
    %2090 = vmatpush2.bf16.msra.mxu0 %v1483
    %2091 = vmatprep.subr.bf16.mxu0 %v1482
    %2092 = vmatpush2.bf16.msra.mxu0 %v1481
    %2093 = vmatprep.subr.bf16.mxu0 %v1480
    %2094 = vmatpush2.bf16.msra.mxu0 %v1479
    %2095 = vmatprep.subr.bf16.mxu0 %v1478
    %2096 = vmatpush2.bf16.msra.mxu0 %v1477
    %2097 = vmatprep.subr.bf16.mxu0 %v1476
    %2098 = vmatpush2.bf16.msra.mxu0 %v1475
    %2099 = vmatprep.subr.bf16.mxu0 %v1474
    %2100 = vmatpush2.bf16.msra.mxu0 %v1473
    %2101 = vmatprep.mubr.bf16.mxu0 %v413
    %2102 = vmatmul.mubr.bf16.gmra.mxu0 %v399
    %v2103 = vpop.f32.mrf.mxu0
    %v2104 = vadd.f32 %v2063, %v2103
    %v2105 = vpop.f32.mrf.mxu0
    %v2106 = vadd.f32 %v2065, %v2105
    %v2107 = vpop.f32.mrf.mxu0
    %v2108 = vpop.f32.mrf.mxu0
    %2109 = vdwg.mxu0
    %2110 = vmatprep.subr.bf16.mxu0 %v1504
    %2111 = vmatpush1.bf16.msra.mxu0 %v1503
    %2112 = vmatprep.subr.bf16.mxu0 %v1502
    %2113 = vmatpush1.bf16.msra.mxu0 %v1501
    %2114 = vmatprep.subr.bf16.mxu0 %v1500
    %2115 = vmatpush1.bf16.msra.mxu0 %v1499
    %2116 = vmatprep.subr.bf16.mxu0 %v1498
    %2117 = vmatpush1.bf16.msra.mxu0 %v1497
    %2118 = vmatprep.subr.bf16.mxu0 %v1496
    %2119 = vmatpush1.bf16.msra.mxu0 %v1495
    %2120 = vmatprep.subr.bf16.mxu0 %v1494
    %2121 = vmatpush1.bf16.msra.mxu0 %v1493
    %2122 = vmatprep.subr.bf16.mxu0 %v1492
    %2123 = vmatpush1.bf16.msra.mxu0 %v1491
    %2124 = vmatprep.subr.bf16.mxu0 %v1490
    %2125 = vmatpush1.bf16.msra.mxu0 %v1489
    %2126 = vmatprep.subr.bf16.mxu0 %v1520
    %2127 = vmatpush2.bf16.msra.mxu0 %v1519
    %2128 = vmatprep.subr.bf16.mxu0 %v1518
    %2129 = vmatpush2.bf16.msra.mxu0 %v1517
    %2130 = vmatprep.subr.bf16.mxu0 %v1516
    %2131 = vmatpush2.bf16.msra.mxu0 %v1515
    %2132 = vmatprep.subr.bf16.mxu0 %v1514
    %2133 = vmatpush2.bf16.msra.mxu0 %v1513
    %2134 = vmatprep.subr.bf16.mxu0 %v1512
    %2135 = vmatpush2.bf16.msra.mxu0 %v1511
    %2136 = vmatprep.subr.bf16.mxu0 %v1510
    %2137 = vmatpush2.bf16.msra.mxu0 %v1509
    %2138 = vmatprep.subr.bf16.mxu0 %v1508
    %2139 = vmatpush2.bf16.msra.mxu0 %v1507
    %2140 = vmatprep.subr.bf16.mxu0 %v1506
    %2141 = vmatpush2.bf16.msra.mxu0 %v1505
    %2142 = vmatprep.mubr.bf16.mxu0 %v423
    %2143 = vmatmul.mubr.bf16.gmra.mxu0 %v421
    %v2144 = vpop.f32.mrf.mxu0
    %v2145 = vadd.f32 %v2104, %v2144
    %v2146 = vpop.f32.mrf.mxu0
    %v2147 = vadd.f32 %v2106, %v2146
    %v2148 = vpop.f32.mrf.mxu0
    %v2149 = vpop.f32.mrf.mxu0
    %2150 = vdwg.mxu0
    %2151 = vmatprep.subr.bf16.mxu0 %v1536
    %2152 = vmatpush1.bf16.msra.mxu0 %v1535
    %2153 = vmatprep.subr.bf16.mxu0 %v1534
    %2154 = vmatpush1.bf16.msra.mxu0 %v1533
    %2155 = vmatprep.subr.bf16.mxu0 %v1532
    %2156 = vmatpush1.bf16.msra.mxu0 %v1531
    %2157 = vmatprep.subr.bf16.mxu0 %v1530
    %2158 = vmatpush1.bf16.msra.mxu0 %v1529
    %2159 = vmatprep.subr.bf16.mxu0 %v1528
    %2160 = vmatpush1.bf16.msra.mxu0 %v1527
    %2161 = vmatprep.subr.bf16.mxu0 %v1526
    %2162 = vmatpush1.bf16.msra.mxu0 %v1525
    %2163 = vmatprep.subr.bf16.mxu0 %v1524
    %2164 = vmatpush1.bf16.msra.mxu0 %v1523
    %2165 = vmatprep.subr.bf16.mxu0 %v1522
    %2166 = vmatpush1.bf16.msra.mxu0 %v1521
    %2167 = vmatprep.subr.bf16.mxu0 %v1552
    %2168 = vmatpush2.bf16.msra.mxu0 %v1551
    %2169 = vmatprep.subr.bf16.mxu0 %v1550
    %2170 = vmatpush2.bf16.msra.mxu0 %v1549
    %2171 = vmatprep.subr.bf16.mxu0 %v1548
    %2172 = vmatpush2.bf16.msra.mxu0 %v1547
    %2173 = vmatprep.subr.bf16.mxu0 %v1546
    %2174 = vmatpush2.bf16.msra.mxu0 %v1545
    %2175 = vmatprep.subr.bf16.mxu0 %v1544
    %2176 = vmatpush2.bf16.msra.mxu0 %v1543
    %2177 = vmatprep.subr.bf16.mxu0 %v1542
    %2178 = vmatpush2.bf16.msra.mxu0 %v1541
    %2179 = vmatprep.subr.bf16.mxu0 %v1540
    %2180 = vmatpush2.bf16.msra.mxu0 %v1539
    %2181 = vmatprep.subr.bf16.mxu0 %v1538
    %2182 = vmatpush2.bf16.msra.mxu0 %v1537
    %2183 = vmatprep.mubr.bf16.mxu0 %v420
    %2184 = vmatmul.mubr.bf16.gmra.mxu0 %v406
    %v2185 = vpop.f32.mrf.mxu0
    %v2186 = vadd.f32 %v2145, %v2185
    %v2187 = vpop.f32.mrf.mxu0
    %v2188 = vadd.f32 %v2147, %v2187
    %v2189 = vpop.f32.mrf.mxu0
    %v2190 = vpop.f32.mrf.mxu0
    %2191 = vdwg.mxu0
    %2192 = vmatprep.subr.bf16.mxu0 %v1568
    %2193 = vmatpush1.bf16.msra.mxu0 %v1567
    %2194 = vmatprep.subr.bf16.mxu0 %v1566
    %2195 = vmatpush1.bf16.msra.mxu0 %v1565
    %2196 = vmatprep.subr.bf16.mxu0 %v1564
    %2197 = vmatpush1.bf16.msra.mxu0 %v1563
    %2198 = vmatprep.subr.bf16.mxu0 %v1562
    %2199 = vmatpush1.bf16.msra.mxu0 %v1561
    %2200 = vmatprep.subr.bf16.mxu0 %v1560
    %2201 = vmatpush1.bf16.msra.mxu0 %v1559
    %2202 = vmatprep.subr.bf16.mxu0 %v1558
    %2203 = vmatpush1.bf16.msra.mxu0 %v1557
    %2204 = vmatprep.subr.bf16.mxu0 %v1556
    %2205 = vmatpush1.bf16.msra.mxu0 %v1555
    %2206 = vmatprep.subr.bf16.mxu0 %v1554
    %2207 = vmatpush1.bf16.msra.mxu0 %v1553
    %2208 = vmatprep.subr.bf16.mxu0 %v1584
    %2209 = vmatpush2.bf16.msra.mxu0 %v1583
    %2210 = vmatprep.subr.bf16.mxu0 %v1582
    %2211 = vmatpush2.bf16.msra.mxu0 %v1581
    %2212 = vmatprep.subr.bf16.mxu0 %v1580
    %2213 = vmatpush2.bf16.msra.mxu0 %v1579
    %2214 = vmatprep.subr.bf16.mxu0 %v1578
    %2215 = vmatpush2.bf16.msra.mxu0 %v1577
    %2216 = vmatprep.subr.bf16.mxu0 %v1576
    %2217 = vmatpush2.bf16.msra.mxu0 %v1575
    %2218 = vmatprep.subr.bf16.mxu0 %v1574
    %2219 = vmatpush2.bf16.msra.mxu0 %v1573
    %2220 = vmatprep.subr.bf16.mxu0 %v1572
    %2221 = vmatpush2.bf16.msra.mxu0 %v1571
    %2222 = vmatprep.subr.bf16.mxu0 %v1570
    %2223 = vmatpush2.bf16.msra.mxu0 %v1569
    %2224 = vmatprep.mubr.bf16.mxu0 %v424
    %2225 = vmatmul.mubr.bf16.gmra.mxu0 %v422
    %v2226 = vpop.f32.mrf.mxu0
    %v2227 = vadd.f32 %v2186, %v2226
    %v2228 = vpop.f32.mrf.mxu0
    %v2229 = vadd.f32 %v2188, %v2228
    %v2230 = vpop.f32.mrf.mxu0
    %v2231 = vpop.f32.mrf.mxu0
    %2232 = vdwg.mxu0
    %2233 = vmatprep.subr.bf16.mxu0 %v1600
    %2234 = vmatpush1.bf16.msra.mxu0 %v1599
    %2235 = vmatprep.subr.bf16.mxu0 %v1598
    %2236 = vmatpush1.bf16.msra.mxu0 %v1597
    %2237 = vmatprep.subr.bf16.mxu0 %v1596
    %2238 = vmatpush1.bf16.msra.mxu0 %v1595
    %2239 = vmatprep.subr.bf16.mxu0 %v1594
    %2240 = vmatpush1.bf16.msra.mxu0 %v1593
    %2241 = vmatprep.subr.bf16.mxu0 %v1592
    %2242 = vmatpush1.bf16.msra.mxu0 %v1591
    %2243 = vmatprep.subr.bf16.mxu0 %v1590
    %2244 = vmatpush1.bf16.msra.mxu0 %v1589
    %2245 = vmatprep.subr.bf16.mxu0 %v1588
    %2246 = vmatpush1.bf16.msra.mxu0 %v1587
    %2247 = vmatprep.subr.bf16.mxu0 %v1586
    %2248 = vmatpush1.bf16.msra.mxu0 %v1585
    %2249 = vmatprep.subr.bf16.mxu0 %v1616
    %2250 = vmatpush2.bf16.msra.mxu0 %v1615
    %2251 = vmatprep.subr.bf16.mxu0 %v1614
    %2252 = vmatpush2.bf16.msra.mxu0 %v1613
    %2253 = vmatprep.subr.bf16.mxu0 %v1612
    %2254 = vmatpush2.bf16.msra.mxu0 %v1611
    %2255 = vmatprep.subr.bf16.mxu0 %v1610
    %2256 = vmatpush2.bf16.msra.mxu0 %v1609
    %2257 = vmatprep.subr.bf16.mxu0 %v1608
    %2258 = vmatpush2.bf16.msra.mxu0 %v1607
    %2259 = vmatprep.subr.bf16.mxu0 %v1606
    %2260 = vmatpush2.bf16.msra.mxu0 %v1605
    %2261 = vmatprep.subr.bf16.mxu0 %v1604
    %2262 = vmatpush2.bf16.msra.mxu0 %v1603
    %2263 = vmatprep.subr.bf16.mxu0 %v1602
    %2264 = vmatpush2.bf16.msra.mxu0 %v1601
    %2265 = vmatprep.mubr.bf16.mxu0 %v446
    %2266 = vmatmul.mubr.bf16.gmra.mxu0 %v439
    %v2267 = vpop.f32.mrf.mxu0
    %v2268 = vadd.f32 %v2227, %v2267
    %v2269 = vpop.f32.mrf.mxu0
    %v2270 = vadd.f32 %v2229, %v2269
    %v2271 = vpop.f32.mrf.mxu0
    %v2272 = vpop.f32.mrf.mxu0
    %2273 = vdwg.mxu0
    %v2274 = vld [vmem:[%s3] sm:$0xff]
    %v2275 = vld [vmem:[%s3 + $0x8] sm:$0xff]
    %v2276 = vld [vmem:[%s3 + $0x10] sm:$0xff]
    %v2277 = vld [vmem:[%s3 + $0x18] sm:$0xff]
    %v2278 = vld [vmem:[%s3 + $0x20] sm:$0xff]
    %v2279 = vld [vmem:[%s3 + $0x28] sm:$0xff]
    %v2280 = vld [vmem:[%s3 + $0x30] sm:$0xff]
    %v2281 = vld [vmem:[%s3 + $0x38] sm:$0xff]
    %v2282 = vld [vmem:[%s3 + $0x40] sm:$0xff]
    %v2283 = vld [vmem:[%s3 + $0x48] sm:$0xff]
    %v2284 = vld [vmem:[%s3 + $0x50] sm:$0xff]
    %v2285 = vld [vmem:[%s3 + $0x58] sm:$0xff]
    %v2286 = vld [vmem:[%s3 + $0x60] sm:$0xff]
    %v2287 = vld [vmem:[%s3 + $0x68] sm:$0xff]
    %v2288 = vld [vmem:[%s3 + $0x70] sm:$0xff]
    %v2289 = vld [vmem:[%s3 + $0x78] sm:$0xff]
    %v2290 = vld [vmem:[%s3 + $0x80] sm:$0xff]
    %v2291 = vld [vmem:[%s3 + $0x88] sm:$0xff]
    %v2292 = vld [vmem:[%s3 + $0x90] sm:$0xff]
    %v2293 = vld [vmem:[%s3 + $0x98] sm:$0xff]
    %v2294 = vld [vmem:[%s3 + $0xa0] sm:$0xff]
    %v2295 = vld [vmem:[%s3 + $0xa8] sm:$0xff]
    %v2296 = vld [vmem:[%s3 + $0xb0] sm:$0xff]
    %v2297 = vld [vmem:[%s3 + $0xb8] sm:$0xff]
    %v2298 = vld [vmem:[%s3 + $0xc0] sm:$0xff]
    %v2299 = vld [vmem:[%s3 + $0xc8] sm:$0xff]
    %v2300 = vld [vmem:[%s3 + $0xd0] sm:$0xff]
    %v2301 = vld [vmem:[%s3 + $0xd8] sm:$0xff]
    %v2302 = vld [vmem:[%s3 + $0xe0] sm:$0xff]
    %v2303 = vld [vmem:[%s3 + $0xe8] sm:$0xff]
    %v2304 = vld [vmem:[%s3 + $0xf0] sm:$0xff]
    %v2305 = vld [vmem:[%s3 + $0xf8] sm:$0xff]
    %v2306 = vld [vmem:[%s4] sm:$0x1]
    %v2308 = vlaneseq
    %v2309 = vshrl.u32 %v2308, 7
    %v2310 = vsub.s32 0, %v2309
    %v2311 = vrot.slane %v2306, %v2310
    %2313 = vmatprep.subr.mxu0 0.0
    %2314 = vmatpush1.msra.mxu0 %v2289
    %2315 = vmatprep.subr.mxu0 0.0
    %2316 = vmatpush1.msra.mxu0 %v2288
    %2317 = vmatprep.subr.mxu0 0.0
    %2318 = vmatpush1.msra.mxu0 %v2287
    %2319 = vmatprep.subr.mxu0 0.0
    %2320 = vmatpush1.msra.mxu0 %v2286
    %2321 = vmatprep.subr.mxu0 0.0
    %2322 = vmatpush1.msra.mxu0 %v2285
    %2323 = vmatprep.subr.mxu0 0.0
    %2324 = vmatpush1.msra.mxu0 %v2284
    %2325 = vmatprep.subr.mxu0 0.0
    %2326 = vmatpush1.msra.mxu0 %v2283
    %2327 = vmatprep.subr.mxu0 0.0
    %2328 = vmatpush1.msra.mxu0 %v2282
    %2329 = vmatprep.subr.mxu0 0.0
    %2330 = vmatpush1.msra.mxu0 %v2281
    %2331 = vmatprep.subr.mxu0 0.0
    %2332 = vmatpush1.msra.mxu0 %v2280
    %2333 = vmatprep.subr.mxu0 0.0
    %2334 = vmatpush1.msra.mxu0 %v2279
    %2335 = vmatprep.subr.mxu0 0.0
    %2336 = vmatpush1.msra.mxu0 %v2278
    %2337 = vmatprep.subr.mxu0 0.0
    %2338 = vmatpush1.msra.mxu0 %v2277
    %2339 = vmatprep.subr.mxu0 0.0
    %2340 = vmatpush1.msra.mxu0 %v2276
    %2341 = vmatprep.subr.mxu0 0.0
    %2342 = vmatpush1.msra.mxu0 %v2275
    %2343 = vmatprep.subr.mxu0 0.0
    %2344 = vmatpush1.msra.mxu0 %v2274
    %2345 = vmatprep.subr.mxu0 0.0
    %2346 = vmatpush2.msra.mxu0 %v2305
    %2347 = vmatprep.subr.mxu0 0.0
    %2348 = vmatpush2.msra.mxu0 %v2304
    %2349 = vmatprep.subr.mxu0 0.0
    %2350 = vmatpush2.msra.mxu0 %v2303
    %2351 = vmatprep.subr.mxu0 0.0
    %2352 = vmatpush2.msra.mxu0 %v2302
    %2353 = vmatprep.subr.mxu0 0.0
    %2354 = vmatpush2.msra.mxu0 %v2301
    %2355 = vmatprep.subr.mxu0 0.0
    %2356 = vmatpush2.msra.mxu0 %v2300
    %2357 = vmatprep.subr.mxu0 0.0
    %2358 = vmatpush2.msra.mxu0 %v2299
    %2359 = vmatprep.subr.mxu0 0.0
    %2360 = vmatpush2.msra.mxu0 %v2298
    %2361 = vmatprep.subr.mxu0 0.0
    %2362 = vmatpush2.msra.mxu0 %v2297
    %2363 = vmatprep.subr.mxu0 0.0
    %2364 = vmatpush2.msra.mxu0 %v2296
    %2365 = vmatprep.subr.mxu0 0.0
    %2366 = vmatpush2.msra.mxu0 %v2295
    %2367 = vmatprep.subr.mxu0 0.0
    %2368 = vmatpush2.msra.mxu0 %v2294
    %2369 = vmatprep.subr.mxu0 0.0
    %2370 = vmatpush2.msra.mxu0 %v2293
    %2371 = vmatprep.subr.mxu0 0.0
    %2372 = vmatpush2.msra.mxu0 %v2292
    %2373 = vmatprep.subr.mxu0 0.0
    %2374 = vmatpush2.msra.mxu0 %v2291
    %2375 = vmatprep.subr.mxu0 0.0
    %2376 = vmatpush2.msra.mxu0 %v2290
    %2377 = vmatprep.mubr.f32.mxu0 %v2270
    %2378 = vmatmul.mubr.f32.gmra.mxu0 %v2268
    %v2379 = vpop.f32.mrf.mxu0
    %v2380 = vadd.f32 %v2311, %v2379
    %v2381 = vpop.f32.mrf.mxu0
    %2382 = vdwg.mxu0
    %2383 = vst [vmem:[#allocation2] sm:$0x3] %v2380
    // Predicated region
    $region22: #{dqn_forward.5} parent=1 // pred_check
      _
    $region23: #{dqn_forward.5} parent=1 // pred_check_branch
      %2385 = sbr.rel (0) target = $region25
    $region24: #{dqn_forward.5} parent=1 // pred_region
      %s2387 = ssub.s32 32, 32
      %2388 = vsyncadd [#allocation3], %s2387
      %s2390 = sshll.u32 [#allocation2], 4
      %s2391 = int_to_ptr.vmem [resolvable:$true] %s2390
      %2393 = dma.vmem_to_hbm [thread:$0]  %s2391, 32, %s5, [#allocation3]
    $region25: #{dqn_forward.5} parent=1 // pred_fallthru
      _
    // Predicated region
    $region26: #{dqn_forward.5} parent=1 // pred_check
      _
    $region27: #{dqn_forward.5} parent=1 // pred_check_branch
      %2395 = sbr.rel (0) target = $region29
    $region28: #{dqn_forward.5} parent=1 // pred_region
      %2396 = dma.done [#allocation3], 32
    $region29: #{dqn_forward.5} parent=1 // pred_fallthru
      _
    %2397 = vsyncpa [#allocation3], 1

</llo_original>
